<compile_context>
chip_gen: v7x
topology: tpu7x:2x2x1
jax: 0.10.0
libtpu: 0.0.40
codegen_flags: <defaults>
</compile_context>

<pallas_src>
import jax
import jax.numpy as jnp
from jax import lax
from jax.experimental import pallas as pl
from jax.experimental.pallas import tpu as pltpu


_ROW_BLOCK = 8           # output rows per accumulator block (sublane granularity)
_MAX_UNROLL_TAPS = 256   # fully unroll the tap loops only up to this many taps
_C_BLK = 128             # lane-dense channel block


def _rep_lk_kernel(wt_ref, b_ref, x_ref, o_ref, pad_ref, sem):
    # wt_ref : (K, K, C_BLK) f32 VMEM     fused weights, indexed [dj, di, c]
    # b_ref  : (1, C_BLK)    f32 VMEM     fused per-channel bias
    # x_ref  : (n_cb, N, Hp, Wp, C_BLK)   host-padded input, left in HBM (pl.ANY)
    # o_ref  : (1, TILE_H, W, C_BLK)      output block (lane-dense)
    # pad_ref: (2, TILE_H + 2P, Wp, C_BLK) VMEM double buffer for the padded rows
    # sem    : DMA semaphores, one per buffer slot
    K = wt_ref.shape[0]
    P = K // 2
    tile_h, W, c_blk = o_ref.shape[1], o_ref.shape[2], o_ref.shape[3]
    tile_hp = tile_h + 2 * P

    cb = pl.program_id(0)
    n = pl.program_id(1)
    hb = pl.program_id(2)
    n_hb = pl.num_programs(2)
    slot = hb % 2

    def copy_for(hb_idx, slot_idx):
        # Rows [hb_idx*tile_h, hb_idx*tile_h + tile_hp) of the H-padded image: halo
        # included, contiguous in HBM thanks to the (n_cb, N, Hp, Wp, C_BLK) layout.
        return pltpu.make_async_copy(
            x_ref.at[cb, n, pl.ds(hb_idx * tile_h, tile_hp)],
            pad_ref.at[slot_idx],
            sem.at[slot_idx])

    # First H block of each (cb, n) image fetches itself; later blocks were
    # prefetched by the previous step.  Self-contained per (cb, n) group, so the
    # outer grid axes can stay "parallel" (megacore-safe).
    @pl.when(hb == 0)
    def _():
        copy_for(hb, slot).start()

    copy_for(hb, slot).wait()

    @pl.when(hb + 1 < n_hb)
    def _():
        copy_for(hb + 1, 1 - slot).start()

    bias = b_ref[...]                               # (1, C_BLK)
    unroll = (K * K) <= _MAX_UNROLL_TAPS

    # Row-blocked accumulation: acc stays small (vreg-resident for modest W).  The
    # sublane (W) shift is hoisted to the dj loop, so only K shifted slab loads
    # happen per row block instead of K*K.
    for r0 in range(0, tile_h, _ROW_BLOCK):
        rows = min(_ROW_BLOCK, tile_h - r0)
        acc = jnp.zeros((rows, W, c_blk), jnp.float32)

        if unroll:
            for dj in range(K):
                # One column-shifted slab per dj (rows + 2P, W, C_BLK).
                col = pad_ref[slot, r0:r0 + rows + 2 * P, dj:dj + W, :]
                for di in range(K):
                    acc = acc + col[di:di + rows] * wt_ref[dj, di, :]
        else:
            # Large-K path (e.g. K=31/51): fori over dj keeps instruction count sane.
            def dj_body(dj, acc):
                col = pad_ref[slot, pl.ds(r0, rows + 2 * P), pl.ds(dj, W), :]
                wrow = wt_ref[dj]                   # (K, C_BLK)
                for di in range(K):
                    acc = acc + col[di:di + rows] * wrow[di, :]
                return acc

            acc = lax.fori_loop(0, K, dj_body, acc)

        o_ref[0, r0:r0 + rows] = (acc + bias).astype(o_ref.dtype)


def _fuse_bn(weight, bn):
    # weight: (C, 1, k, k) depthwise weight -> (C, k, k) BN-scaled weight, (C,) bias
    std = jnp.sqrt(bn["var"] + bn["eps"])
    t = bn["gamma"] / std
    return weight[:, 0] * t[:, None, None], bn["beta"] - bn["mean"] * t


def _vmem_budget():
    cap = 128 << 20
    try:
        cap = int(getattr(pltpu.get_tpu_info(), "vmem_capacity_bytes", cap))
    except Exception:
        pass
    # ~100 MiB on 128 MiB parts, ~51 MiB on 64 MiB (v7x) parts.
    return max(min(cap - (8 << 20), int(cap * 0.8)), 24 << 20)


def _vmem_need(tile_h, W, K, c_blk):
    P = K // 2
    wp = W + 2 * P
    pad_bytes = 2 * (tile_h + 2 * P) * wp * c_blk * 4      # double-buffered padded rows
    out_bytes = 2 * tile_h * W * c_blk * 4                 # double-buffered output block
    wt_bytes = 2 * (K * K + 1) * c_blk * 4                 # weights + bias
    tmp_bytes = (2 * (_ROW_BLOCK + 2 * P) + _ROW_BLOCK) * W * c_blk * 4  # col/acc temps
    return pad_bytes + out_bytes + wt_bytes + tmp_bytes + (2 << 20)


def _pick_tile_h(H, W, K, c_blk, budget):
    best = 1
    for t in range(1, H + 1):
        if H % t == 0 and _vmem_need(t, W, K, c_blk) <= budget:
            best = t
    return best


def reparam_large_kernel_conv(x, lk_w, lk_bn, sk_w, sk_bn, *,
                              kernel_size, small_kernel, tile_h=None):
    """x: (N, C, H, W) float32 -> (N, C, H, W) float32 (depthwise, stride 1)."""
    N, C, H, W = x.shape
    K = kernel_size
    P = K // 2

    # Exact fusion: BN1(conv_K(x)) + BN2(conv_S(x)) == conv_K(x; eq_k) + eq_b
    eq_k, eq_b = _fuse_bn(lk_w, lk_bn)
    if sk_w is not None and small_kernel is not None and small_kernel < K:
        sk_k, sk_b = _fuse_bn(sk_w, sk_bn)
        ps = (K - small_kernel) // 2
        eq_k = eq_k + jnp.pad(sk_k, ((0, 0), (ps, ps), (ps, ps)))
        eq_b = eq_b + sk_b

    c_pad = -(-C // _C_BLK) * _C_BLK
    n_cb = c_pad // _C_BLK

    # Weight table laid out [dj, di, c] so the large-K fori path indexes the leading
    # (untiled) dim with the traced dj; channels padded to the lane-dense width.
    wt = jnp.transpose(eq_k.astype(jnp.float32), (2, 1, 0))        # (K_dj, K_di, C)
    wt = jnp.pad(wt, ((0, 0), (0, 0), (0, c_pad - C)))
    bias = jnp.pad(eq_b.astype(jnp.float32), (0, c_pad - C)).reshape(1, c_pad)

    Hp, Wp = H + 2 * P, W + 2 * P

    # TODO(synk): take NHWC directly to avoid this layout pass (fused with the pad).
    x_nhwc = jnp.transpose(x.astype(jnp.float32), (0, 2, 3, 1))
    x_pad = jnp.pad(x_nhwc, ((0, 0), (P, P), (P, P), (0, c_pad - C)))
    # (n_cb, N, Hp, Wp, C_BLK): every (cb, n) image's row range is HBM-contiguous.
    x_blk = x_pad.reshape(N, Hp, Wp, n_cb, _C_BLK).transpose(3, 0, 1, 2, 4)

    budget = _vmem_budget()
    if tile_h is None:
        tile_h = _pick_tile_h(H, W, K, _C_BLK, budget)
    assert H % tile_h == 0, "tile_h must divide H"
    n_hb = H // tile_h
    tile_hp = tile_h + 2 * P

    vmem_limit = int(min(budget, max(_vmem_need(tile_h, W, K, _C_BLK), 32 << 20)))

    out_nhwc = pl.pallas_call(
        _rep_lk_kernel,
        out_shape=jax.ShapeDtypeStruct((N, H, W, c_pad), jnp.float32),
        grid=(n_cb, N, n_hb),
        in_specs=[
            pl.BlockSpec((K, K, _C_BLK), lambda cb, n, hb: (0, 0, cb)),   # weights
            pl.BlockSpec((1, _C_BLK), lambda cb, n, hb: (0, cb)),         # bias
            pl.BlockSpec(memory_space=pl.ANY),                            # padded x (HBM)
        ],
        out_specs=pl.BlockSpec((1, tile_h, W, _C_BLK),
                               lambda cb, n, hb: (n, hb, 0, cb)),
        scratch_shapes=[
            pltpu.VMEM((2, tile_hp, Wp, _C_BLK), jnp.float32),
            pltpu.SemaphoreType.DMA((2,)),
        ],
        compiler_params=pltpu.CompilerParams(
            dimension_semantics=("parallel", "parallel", "arbitrary"),
            vmem_limit_bytes=vmem_limit),
        cost_estimate=pl.CostEstimate(
            flops=2 * N * C * H * W * K * K,
            transcendentals=0,
            bytes_accessed=2 * N * C * H * W * 4 + (K * K + 1) * C * 4),
    )(wt, bias, x_blk)

    return jnp.transpose(out_nhwc[..., :C], (0, 3, 1, 2))


def _ref_forward(x, lk_w, lk_bn, sk_w, sk_bn, K, S):
    # Pure-JAX reference (two depthwise convs + inference BN), for verification.
    def branch(wt, bn, pad):
        y = lax.conv_general_dilated(
            x, wt, window_strides=(1, 1), padding=[(pad, pad), (pad, pad)],
            dimension_numbers=("NCHW", "OIHW", "NCHW"),
            feature_group_count=x.shape[1])
        std = jnp.sqrt(bn["var"] + bn["eps"])
        return ((y - bn["mean"][None, :, None, None]) / std[None, :, None, None]
                * bn["gamma"][None, :, None, None] + bn["beta"][None, :, None, None])
    return branch(lk_w, lk_bn, K // 2) + branch(sk_w, sk_bn, S // 2)


if __name__ == "__main__":
    key = jax.random.PRNGKey(0)
    N, C, H, W = 2, 4, 16, 16          # small synthetic shapes
    K, S = 7, 3                        # large kernel 7, small kernel 3
    ks = jax.random.split(key, 11)

    x = jax.random.normal(ks[0], (N, C, H, W), jnp.float32)
    lk_w = 0.1 * jax.random.normal(ks[1], (C, 1, K, K), jnp.float32)
    sk_w = 0.1 * jax.random.normal(ks[2], (C, 1, S, S), jnp.float32)

    lk_bn = dict(
        gamma=1.0 + 0.1 * jax.random.normal(ks[3], (C,), jnp.float32),
        beta=0.1 * jax.random.normal(ks[4], (C,), jnp.float32),
        mean=0.1 * jax.random.normal(ks[5], (C,), jnp.float32),
        var=jax.nn.softplus(jax.random.normal(ks[6], (C,), jnp.float32)) + 0.5,
        eps=1e-5,
    )
    sk_bn = dict(
        gamma=1.0 + 0.1 * jax.random.normal(ks[7], (C,), jnp.float32),
        beta=0.1 * jax.random.normal(ks[8], (C,), jnp.float32),
        mean=0.1 * jax.random.normal(ks[9], (C,), jnp.float32),
        var=jax.nn.softplus(jax.random.normal(ks[10], (C,), jnp.float32)) + 0.5,
        eps=1e-5,
    )

    ref = _ref_forward(x, lk_w, lk_bn, sk_w, sk_bn, K, S)

    # 1) H-blocked path (tile_h=8 -> two row blocks per image, exercises the manual
    #    DMA prefetch pipeline).
    out_blk = reparam_large_kernel_conv(x, lk_w, lk_bn, sk_w, sk_bn,
                                        kernel_size=K, small_kernel=S, tile_h=8)
    jax.block_until_ready(out_blk)
    assert out_blk.shape == (N, C, H, W) and out_blk.dtype == jnp.float32
    assert jnp.allclose(out_blk, ref, atol=1e-3, rtol=1e-3), "mismatch (tile_h=8)"

    # 2) Auto tiling (whole image per step for this small shape).
    out_auto = reparam_large_kernel_conv(x, lk_w, lk_bn, sk_w, sk_bn,
                                         kernel_size=K, small_kernel=S)
    jax.block_until_ready(out_auto)
    assert jnp.allclose(out_auto, ref, atol=1e-3, rtol=1e-3), "mismatch (auto tile)"

    print("KERNEL_OK")
</pallas_src>

<mosaic_0001>
module attributes {stable_mosaic.version = 11 : i64} {
  func.func @_rep_lk_kernel(%arg0: i32, %arg1: i32, %arg2: i32, %arg3: memref<7x7x128xf32, #tpu.memory_space<vmem>>, %arg4: memref<1x128xf32, #tpu.memory_space<vmem>>, %arg5: memref<1x2x22x22x128xf32, #tpu.memory_space<any>>, %arg6: memref<1x8x16x128xf32, #tpu.memory_space<vmem>>, %arg7: memref<2x14x22x128xf32, #tpu.memory_space<vmem>>, %arg8: memref<2x!tpu.dma_semaphore, #tpu.memory_space<semaphore_mem>>) attributes {dimension_semantics = [#tpu.dimension_semantics<parallel>, #tpu.dimension_semantics<parallel>, #tpu.dimension_semantics<arbitrary>], iteration_bounds = array<i64: 1, 2, 2>, scalar_prefetch = 0 : i64, scratch_operands = 2 : i64, tpu.core_type = #tpu.core_type<tc>, window_params = [{transform_indices = @transform_0, window_bounds = array<i64: 7, 7, 128>}, {transform_indices = @transform_1, window_bounds = array<i64: 1, 128>}, {}, {transform_indices = @transform_3, window_bounds = array<i64: 1, 8, 16, 128>}]} {
    %c2_i32 = arith.constant 2 : i32
    %c0_i32 = arith.constant 0 : i32
    %0 = arith.cmpi eq, %c2_i32, %c0_i32 : i32
    %c1_i32 = arith.constant 1 : i32
    %1 = arith.select %0, %c1_i32, %c2_i32 : i32
    %2 = arith.remsi %arg2, %1 : i32
    %c0_i32_0 = arith.constant 0 : i32
    %3 = arith.cmpi ne, %2, %c0_i32_0 : i32
    %c0_i32_1 = arith.constant 0 : i32
    %4 = arith.cmpi slt, %2, %c0_i32_1 : i32
    %c0_i32_2 = arith.constant 0 : i32
    %5 = arith.cmpi slt, %1, %c0_i32_2 : i32
    %6 = arith.xori %4, %5 : i1
    %7 = arith.andi %6, %3 : i1
    %8 = arith.addi %2, %1 : i32
    %9 = arith.select %7, %8, %2 : i32
    %c0_i32_3 = arith.constant 0 : i32
    %10 = arith.cmpi eq, %arg2, %c0_i32_3 : i32
    %11 = arith.extui %10 : i1 to i32
    %c0_i32_4 = arith.constant 0 : i32
    %12 = arith.cmpi ne, %11, %c0_i32_4 : i32
    scf.if %12 {
      %c8_i32_180 = arith.constant 8 : i32
      %396 = arith.muli %arg2, %c8_i32_180 : i32
      %c0_i32_181 = arith.constant 0 : i32
      %c0_i32_182 = arith.constant 0 : i32
      %397 = tpu.memref_slice %arg5[%arg0, %arg1, %396, %c0_i32_181, %c0_i32_182] : memref<1x2x22x22x128xf32, #tpu.memory_space<any>> -> memref<1x1x14x22x128xf32, #tpu.memory_space<any>>
      %398 = tpu.memref_squeeze %397 : memref<1x1x14x22x128xf32, #tpu.memory_space<any>> -> memref<14x22x128xf32, #tpu.memory_space<any>>
      %c0_i32_183 = arith.constant 0 : i32
      %c0_i32_184 = arith.constant 0 : i32
      %c0_i32_185 = arith.constant 0 : i32
      %399 = tpu.memref_slice %arg7[%9, %c0_i32_183, %c0_i32_184, %c0_i32_185] : memref<2x14x22x128xf32, #tpu.memory_space<vmem>> -> memref<1x14x22x128xf32, #tpu.memory_space<vmem>>
      %400 = tpu.memref_squeeze %399 : memref<1x14x22x128xf32, #tpu.memory_space<vmem>> -> memref<14x22x128xf32, #tpu.memory_space<vmem>>
      %401 = tpu.memref_slice %arg8[%9] : memref<2x!tpu.dma_semaphore, #tpu.memory_space<semaphore_mem>> -> memref<1x!tpu.dma_semaphore, #tpu.memory_space<semaphore_mem>>
      %402 = tpu.memref_squeeze %401 : memref<1x!tpu.dma_semaphore, #tpu.memory_space<semaphore_mem>> -> memref<!tpu.dma_semaphore, #tpu.memory_space<semaphore_mem>>
      tpu.enqueue_dma source(%398 : memref<14x22x128xf32, #tpu.memory_space<any>>) target(%400 : memref<14x22x128xf32, #tpu.memory_space<vmem>>) target_semaphore(%402 : memref<!tpu.dma_semaphore, #tpu.memory_space<semaphore_mem>>)
    } else {
    }
    %c8_i32 = arith.constant 8 : i32
    %13 = arith.muli %arg2, %c8_i32 : i32
    %c0_i32_5 = arith.constant 0 : i32
    %c0_i32_6 = arith.constant 0 : i32
    %14 = tpu.memref_slice %arg5[%arg0, %arg1, %13, %c0_i32_5, %c0_i32_6] : memref<1x2x22x22x128xf32, #tpu.memory_space<any>> -> memref<1x1x14x22x128xf32, #tpu.memory_space<any>>
    %15 = tpu.memref_squeeze %14 : memref<1x1x14x22x128xf32, #tpu.memory_space<any>> -> memref<14x22x128xf32, #tpu.memory_space<any>>
    %c0_i32_7 = arith.constant 0 : i32
    %c0_i32_8 = arith.constant 0 : i32
    %c0_i32_9 = arith.constant 0 : i32
    %16 = tpu.memref_slice %arg7[%9, %c0_i32_7, %c0_i32_8, %c0_i32_9] : memref<2x14x22x128xf32, #tpu.memory_space<vmem>> -> memref<1x14x22x128xf32, #tpu.memory_space<vmem>>
    %17 = tpu.memref_squeeze %16 : memref<1x14x22x128xf32, #tpu.memory_space<vmem>> -> memref<14x22x128xf32, #tpu.memory_space<vmem>>
    %18 = tpu.memref_slice %arg8[%9] : memref<2x!tpu.dma_semaphore, #tpu.memory_space<semaphore_mem>> -> memref<1x!tpu.dma_semaphore, #tpu.memory_space<semaphore_mem>>
    %19 = tpu.memref_squeeze %18 : memref<1x!tpu.dma_semaphore, #tpu.memory_space<semaphore_mem>> -> memref<!tpu.dma_semaphore, #tpu.memory_space<semaphore_mem>>
    tpu.wait_dma2 semaphore(%19 : memref<!tpu.dma_semaphore, #tpu.memory_space<semaphore_mem>>) src(%15 : memref<14x22x128xf32, #tpu.memory_space<any>>) dst(%17 : memref<14x22x128xf32, #tpu.memory_space<vmem>>)
    %c1_i32_10 = arith.constant 1 : i32
    %20 = arith.addi %arg2, %c1_i32_10 : i32
    %c2_i32_11 = arith.constant 2 : i32
    %21 = arith.cmpi slt, %20, %c2_i32_11 : i32
    %22 = arith.extui %21 : i1 to i32
    %c0_i32_12 = arith.constant 0 : i32
    %23 = arith.cmpi ne, %22, %c0_i32_12 : i32
    scf.if %23 {
      %c1_i32_180 = arith.constant 1 : i32
      %396 = arith.addi %arg2, %c1_i32_180 : i32
      %c1_i32_181 = arith.constant 1 : i32
      %397 = arith.subi %c1_i32_181, %9 : i32
      %c8_i32_182 = arith.constant 8 : i32
      %398 = arith.muli %396, %c8_i32_182 : i32
      %c0_i32_183 = arith.constant 0 : i32
      %c0_i32_184 = arith.constant 0 : i32
      %399 = tpu.memref_slice %arg5[%arg0, %arg1, %398, %c0_i32_183, %c0_i32_184] : memref<1x2x22x22x128xf32, #tpu.memory_space<any>> -> memref<1x1x14x22x128xf32, #tpu.memory_space<any>>
      %400 = tpu.memref_squeeze %399 : memref<1x1x14x22x128xf32, #tpu.memory_space<any>> -> memref<14x22x128xf32, #tpu.memory_space<any>>
      %c0_i32_185 = arith.constant 0 : i32
      %c0_i32_186 = arith.constant 0 : i32
      %c0_i32_187 = arith.constant 0 : i32
      %401 = tpu.memref_slice %arg7[%397, %c0_i32_185, %c0_i32_186, %c0_i32_187] : memref<2x14x22x128xf32, #tpu.memory_space<vmem>> -> memref<1x14x22x128xf32, #tpu.memory_space<vmem>>
      %402 = tpu.memref_squeeze %401 : memref<1x14x22x128xf32, #tpu.memory_space<vmem>> -> memref<14x22x128xf32, #tpu.memory_space<vmem>>
      %403 = tpu.memref_slice %arg8[%397] : memref<2x!tpu.dma_semaphore, #tpu.memory_space<semaphore_mem>> -> memref<1x!tpu.dma_semaphore, #tpu.memory_space<semaphore_mem>>
      %404 = tpu.memref_squeeze %403 : memref<1x!tpu.dma_semaphore, #tpu.memory_space<semaphore_mem>> -> memref<!tpu.dma_semaphore, #tpu.memory_space<semaphore_mem>>
      tpu.enqueue_dma source(%400 : memref<14x22x128xf32, #tpu.memory_space<any>>) target(%402 : memref<14x22x128xf32, #tpu.memory_space<vmem>>) target_semaphore(%404 : memref<!tpu.dma_semaphore, #tpu.memory_space<semaphore_mem>>)
    } else {
    }
    %c0 = arith.constant 0 : index
    %c0_13 = arith.constant 0 : index
    %24 = vector.load %arg4[%c0, %c0_13] : memref<1x128xf32, #tpu.memory_space<vmem>>, vector<1x128xf32>
    %cst = arith.constant 0.000000e+00 : f32
    %25 = vector.broadcast %cst : f32 to vector<8x16x128xf32>
    %26 = arith.index_cast %9 : i32 to index
    %c0_14 = arith.constant 0 : index
    %c0_15 = arith.constant 0 : index
    %c0_16 = arith.constant 0 : index
    %27 = vector.load %arg7[%26, %c0_14, %c0_15, %c0_16] : memref<2x14x22x128xf32, #tpu.memory_space<vmem>>, vector<1x14x16x128xf32>
    %28 = vector.shape_cast %27 : vector<1x14x16x128xf32> to vector<14x16x128xf32>
    %29 = vector.extract_strided_slice %28 {offsets = [0, 0, 0], sizes = [8, 16, 128], strides = [1, 1, 1]} : vector<14x16x128xf32> to vector<8x16x128xf32>
    %c0_17 = arith.constant 0 : index
    %c0_18 = arith.constant 0 : index
    %c0_19 = arith.constant 0 : index
    %30 = vector.load %arg3[%c0_17, %c0_18, %c0_19] : memref<7x7x128xf32, #tpu.memory_space<vmem>>, vector<1x1x128xf32>
    %31 = vector.shape_cast %30 : vector<1x1x128xf32> to vector<128xf32>
    %32 = vector.shape_cast %31 : vector<128xf32> to vector<1x1x128xf32>
    %33 = vector.broadcast %32 : vector<1x1x128xf32> to vector<8x16x128xf32>
    %34 = arith.mulf %29, %33 : vector<8x16x128xf32>
    %35 = arith.addf %25, %34 : vector<8x16x128xf32>
    %36 = vector.extract_strided_slice %28 {offsets = [1, 0, 0], sizes = [8, 16, 128], strides = [1, 1, 1]} : vector<14x16x128xf32> to vector<8x16x128xf32>
    %c0_20 = arith.constant 0 : index
    %c1 = arith.constant 1 : index
    %c0_21 = arith.constant 0 : index
    %37 = vector.load %arg3[%c0_20, %c1, %c0_21] : memref<7x7x128xf32, #tpu.memory_space<vmem>>, vector<1x1x128xf32>
    %38 = vector.shape_cast %37 : vector<1x1x128xf32> to vector<128xf32>
    %39 = vector.shape_cast %38 : vector<128xf32> to vector<1x1x128xf32>
    %40 = vector.broadcast %39 : vector<1x1x128xf32> to vector<8x16x128xf32>
    %41 = arith.mulf %36, %40 : vector<8x16x128xf32>
    %42 = arith.addf %35, %41 : vector<8x16x128xf32>
    %43 = vector.extract_strided_slice %28 {offsets = [2, 0, 0], sizes = [8, 16, 128], strides = [1, 1, 1]} : vector<14x16x128xf32> to vector<8x16x128xf32>
    %c0_22 = arith.constant 0 : index
    %c2 = arith.constant 2 : index
    %c0_23 = arith.constant 0 : index
    %44 = vector.load %arg3[%c0_22, %c2, %c0_23] : memref<7x7x128xf32, #tpu.memory_space<vmem>>, vector<1x1x128xf32>
    %45 = vector.shape_cast %44 : vector<1x1x128xf32> to vector<128xf32>
    %46 = vector.shape_cast %45 : vector<128xf32> to vector<1x1x128xf32>
    %47 = vector.broadcast %46 : vector<1x1x128xf32> to vector<8x16x128xf32>
    %48 = arith.mulf %43, %47 : vector<8x16x128xf32>
    %49 = arith.addf %42, %48 : vector<8x16x128xf32>
    %50 = vector.extract_strided_slice %28 {offsets = [3, 0, 0], sizes = [8, 16, 128], strides = [1, 1, 1]} : vector<14x16x128xf32> to vector<8x16x128xf32>
    %c0_24 = arith.constant 0 : index
    %c3 = arith.constant 3 : index
    %c0_25 = arith.constant 0 : index
    %51 = vector.load %arg3[%c0_24, %c3, %c0_25] : memref<7x7x128xf32, #tpu.memory_space<vmem>>, vector<1x1x128xf32>
    %52 = vector.shape_cast %51 : vector<1x1x128xf32> to vector<128xf32>
    %53 = vector.shape_cast %52 : vector<128xf32> to vector<1x1x128xf32>
    %54 = vector.broadcast %53 : vector<1x1x128xf32> to vector<8x16x128xf32>
    %55 = arith.mulf %50, %54 : vector<8x16x128xf32>
    %56 = arith.addf %49, %55 : vector<8x16x128xf32>
    %57 = vector.extract_strided_slice %28 {offsets = [4, 0, 0], sizes = [8, 16, 128], strides = [1, 1, 1]} : vector<14x16x128xf32> to vector<8x16x128xf32>
    %c0_26 = arith.constant 0 : index
    %c4 = arith.constant 4 : index
    %c0_27 = arith.constant 0 : index
    %58 = vector.load %arg3[%c0_26, %c4, %c0_27] : memref<7x7x128xf32, #tpu.memory_space<vmem>>, vector<1x1x128xf32>
    %59 = vector.shape_cast %58 : vector<1x1x128xf32> to vector<128xf32>
    %60 = vector.shape_cast %59 : vector<128xf32> to vector<1x1x128xf32>
    %61 = vector.broadcast %60 : vector<1x1x128xf32> to vector<8x16x128xf32>
    %62 = arith.mulf %57, %61 : vector<8x16x128xf32>
    %63 = arith.addf %56, %62 : vector<8x16x128xf32>
    %64 = vector.extract_strided_slice %28 {offsets = [5, 0, 0], sizes = [8, 16, 128], strides = [1, 1, 1]} : vector<14x16x128xf32> to vector<8x16x128xf32>
    %c0_28 = arith.constant 0 : index
    %c5 = arith.constant 5 : index
    %c0_29 = arith.constant 0 : index
    %65 = vector.load %arg3[%c0_28, %c5, %c0_29] : memref<7x7x128xf32, #tpu.memory_space<vmem>>, vector<1x1x128xf32>
    %66 = vector.shape_cast %65 : vector<1x1x128xf32> to vector<128xf32>
    %67 = vector.shape_cast %66 : vector<128xf32> to vector<1x1x128xf32>
    %68 = vector.broadcast %67 : vector<1x1x128xf32> to vector<8x16x128xf32>
    %69 = arith.mulf %64, %68 : vector<8x16x128xf32>
    %70 = arith.addf %63, %69 : vector<8x16x128xf32>
    %71 = vector.extract_strided_slice %28 {offsets = [6, 0, 0], sizes = [8, 16, 128], strides = [1, 1, 1]} : vector<14x16x128xf32> to vector<8x16x128xf32>
    %c0_30 = arith.constant 0 : index
    %c6 = arith.constant 6 : index
    %c0_31 = arith.constant 0 : index
    %72 = vector.load %arg3[%c0_30, %c6, %c0_31] : memref<7x7x128xf32, #tpu.memory_space<vmem>>, vector<1x1x128xf32>
    %73 = vector.shape_cast %72 : vector<1x1x128xf32> to vector<128xf32>
    %74 = vector.shape_cast %73 : vector<128xf32> to vector<1x1x128xf32>
    %75 = vector.broadcast %74 : vector<1x1x128xf32> to vector<8x16x128xf32>
    %76 = arith.mulf %71, %75 : vector<8x16x128xf32>
    %77 = arith.addf %70, %76 : vector<8x16x128xf32>
    %78 = arith.index_cast %9 : i32 to index
    %c0_32 = arith.constant 0 : index
    %c1_33 = arith.constant 1 : index
    %c0_34 = arith.constant 0 : index
    %79 = vector.load %arg7[%78, %c0_32, %c1_33, %c0_34] : memref<2x14x22x128xf32, #tpu.memory_space<vmem>>, vector<1x14x16x128xf32>
    %80 = vector.shape_cast %79 : vector<1x14x16x128xf32> to vector<14x16x128xf32>
    %81 = vector.extract_strided_slice %80 {offsets = [0, 0, 0], sizes = [8, 16, 128], strides = [1, 1, 1]} : vector<14x16x128xf32> to vector<8x16x128xf32>
    %c1_35 = arith.constant 1 : index
    %c0_36 = arith.constant 0 : index
    %c0_37 = arith.constant 0 : index
    %82 = vector.load %arg3[%c1_35, %c0_36, %c0_37] : memref<7x7x128xf32, #tpu.memory_space<vmem>>, vector<1x1x128xf32>
    %83 = vector.shape_cast %82 : vector<1x1x128xf32> to vector<128xf32>
    %84 = vector.shape_cast %83 : vector<128xf32> to vector<1x1x128xf32>
    %85 = vector.broadcast %84 : vector<1x1x128xf32> to vector<8x16x128xf32>
    %86 = arith.mulf %81, %85 : vector<8x16x128xf32>
    %87 = arith.addf %77, %86 : vector<8x16x128xf32>
    %88 = vector.extract_strided_slice %80 {offsets = [1, 0, 0], sizes = [8, 16, 128], strides = [1, 1, 1]} : vector<14x16x128xf32> to vector<8x16x128xf32>
    %c1_38 = arith.constant 1 : index
    %c1_39 = arith.constant 1 : index
    %c0_40 = arith.constant 0 : index
    %89 = vector.load %arg3[%c1_38, %c1_39, %c0_40] : memref<7x7x128xf32, #tpu.memory_space<vmem>>, vector<1x1x128xf32>
    %90 = vector.shape_cast %89 : vector<1x1x128xf32> to vector<128xf32>
    %91 = vector.shape_cast %90 : vector<128xf32> to vector<1x1x128xf32>
    %92 = vector.broadcast %91 : vector<1x1x128xf32> to vector<8x16x128xf32>
    %93 = arith.mulf %88, %92 : vector<8x16x128xf32>
    %94 = arith.addf %87, %93 : vector<8x16x128xf32>
    %95 = vector.extract_strided_slice %80 {offsets = [2, 0, 0], sizes = [8, 16, 128], strides = [1, 1, 1]} : vector<14x16x128xf32> to vector<8x16x128xf32>
    %c1_41 = arith.constant 1 : index
    %c2_42 = arith.constant 2 : index
    %c0_43 = arith.constant 0 : index
    %96 = vector.load %arg3[%c1_41, %c2_42, %c0_43] : memref<7x7x128xf32, #tpu.memory_space<vmem>>, vector<1x1x128xf32>
    %97 = vector.shape_cast %96 : vector<1x1x128xf32> to vector<128xf32>
    %98 = vector.shape_cast %97 : vector<128xf32> to vector<1x1x128xf32>
    %99 = vector.broadcast %98 : vector<1x1x128xf32> to vector<8x16x128xf32>
    %100 = arith.mulf %95, %99 : vector<8x16x128xf32>
    %101 = arith.addf %94, %100 : vector<8x16x128xf32>
    %102 = vector.extract_strided_slice %80 {offsets = [3, 0, 0], sizes = [8, 16, 128], strides = [1, 1, 1]} : vector<14x16x128xf32> to vector<8x16x128xf32>
    %c1_44 = arith.constant 1 : index
    %c3_45 = arith.constant 3 : index
    %c0_46 = arith.constant 0 : index
    %103 = vector.load %arg3[%c1_44, %c3_45, %c0_46] : memref<7x7x128xf32, #tpu.memory_space<vmem>>, vector<1x1x128xf32>
    %104 = vector.shape_cast %103 : vector<1x1x128xf32> to vector<128xf32>
    %105 = vector.shape_cast %104 : vector<128xf32> to vector<1x1x128xf32>
    %106 = vector.broadcast %105 : vector<1x1x128xf32> to vector<8x16x128xf32>
    %107 = arith.mulf %102, %106 : vector<8x16x128xf32>
    %108 = arith.addf %101, %107 : vector<8x16x128xf32>
    %109 = vector.extract_strided_slice %80 {offsets = [4, 0, 0], sizes = [8, 16, 128], strides = [1, 1, 1]} : vector<14x16x128xf32> to vector<8x16x128xf32>
    %c1_47 = arith.constant 1 : index
    %c4_48 = arith.constant 4 : index
    %c0_49 = arith.constant 0 : index
    %110 = vector.load %arg3[%c1_47, %c4_48, %c0_49] : memref<7x7x128xf32, #tpu.memory_space<vmem>>, vector<1x1x128xf32>
    %111 = vector.shape_cast %110 : vector<1x1x128xf32> to vector<128xf32>
    %112 = vector.shape_cast %111 : vector<128xf32> to vector<1x1x128xf32>
    %113 = vector.broadcast %112 : vector<1x1x128xf32> to vector<8x16x128xf32>
    %114 = arith.mulf %109, %113 : vector<8x16x128xf32>
    %115 = arith.addf %108, %114 : vector<8x16x128xf32>
    %116 = vector.extract_strided_slice %80 {offsets = [5, 0, 0], sizes = [8, 16, 128], strides = [1, 1, 1]} : vector<14x16x128xf32> to vector<8x16x128xf32>
    %c1_50 = arith.constant 1 : index
    %c5_51 = arith.constant 5 : index
    %c0_52 = arith.constant 0 : index
    %117 = vector.load %arg3[%c1_50, %c5_51, %c0_52] : memref<7x7x128xf32, #tpu.memory_space<vmem>>, vector<1x1x128xf32>
    %118 = vector.shape_cast %117 : vector<1x1x128xf32> to vector<128xf32>
    %119 = vector.shape_cast %118 : vector<128xf32> to vector<1x1x128xf32>
    %120 = vector.broadcast %119 : vector<1x1x128xf32> to vector<8x16x128xf32>
    %121 = arith.mulf %116, %120 : vector<8x16x128xf32>
    %122 = arith.addf %115, %121 : vector<8x16x128xf32>
    %123 = vector.extract_strided_slice %80 {offsets = [6, 0, 0], sizes = [8, 16, 128], strides = [1, 1, 1]} : vector<14x16x128xf32> to vector<8x16x128xf32>
    %c1_53 = arith.constant 1 : index
    %c6_54 = arith.constant 6 : index
    %c0_55 = arith.constant 0 : index
    %124 = vector.load %arg3[%c1_53, %c6_54, %c0_55] : memref<7x7x128xf32, #tpu.memory_space<vmem>>, vector<1x1x128xf32>
    %125 = vector.shape_cast %124 : vector<1x1x128xf32> to vector<128xf32>
    %126 = vector.shape_cast %125 : vector<128xf32> to vector<1x1x128xf32>
    %127 = vector.broadcast %126 : vector<1x1x128xf32> to vector<8x16x128xf32>
    %128 = arith.mulf %123, %127 : vector<8x16x128xf32>
    %129 = arith.addf %122, %128 : vector<8x16x128xf32>
    %130 = arith.index_cast %9 : i32 to index
    %c0_56 = arith.constant 0 : index
    %c2_57 = arith.constant 2 : index
    %c0_58 = arith.constant 0 : index
    %131 = vector.load %arg7[%130, %c0_56, %c2_57, %c0_58] : memref<2x14x22x128xf32, #tpu.memory_space<vmem>>, vector<1x14x16x128xf32>
    %132 = vector.shape_cast %131 : vector<1x14x16x128xf32> to vector<14x16x128xf32>
    %133 = vector.extract_strided_slice %132 {offsets = [0, 0, 0], sizes = [8, 16, 128], strides = [1, 1, 1]} : vector<14x16x128xf32> to vector<8x16x128xf32>
    %c2_59 = arith.constant 2 : index
    %c0_60 = arith.constant 0 : index
    %c0_61 = arith.constant 0 : index
    %134 = vector.load %arg3[%c2_59, %c0_60, %c0_61] : memref<7x7x128xf32, #tpu.memory_space<vmem>>, vector<1x1x128xf32>
    %135 = vector.shape_cast %134 : vector<1x1x128xf32> to vector<128xf32>
    %136 = vector.shape_cast %135 : vector<128xf32> to vector<1x1x128xf32>
    %137 = vector.broadcast %136 : vector<1x1x128xf32> to vector<8x16x128xf32>
    %138 = arith.mulf %133, %137 : vector<8x16x128xf32>
    %139 = arith.addf %129, %138 : vector<8x16x128xf32>
    %140 = vector.extract_strided_slice %132 {offsets = [1, 0, 0], sizes = [8, 16, 128], strides = [1, 1, 1]} : vector<14x16x128xf32> to vector<8x16x128xf32>
    %c2_62 = arith.constant 2 : index
    %c1_63 = arith.constant 1 : index
    %c0_64 = arith.constant 0 : index
    %141 = vector.load %arg3[%c2_62, %c1_63, %c0_64] : memref<7x7x128xf32, #tpu.memory_space<vmem>>, vector<1x1x128xf32>
    %142 = vector.shape_cast %141 : vector<1x1x128xf32> to vector<128xf32>
    %143 = vector.shape_cast %142 : vector<128xf32> to vector<1x1x128xf32>
    %144 = vector.broadcast %143 : vector<1x1x128xf32> to vector<8x16x128xf32>
    %145 = arith.mulf %140, %144 : vector<8x16x128xf32>
    %146 = arith.addf %139, %145 : vector<8x16x128xf32>
    %147 = vector.extract_strided_slice %132 {offsets = [2, 0, 0], sizes = [8, 16, 128], strides = [1, 1, 1]} : vector<14x16x128xf32> to vector<8x16x128xf32>
    %c2_65 = arith.constant 2 : index
    %c2_66 = arith.constant 2 : index
    %c0_67 = arith.constant 0 : index
    %148 = vector.load %arg3[%c2_65, %c2_66, %c0_67] : memref<7x7x128xf32, #tpu.memory_space<vmem>>, vector<1x1x128xf32>
    %149 = vector.shape_cast %148 : vector<1x1x128xf32> to vector<128xf32>
    %150 = vector.shape_cast %149 : vector<128xf32> to vector<1x1x128xf32>
    %151 = vector.broadcast %150 : vector<1x1x128xf32> to vector<8x16x128xf32>
    %152 = arith.mulf %147, %151 : vector<8x16x128xf32>
    %153 = arith.addf %146, %152 : vector<8x16x128xf32>
    %154 = vector.extract_strided_slice %132 {offsets = [3, 0, 0], sizes = [8, 16, 128], strides = [1, 1, 1]} : vector<14x16x128xf32> to vector<8x16x128xf32>
    %c2_68 = arith.constant 2 : index
    %c3_69 = arith.constant 3 : index
    %c0_70 = arith.constant 0 : index
    %155 = vector.load %arg3[%c2_68, %c3_69, %c0_70] : memref<7x7x128xf32, #tpu.memory_space<vmem>>, vector<1x1x128xf32>
    %156 = vector.shape_cast %155 : vector<1x1x128xf32> to vector<128xf32>
    %157 = vector.shape_cast %156 : vector<128xf32> to vector<1x1x128xf32>
    %158 = vector.broadcast %157 : vector<1x1x128xf32> to vector<8x16x128xf32>
    %159 = arith.mulf %154, %158 : vector<8x16x128xf32>
    %160 = arith.addf %153, %159 : vector<8x16x128xf32>
    %161 = vector.extract_strided_slice %132 {offsets = [4, 0, 0], sizes = [8, 16, 128], strides = [1, 1, 1]} : vector<14x16x128xf32> to vector<8x16x128xf32>
    %c2_71 = arith.constant 2 : index
    %c4_72 = arith.constant 4 : index
    %c0_73 = arith.constant 0 : index
    %162 = vector.load %arg3[%c2_71, %c4_72, %c0_73] : memref<7x7x128xf32, #tpu.memory_space<vmem>>, vector<1x1x128xf32>
    %163 = vector.shape_cast %162 : vector<1x1x128xf32> to vector<128xf32>
    %164 = vector.shape_cast %163 : vector<128xf32> to vector<1x1x128xf32>
    %165 = vector.broadcast %164 : vector<1x1x128xf32> to vector<8x16x128xf32>
    %166 = arith.mulf %161, %165 : vector<8x16x128xf32>
    %167 = arith.addf %160, %166 : vector<8x16x128xf32>
    %168 = vector.extract_strided_slice %132 {offsets = [5, 0, 0], sizes = [8, 16, 128], strides = [1, 1, 1]} : vector<14x16x128xf32> to vector<8x16x128xf32>
    %c2_74 = arith.constant 2 : index
    %c5_75 = arith.constant 5 : index
    %c0_76 = arith.constant 0 : index
    %169 = vector.load %arg3[%c2_74, %c5_75, %c0_76] : memref<7x7x128xf32, #tpu.memory_space<vmem>>, vector<1x1x128xf32>
    %170 = vector.shape_cast %169 : vector<1x1x128xf32> to vector<128xf32>
    %171 = vector.shape_cast %170 : vector<128xf32> to vector<1x1x128xf32>
    %172 = vector.broadcast %171 : vector<1x1x128xf32> to vector<8x16x128xf32>
    %173 = arith.mulf %168, %172 : vector<8x16x128xf32>
    %174 = arith.addf %167, %173 : vector<8x16x128xf32>
    %175 = vector.extract_strided_slice %132 {offsets = [6, 0, 0], sizes = [8, 16, 128], strides = [1, 1, 1]} : vector<14x16x128xf32> to vector<8x16x128xf32>
    %c2_77 = arith.constant 2 : index
    %c6_78 = arith.constant 6 : index
    %c0_79 = arith.constant 0 : index
    %176 = vector.load %arg3[%c2_77, %c6_78, %c0_79] : memref<7x7x128xf32, #tpu.memory_space<vmem>>, vector<1x1x128xf32>
    %177 = vector.shape_cast %176 : vector<1x1x128xf32> to vector<128xf32>
    %178 = vector.shape_cast %177 : vector<128xf32> to vector<1x1x128xf32>
    %179 = vector.broadcast %178 : vector<1x1x128xf32> to vector<8x16x128xf32>
    %180 = arith.mulf %175, %179 : vector<8x16x128xf32>
    %181 = arith.addf %174, %180 : vector<8x16x128xf32>
    %182 = arith.index_cast %9 : i32 to index
    %c0_80 = arith.constant 0 : index
    %c3_81 = arith.constant 3 : index
    %c0_82 = arith.constant 0 : index
    %183 = vector.load %arg7[%182, %c0_80, %c3_81, %c0_82] : memref<2x14x22x128xf32, #tpu.memory_space<vmem>>, vector<1x14x16x128xf32>
    %184 = vector.shape_cast %183 : vector<1x14x16x128xf32> to vector<14x16x128xf32>
    %185 = vector.extract_strided_slice %184 {offsets = [0, 0, 0], sizes = [8, 16, 128], strides = [1, 1, 1]} : vector<14x16x128xf32> to vector<8x16x128xf32>
    %c3_83 = arith.constant 3 : index
    %c0_84 = arith.constant 0 : index
    %c0_85 = arith.constant 0 : index
    %186 = vector.load %arg3[%c3_83, %c0_84, %c0_85] : memref<7x7x128xf32, #tpu.memory_space<vmem>>, vector<1x1x128xf32>
    %187 = vector.shape_cast %186 : vector<1x1x128xf32> to vector<128xf32>
    %188 = vector.shape_cast %187 : vector<128xf32> to vector<1x1x128xf32>
    %189 = vector.broadcast %188 : vector<1x1x128xf32> to vector<8x16x128xf32>
    %190 = arith.mulf %185, %189 : vector<8x16x128xf32>
    %191 = arith.addf %181, %190 : vector<8x16x128xf32>
    %192 = vector.extract_strided_slice %184 {offsets = [1, 0, 0], sizes = [8, 16, 128], strides = [1, 1, 1]} : vector<14x16x128xf32> to vector<8x16x128xf32>
    %c3_86 = arith.constant 3 : index
    %c1_87 = arith.constant 1 : index
    %c0_88 = arith.constant 0 : index
    %193 = vector.load %arg3[%c3_86, %c1_87, %c0_88] : memref<7x7x128xf32, #tpu.memory_space<vmem>>, vector<1x1x128xf32>
    %194 = vector.shape_cast %193 : vector<1x1x128xf32> to vector<128xf32>
    %195 = vector.shape_cast %194 : vector<128xf32> to vector<1x1x128xf32>
    %196 = vector.broadcast %195 : vector<1x1x128xf32> to vector<8x16x128xf32>
    %197 = arith.mulf %192, %196 : vector<8x16x128xf32>
    %198 = arith.addf %191, %197 : vector<8x16x128xf32>
    %199 = vector.extract_strided_slice %184 {offsets = [2, 0, 0], sizes = [8, 16, 128], strides = [1, 1, 1]} : vector<14x16x128xf32> to vector<8x16x128xf32>
    %c3_89 = arith.constant 3 : index
    %c2_90 = arith.constant 2 : index
    %c0_91 = arith.constant 0 : index
    %200 = vector.load %arg3[%c3_89, %c2_90, %c0_91] : memref<7x7x128xf32, #tpu.memory_space<vmem>>, vector<1x1x128xf32>
    %201 = vector.shape_cast %200 : vector<1x1x128xf32> to vector<128xf32>
    %202 = vector.shape_cast %201 : vector<128xf32> to vector<1x1x128xf32>
    %203 = vector.broadcast %202 : vector<1x1x128xf32> to vector<8x16x128xf32>
    %204 = arith.mulf %199, %203 : vector<8x16x128xf32>
    %205 = arith.addf %198, %204 : vector<8x16x128xf32>
    %206 = vector.extract_strided_slice %184 {offsets = [3, 0, 0], sizes = [8, 16, 128], strides = [1, 1, 1]} : vector<14x16x128xf32> to vector<8x16x128xf32>
    %c3_92 = arith.constant 3 : index
    %c3_93 = arith.constant 3 : index
    %c0_94 = arith.constant 0 : index
    %207 = vector.load %arg3[%c3_92, %c3_93, %c0_94] : memref<7x7x128xf32, #tpu.memory_space<vmem>>, vector<1x1x128xf32>
    %208 = vector.shape_cast %207 : vector<1x1x128xf32> to vector<128xf32>
    %209 = vector.shape_cast %208 : vector<128xf32> to vector<1x1x128xf32>
    %210 = vector.broadcast %209 : vector<1x1x128xf32> to vector<8x16x128xf32>
    %211 = arith.mulf %206, %210 : vector<8x16x128xf32>
    %212 = arith.addf %205, %211 : vector<8x16x128xf32>
    %213 = vector.extract_strided_slice %184 {offsets = [4, 0, 0], sizes = [8, 16, 128], strides = [1, 1, 1]} : vector<14x16x128xf32> to vector<8x16x128xf32>
    %c3_95 = arith.constant 3 : index
    %c4_96 = arith.constant 4 : index
    %c0_97 = arith.constant 0 : index
    %214 = vector.load %arg3[%c3_95, %c4_96, %c0_97] : memref<7x7x128xf32, #tpu.memory_space<vmem>>, vector<1x1x128xf32>
    %215 = vector.shape_cast %214 : vector<1x1x128xf32> to vector<128xf32>
    %216 = vector.shape_cast %215 : vector<128xf32> to vector<1x1x128xf32>
    %217 = vector.broadcast %216 : vector<1x1x128xf32> to vector<8x16x128xf32>
    %218 = arith.mulf %213, %217 : vector<8x16x128xf32>
    %219 = arith.addf %212, %218 : vector<8x16x128xf32>
    %220 = vector.extract_strided_slice %184 {offsets = [5, 0, 0], sizes = [8, 16, 128], strides = [1, 1, 1]} : vector<14x16x128xf32> to vector<8x16x128xf32>
    %c3_98 = arith.constant 3 : index
    %c5_99 = arith.constant 5 : index
    %c0_100 = arith.constant 0 : index
    %221 = vector.load %arg3[%c3_98, %c5_99, %c0_100] : memref<7x7x128xf32, #tpu.memory_space<vmem>>, vector<1x1x128xf32>
    %222 = vector.shape_cast %221 : vector<1x1x128xf32> to vector<128xf32>
    %223 = vector.shape_cast %222 : vector<128xf32> to vector<1x1x128xf32>
    %224 = vector.broadcast %223 : vector<1x1x128xf32> to vector<8x16x128xf32>
    %225 = arith.mulf %220, %224 : vector<8x16x128xf32>
    %226 = arith.addf %219, %225 : vector<8x16x128xf32>
    %227 = vector.extract_strided_slice %184 {offsets = [6, 0, 0], sizes = [8, 16, 128], strides = [1, 1, 1]} : vector<14x16x128xf32> to vector<8x16x128xf32>
    %c3_101 = arith.constant 3 : index
    %c6_102 = arith.constant 6 : index
    %c0_103 = arith.constant 0 : index
    %228 = vector.load %arg3[%c3_101, %c6_102, %c0_103] : memref<7x7x128xf32, #tpu.memory_space<vmem>>, vector<1x1x128xf32>
    %229 = vector.shape_cast %228 : vector<1x1x128xf32> to vector<128xf32>
    %230 = vector.shape_cast %229 : vector<128xf32> to vector<1x1x128xf32>
    %231 = vector.broadcast %230 : vector<1x1x128xf32> to vector<8x16x128xf32>
    %232 = arith.mulf %227, %231 : vector<8x16x128xf32>
    %233 = arith.addf %226, %232 : vector<8x16x128xf32>
    %234 = arith.index_cast %9 : i32 to index
    %c0_104 = arith.constant 0 : index
    %c4_105 = arith.constant 4 : index
    %c0_106 = arith.constant 0 : index
    %235 = vector.load %arg7[%234, %c0_104, %c4_105, %c0_106] : memref<2x14x22x128xf32, #tpu.memory_space<vmem>>, vector<1x14x16x128xf32>
    %236 = vector.shape_cast %235 : vector<1x14x16x128xf32> to vector<14x16x128xf32>
    %237 = vector.extract_strided_slice %236 {offsets = [0, 0, 0], sizes = [8, 16, 128], strides = [1, 1, 1]} : vector<14x16x128xf32> to vector<8x16x128xf32>
    %c4_107 = arith.constant 4 : index
    %c0_108 = arith.constant 0 : index
    %c0_109 = arith.constant 0 : index
    %238 = vector.load %arg3[%c4_107, %c0_108, %c0_109] : memref<7x7x128xf32, #tpu.memory_space<vmem>>, vector<1x1x128xf32>
    %239 = vector.shape_cast %238 : vector<1x1x128xf32> to vector<128xf32>
    %240 = vector.shape_cast %239 : vector<128xf32> to vector<1x1x128xf32>
    %241 = vector.broadcast %240 : vector<1x1x128xf32> to vector<8x16x128xf32>
    %242 = arith.mulf %237, %241 : vector<8x16x128xf32>
    %243 = arith.addf %233, %242 : vector<8x16x128xf32>
    %244 = vector.extract_strided_slice %236 {offsets = [1, 0, 0], sizes = [8, 16, 128], strides = [1, 1, 1]} : vector<14x16x128xf32> to vector<8x16x128xf32>
    %c4_110 = arith.constant 4 : index
    %c1_111 = arith.constant 1 : index
    %c0_112 = arith.constant 0 : index
    %245 = vector.load %arg3[%c4_110, %c1_111, %c0_112] : memref<7x7x128xf32, #tpu.memory_space<vmem>>, vector<1x1x128xf32>
    %246 = vector.shape_cast %245 : vector<1x1x128xf32> to vector<128xf32>
    %247 = vector.shape_cast %246 : vector<128xf32> to vector<1x1x128xf32>
    %248 = vector.broadcast %247 : vector<1x1x128xf32> to vector<8x16x128xf32>
    %249 = arith.mulf %244, %248 : vector<8x16x128xf32>
    %250 = arith.addf %243, %249 : vector<8x16x128xf32>
    %251 = vector.extract_strided_slice %236 {offsets = [2, 0, 0], sizes = [8, 16, 128], strides = [1, 1, 1]} : vector<14x16x128xf32> to vector<8x16x128xf32>
    %c4_113 = arith.constant 4 : index
    %c2_114 = arith.constant 2 : index
    %c0_115 = arith.constant 0 : index
    %252 = vector.load %arg3[%c4_113, %c2_114, %c0_115] : memref<7x7x128xf32, #tpu.memory_space<vmem>>, vector<1x1x128xf32>
    %253 = vector.shape_cast %252 : vector<1x1x128xf32> to vector<128xf32>
    %254 = vector.shape_cast %253 : vector<128xf32> to vector<1x1x128xf32>
    %255 = vector.broadcast %254 : vector<1x1x128xf32> to vector<8x16x128xf32>
    %256 = arith.mulf %251, %255 : vector<8x16x128xf32>
    %257 = arith.addf %250, %256 : vector<8x16x128xf32>
    %258 = vector.extract_strided_slice %236 {offsets = [3, 0, 0], sizes = [8, 16, 128], strides = [1, 1, 1]} : vector<14x16x128xf32> to vector<8x16x128xf32>
    %c4_116 = arith.constant 4 : index
    %c3_117 = arith.constant 3 : index
    %c0_118 = arith.constant 0 : index
    %259 = vector.load %arg3[%c4_116, %c3_117, %c0_118] : memref<7x7x128xf32, #tpu.memory_space<vmem>>, vector<1x1x128xf32>
    %260 = vector.shape_cast %259 : vector<1x1x128xf32> to vector<128xf32>
    %261 = vector.shape_cast %260 : vector<128xf32> to vector<1x1x128xf32>
    %262 = vector.broadcast %261 : vector<1x1x128xf32> to vector<8x16x128xf32>
    %263 = arith.mulf %258, %262 : vector<8x16x128xf32>
    %264 = arith.addf %257, %263 : vector<8x16x128xf32>
    %265 = vector.extract_strided_slice %236 {offsets = [4, 0, 0], sizes = [8, 16, 128], strides = [1, 1, 1]} : vector<14x16x128xf32> to vector<8x16x128xf32>
    %c4_119 = arith.constant 4 : index
    %c4_120 = arith.constant 4 : index
    %c0_121 = arith.constant 0 : index
    %266 = vector.load %arg3[%c4_119, %c4_120, %c0_121] : memref<7x7x128xf32, #tpu.memory_space<vmem>>, vector<1x1x128xf32>
    %267 = vector.shape_cast %266 : vector<1x1x128xf32> to vector<128xf32>
    %268 = vector.shape_cast %267 : vector<128xf32> to vector<1x1x128xf32>
    %269 = vector.broadcast %268 : vector<1x1x128xf32> to vector<8x16x128xf32>
    %270 = arith.mulf %265, %269 : vector<8x16x128xf32>
    %271 = arith.addf %264, %270 : vector<8x16x128xf32>
    %272 = vector.extract_strided_slice %236 {offsets = [5, 0, 0], sizes = [8, 16, 128], strides = [1, 1, 1]} : vector<14x16x128xf32> to vector<8x16x128xf32>
    %c4_122 = arith.constant 4 : index
    %c5_123 = arith.constant 5 : index
    %c0_124 = arith.constant 0 : index
    %273 = vector.load %arg3[%c4_122, %c5_123, %c0_124] : memref<7x7x128xf32, #tpu.memory_space<vmem>>, vector<1x1x128xf32>
    %274 = vector.shape_cast %273 : vector<1x1x128xf32> to vector<128xf32>
    %275 = vector.shape_cast %274 : vector<128xf32> to vector<1x1x128xf32>
    %276 = vector.broadcast %275 : vector<1x1x128xf32> to vector<8x16x128xf32>
    %277 = arith.mulf %272, %276 : vector<8x16x128xf32>
    %278 = arith.addf %271, %277 : vector<8x16x128xf32>
    %279 = vector.extract_strided_slice %236 {offsets = [6, 0, 0], sizes = [8, 16, 128], strides = [1, 1, 1]} : vector<14x16x128xf32> to vector<8x16x128xf32>
    %c4_125 = arith.constant 4 : index
    %c6_126 = arith.constant 6 : index
    %c0_127 = arith.constant 0 : index
    %280 = vector.load %arg3[%c4_125, %c6_126, %c0_127] : memref<7x7x128xf32, #tpu.memory_space<vmem>>, vector<1x1x128xf32>
    %281 = vector.shape_cast %280 : vector<1x1x128xf32> to vector<128xf32>
    %282 = vector.shape_cast %281 : vector<128xf32> to vector<1x1x128xf32>
    %283 = vector.broadcast %282 : vector<1x1x128xf32> to vector<8x16x128xf32>
    %284 = arith.mulf %279, %283 : vector<8x16x128xf32>
    %285 = arith.addf %278, %284 : vector<8x16x128xf32>
    %286 = arith.index_cast %9 : i32 to index
    %c0_128 = arith.constant 0 : index
    %c5_129 = arith.constant 5 : index
    %c0_130 = arith.constant 0 : index
    %287 = vector.load %arg7[%286, %c0_128, %c5_129, %c0_130] : memref<2x14x22x128xf32, #tpu.memory_space<vmem>>, vector<1x14x16x128xf32>
    %288 = vector.shape_cast %287 : vector<1x14x16x128xf32> to vector<14x16x128xf32>
    %289 = vector.extract_strided_slice %288 {offsets = [0, 0, 0], sizes = [8, 16, 128], strides = [1, 1, 1]} : vector<14x16x128xf32> to vector<8x16x128xf32>
    %c5_131 = arith.constant 5 : index
    %c0_132 = arith.constant 0 : index
    %c0_133 = arith.constant 0 : index
    %290 = vector.load %arg3[%c5_131, %c0_132, %c0_133] : memref<7x7x128xf32, #tpu.memory_space<vmem>>, vector<1x1x128xf32>
    %291 = vector.shape_cast %290 : vector<1x1x128xf32> to vector<128xf32>
    %292 = vector.shape_cast %291 : vector<128xf32> to vector<1x1x128xf32>
    %293 = vector.broadcast %292 : vector<1x1x128xf32> to vector<8x16x128xf32>
    %294 = arith.mulf %289, %293 : vector<8x16x128xf32>
    %295 = arith.addf %285, %294 : vector<8x16x128xf32>
    %296 = vector.extract_strided_slice %288 {offsets = [1, 0, 0], sizes = [8, 16, 128], strides = [1, 1, 1]} : vector<14x16x128xf32> to vector<8x16x128xf32>
    %c5_134 = arith.constant 5 : index
    %c1_135 = arith.constant 1 : index
    %c0_136 = arith.constant 0 : index
    %297 = vector.load %arg3[%c5_134, %c1_135, %c0_136] : memref<7x7x128xf32, #tpu.memory_space<vmem>>, vector<1x1x128xf32>
    %298 = vector.shape_cast %297 : vector<1x1x128xf32> to vector<128xf32>
    %299 = vector.shape_cast %298 : vector<128xf32> to vector<1x1x128xf32>
    %300 = vector.broadcast %299 : vector<1x1x128xf32> to vector<8x16x128xf32>
    %301 = arith.mulf %296, %300 : vector<8x16x128xf32>
    %302 = arith.addf %295, %301 : vector<8x16x128xf32>
    %303 = vector.extract_strided_slice %288 {offsets = [2, 0, 0], sizes = [8, 16, 128], strides = [1, 1, 1]} : vector<14x16x128xf32> to vector<8x16x128xf32>
    %c5_137 = arith.constant 5 : index
    %c2_138 = arith.constant 2 : index
    %c0_139 = arith.constant 0 : index
    %304 = vector.load %arg3[%c5_137, %c2_138, %c0_139] : memref<7x7x128xf32, #tpu.memory_space<vmem>>, vector<1x1x128xf32>
    %305 = vector.shape_cast %304 : vector<1x1x128xf32> to vector<128xf32>
    %306 = vector.shape_cast %305 : vector<128xf32> to vector<1x1x128xf32>
    %307 = vector.broadcast %306 : vector<1x1x128xf32> to vector<8x16x128xf32>
    %308 = arith.mulf %303, %307 : vector<8x16x128xf32>
    %309 = arith.addf %302, %308 : vector<8x16x128xf32>
    %310 = vector.extract_strided_slice %288 {offsets = [3, 0, 0], sizes = [8, 16, 128], strides = [1, 1, 1]} : vector<14x16x128xf32> to vector<8x16x128xf32>
    %c5_140 = arith.constant 5 : index
    %c3_141 = arith.constant 3 : index
    %c0_142 = arith.constant 0 : index
    %311 = vector.load %arg3[%c5_140, %c3_141, %c0_142] : memref<7x7x128xf32, #tpu.memory_space<vmem>>, vector<1x1x128xf32>
    %312 = vector.shape_cast %311 : vector<1x1x128xf32> to vector<128xf32>
    %313 = vector.shape_cast %312 : vector<128xf32> to vector<1x1x128xf32>
    %314 = vector.broadcast %313 : vector<1x1x128xf32> to vector<8x16x128xf32>
    %315 = arith.mulf %310, %314 : vector<8x16x128xf32>
    %316 = arith.addf %309, %315 : vector<8x16x128xf32>
    %317 = vector.extract_strided_slice %288 {offsets = [4, 0, 0], sizes = [8, 16, 128], strides = [1, 1, 1]} : vector<14x16x128xf32> to vector<8x16x128xf32>
    %c5_143 = arith.constant 5 : index
    %c4_144 = arith.constant 4 : index
    %c0_145 = arith.constant 0 : index
    %318 = vector.load %arg3[%c5_143, %c4_144, %c0_145] : memref<7x7x128xf32, #tpu.memory_space<vmem>>, vector<1x1x128xf32>
    %319 = vector.shape_cast %318 : vector<1x1x128xf32> to vector<128xf32>
    %320 = vector.shape_cast %319 : vector<128xf32> to vector<1x1x128xf32>
    %321 = vector.broadcast %320 : vector<1x1x128xf32> to vector<8x16x128xf32>
    %322 = arith.mulf %317, %321 : vector<8x16x128xf32>
    %323 = arith.addf %316, %322 : vector<8x16x128xf32>
    %324 = vector.extract_strided_slice %288 {offsets = [5, 0, 0], sizes = [8, 16, 128], strides = [1, 1, 1]} : vector<14x16x128xf32> to vector<8x16x128xf32>
    %c5_146 = arith.constant 5 : index
    %c5_147 = arith.constant 5 : index
    %c0_148 = arith.constant 0 : index
    %325 = vector.load %arg3[%c5_146, %c5_147, %c0_148] : memref<7x7x128xf32, #tpu.memory_space<vmem>>, vector<1x1x128xf32>
    %326 = vector.shape_cast %325 : vector<1x1x128xf32> to vector<128xf32>
    %327 = vector.shape_cast %326 : vector<128xf32> to vector<1x1x128xf32>
    %328 = vector.broadcast %327 : vector<1x1x128xf32> to vector<8x16x128xf32>
    %329 = arith.mulf %324, %328 : vector<8x16x128xf32>
    %330 = arith.addf %323, %329 : vector<8x16x128xf32>
    %331 = vector.extract_strided_slice %288 {offsets = [6, 0, 0], sizes = [8, 16, 128], strides = [1, 1, 1]} : vector<14x16x128xf32> to vector<8x16x128xf32>
    %c5_149 = arith.constant 5 : index
    %c6_150 = arith.constant 6 : index
    %c0_151 = arith.constant 0 : index
    %332 = vector.load %arg3[%c5_149, %c6_150, %c0_151] : memref<7x7x128xf32, #tpu.memory_space<vmem>>, vector<1x1x128xf32>
    %333 = vector.shape_cast %332 : vector<1x1x128xf32> to vector<128xf32>
    %334 = vector.shape_cast %333 : vector<128xf32> to vector<1x1x128xf32>
    %335 = vector.broadcast %334 : vector<1x1x128xf32> to vector<8x16x128xf32>
    %336 = arith.mulf %331, %335 : vector<8x16x128xf32>
    %337 = arith.addf %330, %336 : vector<8x16x128xf32>
    %338 = arith.index_cast %9 : i32 to index
    %c0_152 = arith.constant 0 : index
    %c6_153 = arith.constant 6 : index
    %c0_154 = arith.constant 0 : index
    %339 = vector.load %arg7[%338, %c0_152, %c6_153, %c0_154] : memref<2x14x22x128xf32, #tpu.memory_space<vmem>>, vector<1x14x16x128xf32>
    %340 = vector.shape_cast %339 : vector<1x14x16x128xf32> to vector<14x16x128xf32>
    %341 = vector.extract_strided_slice %340 {offsets = [0, 0, 0], sizes = [8, 16, 128], strides = [1, 1, 1]} : vector<14x16x128xf32> to vector<8x16x128xf32>
    %c6_155 = arith.constant 6 : index
    %c0_156 = arith.constant 0 : index
    %c0_157 = arith.constant 0 : index
    %342 = vector.load %arg3[%c6_155, %c0_156, %c0_157] : memref<7x7x128xf32, #tpu.memory_space<vmem>>, vector<1x1x128xf32>
    %343 = vector.shape_cast %342 : vector<1x1x128xf32> to vector<128xf32>
    %344 = vector.shape_cast %343 : vector<128xf32> to vector<1x1x128xf32>
    %345 = vector.broadcast %344 : vector<1x1x128xf32> to vector<8x16x128xf32>
    %346 = arith.mulf %341, %345 : vector<8x16x128xf32>
    %347 = arith.addf %337, %346 : vector<8x16x128xf32>
    %348 = vector.extract_strided_slice %340 {offsets = [1, 0, 0], sizes = [8, 16, 128], strides = [1, 1, 1]} : vector<14x16x128xf32> to vector<8x16x128xf32>
    %c6_158 = arith.constant 6 : index
    %c1_159 = arith.constant 1 : index
    %c0_160 = arith.constant 0 : index
    %349 = vector.load %arg3[%c6_158, %c1_159, %c0_160] : memref<7x7x128xf32, #tpu.memory_space<vmem>>, vector<1x1x128xf32>
    %350 = vector.shape_cast %349 : vector<1x1x128xf32> to vector<128xf32>
    %351 = vector.shape_cast %350 : vector<128xf32> to vector<1x1x128xf32>
    %352 = vector.broadcast %351 : vector<1x1x128xf32> to vector<8x16x128xf32>
    %353 = arith.mulf %348, %352 : vector<8x16x128xf32>
    %354 = arith.addf %347, %353 : vector<8x16x128xf32>
    %355 = vector.extract_strided_slice %340 {offsets = [2, 0, 0], sizes = [8, 16, 128], strides = [1, 1, 1]} : vector<14x16x128xf32> to vector<8x16x128xf32>
    %c6_161 = arith.constant 6 : index
    %c2_162 = arith.constant 2 : index
    %c0_163 = arith.constant 0 : index
    %356 = vector.load %arg3[%c6_161, %c2_162, %c0_163] : memref<7x7x128xf32, #tpu.memory_space<vmem>>, vector<1x1x128xf32>
    %357 = vector.shape_cast %356 : vector<1x1x128xf32> to vector<128xf32>
    %358 = vector.shape_cast %357 : vector<128xf32> to vector<1x1x128xf32>
    %359 = vector.broadcast %358 : vector<1x1x128xf32> to vector<8x16x128xf32>
    %360 = arith.mulf %355, %359 : vector<8x16x128xf32>
    %361 = arith.addf %354, %360 : vector<8x16x128xf32>
    %362 = vector.extract_strided_slice %340 {offsets = [3, 0, 0], sizes = [8, 16, 128], strides = [1, 1, 1]} : vector<14x16x128xf32> to vector<8x16x128xf32>
    %c6_164 = arith.constant 6 : index
    %c3_165 = arith.constant 3 : index
    %c0_166 = arith.constant 0 : index
    %363 = vector.load %arg3[%c6_164, %c3_165, %c0_166] : memref<7x7x128xf32, #tpu.memory_space<vmem>>, vector<1x1x128xf32>
    %364 = vector.shape_cast %363 : vector<1x1x128xf32> to vector<128xf32>
    %365 = vector.shape_cast %364 : vector<128xf32> to vector<1x1x128xf32>
    %366 = vector.broadcast %365 : vector<1x1x128xf32> to vector<8x16x128xf32>
    %367 = arith.mulf %362, %366 : vector<8x16x128xf32>
    %368 = arith.addf %361, %367 : vector<8x16x128xf32>
    %369 = vector.extract_strided_slice %340 {offsets = [4, 0, 0], sizes = [8, 16, 128], strides = [1, 1, 1]} : vector<14x16x128xf32> to vector<8x16x128xf32>
    %c6_167 = arith.constant 6 : index
    %c4_168 = arith.constant 4 : index
    %c0_169 = arith.constant 0 : index
    %370 = vector.load %arg3[%c6_167, %c4_168, %c0_169] : memref<7x7x128xf32, #tpu.memory_space<vmem>>, vector<1x1x128xf32>
    %371 = vector.shape_cast %370 : vector<1x1x128xf32> to vector<128xf32>
    %372 = vector.shape_cast %371 : vector<128xf32> to vector<1x1x128xf32>
    %373 = vector.broadcast %372 : vector<1x1x128xf32> to vector<8x16x128xf32>
    %374 = arith.mulf %369, %373 : vector<8x16x128xf32>
    %375 = arith.addf %368, %374 : vector<8x16x128xf32>
    %376 = vector.extract_strided_slice %340 {offsets = [5, 0, 0], sizes = [8, 16, 128], strides = [1, 1, 1]} : vector<14x16x128xf32> to vector<8x16x128xf32>
    %c6_170 = arith.constant 6 : index
    %c5_171 = arith.constant 5 : index
    %c0_172 = arith.constant 0 : index
    %377 = vector.load %arg3[%c6_170, %c5_171, %c0_172] : memref<7x7x128xf32, #tpu.memory_space<vmem>>, vector<1x1x128xf32>
    %378 = vector.shape_cast %377 : vector<1x1x128xf32> to vector<128xf32>
    %379 = vector.shape_cast %378 : vector<128xf32> to vector<1x1x128xf32>
    %380 = vector.broadcast %379 : vector<1x1x128xf32> to vector<8x16x128xf32>
    %381 = arith.mulf %376, %380 : vector<8x16x128xf32>
    %382 = arith.addf %375, %381 : vector<8x16x128xf32>
    %383 = vector.extract_strided_slice %340 {offsets = [6, 0, 0], sizes = [8, 16, 128], strides = [1, 1, 1]} : vector<14x16x128xf32> to vector<8x16x128xf32>
    %c6_173 = arith.constant 6 : index
    %c6_174 = arith.constant 6 : index
    %c0_175 = arith.constant 0 : index
    %384 = vector.load %arg3[%c6_173, %c6_174, %c0_175] : memref<7x7x128xf32, #tpu.memory_space<vmem>>, vector<1x1x128xf32>
    %385 = vector.shape_cast %384 : vector<1x1x128xf32> to vector<128xf32>
    %386 = vector.shape_cast %385 : vector<128xf32> to vector<1x1x128xf32>
    %387 = vector.broadcast %386 : vector<1x1x128xf32> to vector<8x16x128xf32>
    %388 = arith.mulf %383, %387 : vector<8x16x128xf32>
    %389 = arith.addf %382, %388 : vector<8x16x128xf32>
    %390 = vector.shape_cast %24 : vector<1x128xf32> to vector<1x1x128xf32>
    %391 = vector.broadcast %390 : vector<1x1x128xf32> to vector<8x16x128xf32>
    %392 = arith.addf %389, %391 : vector<8x16x128xf32>
    %c0_176 = arith.constant 0 : index
    %c0_177 = arith.constant 0 : index
    %c0_178 = arith.constant 0 : index
    %c0_179 = arith.constant 0 : index
    %393 = vector.load %arg6[%c0_176, %c0_177, %c0_178, %c0_179] : memref<1x8x16x128xf32, #tpu.memory_space<vmem>>, vector<1x8x16x128xf32>
    %394 = vector.shape_cast %393 : vector<1x8x16x128xf32> to vector<8x16x128xf32>
    %395 = vector.shape_cast %392 : vector<8x16x128xf32> to vector<1x8x16x128xf32>
    tpu.vector_store %arg6[%c0_176, %c0_177, %c0_178, %c0_179], %395 {strides = array<i32>} : memref<1x8x16x128xf32, #tpu.memory_space<vmem>>, vector<1x8x16x128xf32>,
    return
  }
  func.func @transform_0(%arg0: i32, %arg1: i32, %arg2: i32) -> (i32, i32, i32) {
    %c0_i32 = arith.constant 0 : i32
    %c0_i32_0 = arith.constant 0 : i32
    %c0_i32_1 = arith.constant 0 : i32
    return %c0_i32, %c0_i32_0, %arg0 : i32, i32, i32
  }
  func.func @transform_1(%arg0: i32, %arg1: i32, %arg2: i32) -> (i32, i32) {
    %c0_i32 = arith.constant 0 : i32
    %c0_i32_0 = arith.constant 0 : i32
    return %c0_i32, %arg0 : i32, i32
  }
  func.func @transform_3(%arg0: i32, %arg1: i32, %arg2: i32) -> (i32, i32, i32, i32) {
    %c0_i32 = arith.constant 0 : i32
    %c0_i32_0 = arith.constant 0 : i32
    return %arg1, %arg2, %c0_i32, %arg0 : i32, i32, i32, i32
  }
}

</mosaic_0001>

<llo_original>
// kernel: tpu_custom_call.1
$region0: #{tpu_custom_call.1}
  #allocation0 [shape = 'u32[]', space=smem, size = 0x4, offset = 0x4, fixed_abs, tag = 'smem constant byte address 0x4 - core index']
  #allocation1 [shape = 'u32[144,128]{1,0:T(1,128)}', space=vmem, size = 0x12000, scoped, tag = 'internal scratch']
  #allocation2 [shape = 'f32[2,14,22,128]{3,2,1,0:T(8,128)}', space=vmem, size = 0x54000, scoped, tag = 'scratch operand']
  #allocation3 [shape = 's32[2]{0}', space=sflag, size = 0x8, scoped, tag = 'scratch operand']
  #allocation6 [shape = 's32[]', space=sflag, size = 0x4, offset = 0, fixed_abs, tag = 'sflag constant byte address 0x0 - dummy sync flag']
  #allocation7 [shape = 's32[]', space=sflag, size = 0x4, offset = 0, fixed_abs, tag = 'sflag constant byte address 0x0 - dummy sync flag']
  %s0 = inlined_call_operand.vmem [shape: f32[7,7,128], index: 0, kind: input, shape index: {}]
  %s1 = inlined_call_operand.vmem [shape: f32[1,128], index: 1, kind: input, shape index: {}]
  %s2 = inlined_call_operand.vmem [shape: f32[1,2,22,22,128], index: 2, kind: input, shape index: {}]
  %s3 = inlined_call_operand.hbm [shape: f32[2,16,16,128], index: 3, kind: output, shape index: {}]
  %s4 = sld [smem:[#allocation0]]
  $region123: #{tpu_custom_call.1} parent=0
    _
  %s6 = ssub.s32 1, %s4
  %s7 = scalar_select 0, %s6, %s4
  $region1: #{tpu_custom_call.1} parent=0
    #allocation4 [shape = 'u8[131072]{0}', space=vmem, size = 0x20000, scoped, tag = 'output window, operand 0']
    #allocation5 [shape = 's32[2]{0}', space=sflag, size = 0x8, scoped, tag = 'scoped memory for tpu_custom_call.1']
    %8 = vsyncpa [#allocation5], 0
    %s9 = scalar_lea.sflag [#allocation5], 1
    %10 = vsyncpa %s9, 0
    loop: start=0, step=1, limit=6
    $region2: #{tpu_custom_call.1} parent=1 // loop_pre_header
      _
    $region3: #{tpu_custom_call.1} parent=1 // loop_header
      %s12 = sphi 0, %s16
      %p13 = scmp.ge.s32.totalorder %s12, 6
      %s19 = sphi 0, %s38
      %s20 = sphi 0, %s34
      %s21 = sphi 0, %s30
      %s22 = sphi 0, %s19
      %s23 = sphi 0, %s20
      %s24 = sphi 0, %s21
      %s25 = sphi 0, %s22
      %s26 = sphi 0, %s23
      %s27 = sphi 0, %s24
      %s41 = sphi 0, %s43
      %s44 = sphi 0, %s41
      %s45 = sphi 0, %s44
      %s61 = sphi 0, %s45
      %s67 = sphi 0, %s69
      %s70 = sphi 0, %s67
      %s71 = sphi 0, %s70
      %s87 = sphi 0, %s71
      %s97 = sphi 0, %s99
      %s100 = sphi 0, %s97
      %s101 = sphi 0, %s100
      %s117 = sphi 0, %s101
    $region4: #{tpu_custom_call.1} parent=1 // loop_header_branch
      %15 = sbr.rel (%p13) target = $region8
    $region5: #{tpu_custom_call.1} parent=1 // loop_body
      %s17 = ssub.s32 %s12, 1
      %s18 = ssub.s32 %s12, 2
      %s28 = sadd.s32 1, %s21
      %p29 = scmp.ge.s32.totalorder %s28, 2
      %s30 = scalar_select %p29, 0, %s28
      %s31 = sadd.s32 1, %s20
      %s32 = scalar_select %p29, %s31, %s20
      %p33 = scmp.ge.s32.totalorder %s32, 2
      %s34 = scalar_select %p33, 0, %s32
      %s35 = sadd.s32 1, %s19
      %s36 = scalar_select %p33, %s35, %s19
      %p37 = scmp.ge.s32.totalorder %s36, 1
      %s38 = scalar_select %p37, 0, %s36
      %s39 = ssub.s32 %s19, %s38
      %p40 = scmp.eq.s32.totalorder %s39, 0
      %s42 = sadd.s32 %s41, 1
      %s43 = scalar_select %p40, %s41, %s42
      %p46 = pneg %p40
      %p47 = scmp.eq.s32.totalorder %s12, 3
      %p48 = por %p46, %p47
      %p49 = scmp.ne.s32.totalorder %s41, %s44
      %p50 = scmp.eq.s32.totalorder %s12, 0
      %p51 = por %p49, %p50
      %p52 = scmp.ne.s32.totalorder %s41, %s44
      %p53 = scmp.eq.s32.totalorder %s17, 3
      %p54 = por %p52, %p53
      %p55 = scmp.ne.s32.totalorder %s44, %s45
      %p56 = scmp.eq.s32.totalorder %s17, 0
      %p57 = por %p55, %p56
      %p58 = scmp.ne.s32.totalorder %s44, %s45
      %p59 = scmp.eq.s32.totalorder %s18, 3
      %p60 = por %p58, %p59
      %p62 = scmp.ne.s32.totalorder %s45, %s61
      %p63 = scmp.eq.s32.totalorder %s18, 0
      %p64 = por %p62, %p63
      %s65 = ssub.s32 %s19, %s38
      %p66 = scmp.eq.s32.totalorder %s65, 0
      %s68 = sadd.s32 %s67, 1
      %s69 = scalar_select %p66, %s67, %s68
      %p72 = pneg %p66
      %p73 = scmp.eq.s32.totalorder %s12, 3
      %p74 = por %p72, %p73
      %p75 = scmp.ne.s32.totalorder %s67, %s70
      %p76 = scmp.eq.s32.totalorder %s12, 0
      %p77 = por %p75, %p76
      %p78 = scmp.ne.s32.totalorder %s67, %s70
      %p79 = scmp.eq.s32.totalorder %s17, 3
      %p80 = por %p78, %p79
      %p81 = scmp.ne.s32.totalorder %s70, %s71
      %p82 = scmp.eq.s32.totalorder %s17, 0
      %p83 = por %p81, %p82
      %p84 = scmp.ne.s32.totalorder %s70, %s71
      %p85 = scmp.eq.s32.totalorder %s18, 3
      %p86 = por %p84, %p85
      %p88 = scmp.ne.s32.totalorder %s71, %s87
      %p89 = scmp.eq.s32.totalorder %s18, 0
      %p90 = por %p88, %p89
      %s91 = ssub.s32 %s20, %s34
      %s92 = ssub.s32 %s21, %s30
      %s93 = sor.u32 %s91, %s92
      %s94 = ssub.s32 %s19, %s38
      %s95 = sor.u32 %s93, %s94
      %p96 = scmp.eq.s32.totalorder %s95, 0
      %s98 = sadd.s32 %s97, 1
      %s99 = scalar_select %p96, %s97, %s98
      %p102 = pneg %p96
      %p103 = scmp.eq.s32.totalorder %s12, 3
      %p104 = por %p102, %p103
      %p105 = scmp.ne.s32.totalorder %s97, %s100
      %p106 = scmp.eq.s32.totalorder %s12, 0
      %p107 = por %p105, %p106
      %p108 = scmp.ne.s32.totalorder %s97, %s100
      %p109 = scmp.eq.s32.totalorder %s17, 3
      %p110 = por %p108, %p109
      %p111 = scmp.ne.s32.totalorder %s100, %s101
      %p112 = scmp.eq.s32.totalorder %s17, 0
      %p113 = por %p111, %p112
      %p114 = scmp.ne.s32.totalorder %s100, %s101
      %p115 = scmp.eq.s32.totalorder %s18, 3
      %p116 = por %p114, %p115
      %p118 = scmp.ne.s32.totalorder %s101, %s117
      %p119 = scmp.eq.s32.totalorder %s18, 0
      %p120 = por %p118, %p119
      %p121 = scmp.le.s32.totalorder 1, %s12
      %p122 = scmp.lt.s32.totalorder %s12, 5
      %p123 = pnand %p121, %p122
      %p124 = pneg %p123
      // Predicated region
      $region9: #{tpu_custom_call.1} parent=5 // pred_check
        _
      $region10: #{tpu_custom_call.1} parent=5 // pred_check_branch
        %126 = sbr.rel (%p123) target = $region12
      $region11: #{tpu_custom_call.1} parent=5 // pred_region
        %s127 = ssub.s32 %s12, 1
        // Predicated region
        $region13: #{tpu_custom_call.1} parent=11 // pred_check
          %p128 = pneg %p57
        $region14: #{tpu_custom_call.1} parent=11 // pred_check_branch
          %130 = sbr.rel (%p128) target = $region16
        $region15: #{tpu_custom_call.1} parent=11 // pred_region
          %p131 = scmp.lt.s32.totalorder %s22, 0
          %s132 = scalar_select %p131, %s22, 0
          %s133 = smul.addr %s132, 8
          %s134 = scalar_lea.vmem %s0, %s133
        $region16: #{tpu_custom_call.1} parent=11 // pred_fallthru
          _
        // Predicated region
        $region17: #{tpu_custom_call.1} parent=11 // pred_check
          %p135 = pneg %p83
        $region18: #{tpu_custom_call.1} parent=11 // pred_check_branch
          %137 = sbr.rel (%p135) target = $region20
        $region19: #{tpu_custom_call.1} parent=11 // pred_region
          %p138 = scmp.lt.s32.totalorder %s22, 0
          %s139 = scalar_select %p138, %s22, 0
          %s140 = scalar_lea.vmem %s1, %s139
        $region20: #{tpu_custom_call.1} parent=11 // pred_fallthru
          _
      $region12: #{tpu_custom_call.1} parent=5 // pred_fallthru
        _
      %p141 = scmp.lt.s32.totalorder %s12, 4
      // Predicated region
      $region21: #{tpu_custom_call.1} parent=5 // pred_check
        %p142 = pneg %p141
      $region22: #{tpu_custom_call.1} parent=5 // pred_check_branch
        %144 = sbr.rel (%p142) target = $region24
      $region23: #{tpu_custom_call.1} parent=5 // pred_region
        _
      $region24: #{tpu_custom_call.1} parent=5 // pred_fallthru
        _
      %p145 = scmp.le.s32.totalorder 1, %s12
      %p146 = scmp.lt.s32.totalorder %s12, 5
      %p147 = pnand %p145, %p146
      %p148 = pneg %p147
      // Predicated region
      $region25: #{tpu_custom_call.1} parent=5 // pred_check
        _
      $region26: #{tpu_custom_call.1} parent=5 // pred_check_branch
        %150 = sbr.rel (%p147) target = $region28
      $region27: #{tpu_custom_call.1} parent=5 // pred_region
        %s151 = ssub.s32 %s12, 1
        %p152 = scmp.lt.s32.totalorder %s22, 0
        %s153 = scalar_select %p152, %s22, 0
        %s154 = smul.addr %s153, 8
        %s155 = scalar_lea.vmem %s0, %s154
        %p156 = pneg %p57
        %p157 = pneg %p54
        %p158 = scmp.lt.s32.totalorder %s22, 0
        %s159 = scalar_select %p158, %s22, 0
        %s160 = scalar_lea.vmem %s1, %s159
        %p161 = pneg %p83
        %p162 = pneg %p80
        %p163 = pneg %p113
        %p164 = pneg %p110
        %s165 = sand.u32 %s100, 1
        %s166 = scalar_lea.sflag [#allocation5], %s165
        %s167 = sand.u32 %s100, 1
        %s168 = smul.addr %s167, 128
        %s169 = scalar_lea.vmem [#allocation4], %s168
        %p170 = scmp.lt.s32.totalorder %s22, 0
        %s171 = scalar_select %p170, %s22, 0
        %s172 = smul.addr %s171, 8
        %s173 = scalar_lea.vmem %s0, %s172
        %p174 = scmp.lt.s32.totalorder %s22, 0
        %s175 = scalar_select %p174, %s22, 0
        %s176 = scalar_lea.vmem %s1, %s175
        %s177 = smul.u32 8, %s24
        %p178 = scmp.lt.s32.totalorder %s24, 0
        %s179 = ssub.s32 0, %s24
        %s180 = scalar_select %p178, %s179, %s24
        %s181 = sand.u32 %s180, 1
        %s182 = ssub.s32 0, %s181
        %s183 = scalar_select %p178, %s182, %s181
        %p184 = scmp.ne.s32.totalorder %s183, 0
        %p185 = scmp.lt.s32.totalorder %s183, 0
        %p186 = pnand %p185, %p184
        %p187 = pneg %p186
        %s188 = sadd.s32 %s183, 2
        %s189 = scalar_select %p187, %s188, %s183
        %p190 = scmp.eq.s32.totalorder %s24, 0
        // Predicated region
        $region29: #{tpu_custom_call.1} parent=27 // pred_check
          %p191 = pneg %p190
        $region30: #{tpu_custom_call.1} parent=27 // pred_check_branch
          %193 = sbr.rel (%p191) target = $region32
        $region31: #{tpu_custom_call.1} parent=27 // pred_region
          %s194 = smul.u32 %s24, 8
          %s195 = smul.u32 %s194, 24
          %s196 = smul.u32 %s23, 528
          %s197 = sadd.s32 %s195, %s196
          %s198 = smul.u32 %s22, 1056
          %s199 = sadd.s32 %s197, %s198
          %s200 = scalar_lea.vmem %s2, %s199
          %s201 = smul.u32 %s189, 336
          %s202 = scalar_lea.vmem [#allocation2], %s201
          %s203 = scalar_lea.sflag [#allocation3], %s189
          %p205 = scmp.lt.u32.totalorder 22, 8
          %p206 = pneg %p205
          // Predicated region
          $region33: #{tpu_custom_call.1} parent=31 // pred_check
            _
          $region34: #{tpu_custom_call.1} parent=31 // pred_check_branch
            %208 = sbr.rel (%p205) target = $region36
          $region35: #{tpu_custom_call.1} parent=31 // pred_region
            %s249 = sand.u32 22, 7
            %p250 = scmp.eq.s32.totalorder %s249, 0
            %p251 = pneg %p250
            // Predicated region
            $region48: #{tpu_custom_call.1} parent=35 // pred_check
              _
            $region49: #{tpu_custom_call.1} parent=35 // pred_check_branch
              %253 = sbr.rel (%p250) target = $region51
            $region50: #{tpu_custom_call.1} parent=35 // pred_region
              %s254 = sand.u32 22, 7
              %s255 = ssub.s32 22, %s254
              %s256 = scalar_lea.vmem %s200, %s255
              %s257 = ssub.s32 22, %s254
              %s258 = scalar_lea.vmem %s202, %s257 [#allocation2]
              loop: start=0, step=1, limit=1
              $region52: #{tpu_custom_call.1} parent=50 // loop_pre_header
                _
              $region53: #{tpu_custom_call.1} parent=50 // loop_header
                %s260 = sphi 0, %s264
                %p261 = scmp.ge.s32.totalorder %s260, 1
                %s265 = sphi %s200, %s200
                %s266 = sphi %s202, %s202
              $region54: #{tpu_custom_call.1} parent=50 // loop_header_branch
                %263 = sbr.rel (%p261) target = $region58
              $region55: #{tpu_custom_call.1} parent=50 // loop_body
                %v267 = vld [vmem:[%s265] sm:$0xff]
                %268 = vst [vmem:[%s266] sm:$0xff] %v267
                %v269 = vld [vmem:[%s265 + $0x8] sm:$0xff]
                %270 = vst [vmem:[%s266 + $0x8] sm:$0xff] %v269
                %v271 = vld [vmem:[%s265 + $0x18] sm:$0xff]
                %272 = vst [vmem:[%s266 + $0x18] sm:$0xff] %v271
                %v273 = vld [vmem:[%s265 + $0x20] sm:$0xff]
                %274 = vst [vmem:[%s266 + $0x20] sm:$0xff] %v273
                %v275 = vld [vmem:[%s265 + $0x30] sm:$0xff]
                %276 = vst [vmem:[%s266 + $0x30] sm:$0xff] %v275
                %v277 = vld [vmem:[%s265 + $0x38] sm:$0xff]
                %278 = vst [vmem:[%s266 + $0x38] sm:$0xff] %v277
                %v279 = vld [vmem:[%s265 + $0x48] sm:$0xff]
                %280 = vst [vmem:[%s266 + $0x48] sm:$0xff] %v279
                %v281 = vld [vmem:[%s265 + $0x50] sm:$0xff]
                %282 = vst [vmem:[%s266 + $0x50] sm:$0xff] %v281
                %v283 = vld [vmem:[%s265 + $0x60] sm:$0xff]
                %284 = vst [vmem:[%s266 + $0x60] sm:$0xff] %v283
                %v285 = vld [vmem:[%s265 + $0x68] sm:$0xff]
                %286 = vst [vmem:[%s266 + $0x68] sm:$0xff] %v285
                %v287 = vld [vmem:[%s265 + $0x78] sm:$0xff]
                %288 = vst [vmem:[%s266 + $0x78] sm:$0xff] %v287
                %v289 = vld [vmem:[%s265 + $0x80] sm:$0xff]
                %290 = vst [vmem:[%s266 + $0x80] sm:$0xff] %v289
                %v291 = vld [vmem:[%s265 + $0x90] sm:$0xff]
                %292 = vst [vmem:[%s266 + $0x90] sm:$0xff] %v291
                %v293 = vld [vmem:[%s265 + $0x98] sm:$0xff]
                %294 = vst [vmem:[%s266 + $0x98] sm:$0xff] %v293
                %v295 = vld [vmem:[%s265 + $0xa8] sm:$0xff]
                %296 = vst [vmem:[%s266 + $0xa8] sm:$0xff] %v295
                %v297 = vld [vmem:[%s265 + $0xb0] sm:$0xff]
                %298 = vst [vmem:[%s266 + $0xb0] sm:$0xff] %v297
                %v299 = vld [vmem:[%s265 + $0xc0] sm:$0xff]
                %300 = vst [vmem:[%s266 + $0xc0] sm:$0xff] %v299
                %v301 = vld [vmem:[%s265 + $0xc8] sm:$0xff]
                %302 = vst [vmem:[%s266 + $0xc8] sm:$0xff] %v301
                %v303 = vld [vmem:[%s265 + $0xd8] sm:$0xff]
                %304 = vst [vmem:[%s266 + $0xd8] sm:$0xff] %v303
                %v305 = vld [vmem:[%s265 + $0xe0] sm:$0xff]
                %306 = vst [vmem:[%s266 + $0xe0] sm:$0xff] %v305
                %v307 = vld [vmem:[%s265 + $0xf0] sm:$0xff]
                %308 = vst [vmem:[%s266 + $0xf0] sm:$0xff] %v307
                %v309 = vld [vmem:[%s265 + $0xf8] sm:$0xff]
                %310 = vst [vmem:[%s266 + $0xf8] sm:$0xff] %v309
                %v311 = vld [vmem:[%s265 + $0x108] sm:$0xff]
                %312 = vst [vmem:[%s266 + $0x108] sm:$0xff] %v311
                %v313 = vld [vmem:[%s265 + $0x110] sm:$0xff]
                %314 = vst [vmem:[%s266 + $0x110] sm:$0xff] %v313
                %v315 = vld [vmem:[%s265 + $0x120] sm:$0xff]
                %316 = vst [vmem:[%s266 + $0x120] sm:$0xff] %v315
                %v317 = vld [vmem:[%s265 + $0x128] sm:$0xff]
                %318 = vst [vmem:[%s266 + $0x128] sm:$0xff] %v317
                %v319 = vld [vmem:[%s265 + $0x138] sm:$0xff]
                %320 = vst [vmem:[%s266 + $0x138] sm:$0xff] %v319
                %v321 = vld [vmem:[%s265 + $0x140] sm:$0xff]
                %322 = vst [vmem:[%s266 + $0x140] sm:$0xff] %v321
              $region56: #{tpu_custom_call.1} parent=50 // loop_footer
                %s264 = sadd.s32 1, %s260
              $region57: #{tpu_custom_call.1} parent=50 // loop_footer_branch
                %259 = sbr.rel target = $region53
              $region58: #{tpu_custom_call.1} parent=50 // loop_exit
                _
              %s323 = sshllo.u32 0, %s254
              loop: start=0, step=1, limit=1
              $region59: #{tpu_custom_call.1} parent=50 // loop_pre_header
                _
              $region60: #{tpu_custom_call.1} parent=50 // loop_header
                %s325 = sphi 0, %s329
                %p326 = scmp.ge.s32.totalorder %s325, 1
                %s330 = sphi %s256, %s256
                %s331 = sphi %s258, %s258
              $region61: #{tpu_custom_call.1} parent=50 // loop_header_branch
                %328 = sbr.rel (%p326) target = $region65
              $region62: #{tpu_custom_call.1} parent=50 // loop_body
                %v332 = vld [vmem:[%s330] sm:%s323]
                %333 = vst [vmem:[%s331] sm:%s323] %v332
                %v334 = vld [vmem:[%s330 + $0x18] sm:%s323]
                %335 = vst [vmem:[%s331 + $0x18] sm:%s323] %v334
                %v336 = vld [vmem:[%s330 + $0x30] sm:%s323]
                %337 = vst [vmem:[%s331 + $0x30] sm:%s323] %v336
                %v338 = vld [vmem:[%s330 + $0x48] sm:%s323]
                %339 = vst [vmem:[%s331 + $0x48] sm:%s323] %v338
                %v340 = vld [vmem:[%s330 + $0x60] sm:%s323]
                %341 = vst [vmem:[%s331 + $0x60] sm:%s323] %v340
                %v342 = vld [vmem:[%s330 + $0x78] sm:%s323]
                %343 = vst [vmem:[%s331 + $0x78] sm:%s323] %v342
                %v344 = vld [vmem:[%s330 + $0x90] sm:%s323]
                %345 = vst [vmem:[%s331 + $0x90] sm:%s323] %v344
                %v346 = vld [vmem:[%s330 + $0xa8] sm:%s323]
                %347 = vst [vmem:[%s331 + $0xa8] sm:%s323] %v346
                %v348 = vld [vmem:[%s330 + $0xc0] sm:%s323]
                %349 = vst [vmem:[%s331 + $0xc0] sm:%s323] %v348
                %v350 = vld [vmem:[%s330 + $0xd8] sm:%s323]
                %351 = vst [vmem:[%s331 + $0xd8] sm:%s323] %v350
                %v352 = vld [vmem:[%s330 + $0xf0] sm:%s323]
                %353 = vst [vmem:[%s331 + $0xf0] sm:%s323] %v352
                %v354 = vld [vmem:[%s330 + $0x108] sm:%s323]
                %355 = vst [vmem:[%s331 + $0x108] sm:%s323] %v354
                %v356 = vld [vmem:[%s330 + $0x120] sm:%s323]
                %357 = vst [vmem:[%s331 + $0x120] sm:%s323] %v356
                %v358 = vld [vmem:[%s330 + $0x138] sm:%s323]
                %359 = vst [vmem:[%s331 + $0x138] sm:%s323] %v358
              $region63: #{tpu_custom_call.1} parent=50 // loop_footer
                %s329 = sadd.s32 1, %s325
              $region64: #{tpu_custom_call.1} parent=50 // loop_footer_branch
                %324 = sbr.rel target = $region60
              $region65: #{tpu_custom_call.1} parent=50 // loop_exit
                _
            $region51: #{tpu_custom_call.1} parent=35 // pred_fallthru
              _
          $region36: #{tpu_custom_call.1} parent=31 // pred_fallthru
            _
          // Predicated region
          $region37: #{tpu_custom_call.1} parent=31 // pred_check
            %p209 = pneg %p205
          $region38: #{tpu_custom_call.1} parent=31 // pred_check_branch
            %211 = sbr.rel (%p209) target = $region40
          $region39: #{tpu_custom_call.1} parent=31 // pred_region
            %s212 = sshllo.u32 0, 22
            loop: start=0, step=1, limit=1
            $region41: #{tpu_custom_call.1} parent=39 // loop_pre_header
              _
            $region42: #{tpu_custom_call.1} parent=39 // loop_header
              %s214 = sphi 0, %s218
              %p215 = scmp.ge.s32.totalorder %s214, 1
              %s219 = sphi %s200, %s200
              %s220 = sphi %s202, %s202
            $region43: #{tpu_custom_call.1} parent=39 // loop_header_branch
              %217 = sbr.rel (%p215) target = $region47
            $region44: #{tpu_custom_call.1} parent=39 // loop_body
              %v221 = vld [vmem:[%s219] sm:%s212]
              %222 = vst [vmem:[%s220] sm:%s212] %v221
              %v223 = vld [vmem:[%s219 + $0x18] sm:%s212]
              %224 = vst [vmem:[%s220 + $0x18] sm:%s212] %v223
              %v225 = vld [vmem:[%s219 + $0x30] sm:%s212]
              %226 = vst [vmem:[%s220 + $0x30] sm:%s212] %v225
              %v227 = vld [vmem:[%s219 + $0x48] sm:%s212]
              %228 = vst [vmem:[%s220 + $0x48] sm:%s212] %v227
              %v229 = vld [vmem:[%s219 + $0x60] sm:%s212]
              %230 = vst [vmem:[%s220 + $0x60] sm:%s212] %v229
              %v231 = vld [vmem:[%s219 + $0x78] sm:%s212]
              %232 = vst [vmem:[%s220 + $0x78] sm:%s212] %v231
              %v233 = vld [vmem:[%s219 + $0x90] sm:%s212]
              %234 = vst [vmem:[%s220 + $0x90] sm:%s212] %v233
              %v235 = vld [vmem:[%s219 + $0xa8] sm:%s212]
              %236 = vst [vmem:[%s220 + $0xa8] sm:%s212] %v235
              %v237 = vld [vmem:[%s219 + $0xc0] sm:%s212]
              %238 = vst [vmem:[%s220 + $0xc0] sm:%s212] %v237
              %v239 = vld [vmem:[%s219 + $0xd8] sm:%s212]
              %240 = vst [vmem:[%s220 + $0xd8] sm:%s212] %v239
              %v241 = vld [vmem:[%s219 + $0xf0] sm:%s212]
              %242 = vst [vmem:[%s220 + $0xf0] sm:%s212] %v241
              %v243 = vld [vmem:[%s219 + $0x108] sm:%s212]
              %244 = vst [vmem:[%s220 + $0x108] sm:%s212] %v243
              %v245 = vld [vmem:[%s219 + $0x120] sm:%s212]
              %246 = vst [vmem:[%s220 + $0x120] sm:%s212] %v245
              %v247 = vld [vmem:[%s219 + $0x138] sm:%s212]
              %248 = vst [vmem:[%s220 + $0x138] sm:%s212] %v247
            $region45: #{tpu_custom_call.1} parent=39 // loop_footer
              %s218 = sadd.s32 1, %s214
            $region46: #{tpu_custom_call.1} parent=39 // loop_footer_branch
              %213 = sbr.rel target = $region42
            $region47: #{tpu_custom_call.1} parent=39 // loop_exit
              _
          $region40: #{tpu_custom_call.1} parent=31 // pred_fallthru
            _
          // Predicated region
          $region66: #{tpu_custom_call.1} parent=31 // pred_check
            _
          $region67: #{tpu_custom_call.1} parent=31 // pred_check_branch
            %362 = sbr.rel (0) target = $region69
          $region68: #{tpu_custom_call.1} parent=31 // pred_region
            %363 = vsyncadd %s203, 4928
          $region69: #{tpu_custom_call.1} parent=31 // pred_fallthru
            _
        $region32: #{tpu_custom_call.1} parent=27 // pred_fallthru
          _
        %s364 = smul.u32 %s189, 336
        %s365 = scalar_lea.vmem [#allocation2], %s364
        %s366 = scalar_lea.sflag [#allocation3], %s189
        %s367 = smul.u32 14, 22
        %s368 = smul.u32 %s367, 1
        %s369 = sshll.u32 %s368, 4
        %370 = dma.done %s366, %s369
        %s371 = sadd.s32 %s24, 1
        %p372 = scmp.lt.s32.totalorder %s371, 2
        // Predicated region
        $region70: #{tpu_custom_call.1} parent=27 // pred_check
          %p373 = pneg %p372
        $region71: #{tpu_custom_call.1} parent=27 // pred_check_branch
          %375 = sbr.rel (%p373) target = $region73
        $region72: #{tpu_custom_call.1} parent=27 // pred_region
          %s376 = ssub.s32 1, %s189
          %s377 = smul.u32 %s371, 8
          %s378 = smul.u32 %s377, 24
          %s379 = smul.u32 %s23, 528
          %s380 = sadd.s32 %s378, %s379
          %s381 = smul.u32 %s22, 1056
          %s382 = sadd.s32 %s380, %s381
          %s383 = scalar_lea.vmem %s2, %s382
          %s384 = smul.u32 %s376, 336
          %s385 = scalar_lea.vmem [#allocation2], %s384
          %s386 = scalar_lea.sflag [#allocation3], %s376
          %p388 = scmp.lt.u32.totalorder 22, 8
          %p389 = pneg %p388
          // Predicated region
          $region74: #{tpu_custom_call.1} parent=72 // pred_check
            _
          $region75: #{tpu_custom_call.1} parent=72 // pred_check_branch
            %391 = sbr.rel (%p388) target = $region77
          $region76: #{tpu_custom_call.1} parent=72 // pred_region
            %s432 = sand.u32 22, 7
            %p433 = scmp.eq.s32.totalorder %s432, 0
            %p434 = pneg %p433
            // Predicated region
            $region89: #{tpu_custom_call.1} parent=76 // pred_check
              _
            $region90: #{tpu_custom_call.1} parent=76 // pred_check_branch
              %436 = sbr.rel (%p433) target = $region92
            $region91: #{tpu_custom_call.1} parent=76 // pred_region
              %s437 = sand.u32 22, 7
              %s438 = ssub.s32 22, %s437
              %s439 = scalar_lea.vmem %s383, %s438
              %s440 = ssub.s32 22, %s437
              %s441 = scalar_lea.vmem %s385, %s440 [#allocation2]
              loop: start=0, step=1, limit=1
              $region93: #{tpu_custom_call.1} parent=91 // loop_pre_header
                _
              $region94: #{tpu_custom_call.1} parent=91 // loop_header
                %s443 = sphi 0, %s447
                %p444 = scmp.ge.s32.totalorder %s443, 1
                %s448 = sphi %s383, %s383
                %s449 = sphi %s385, %s385
              $region95: #{tpu_custom_call.1} parent=91 // loop_header_branch
                %446 = sbr.rel (%p444) target = $region99
              $region96: #{tpu_custom_call.1} parent=91 // loop_body
                %v450 = vld [vmem:[%s448] sm:$0xff]
                %451 = vst [vmem:[%s449] sm:$0xff] %v450
                %v452 = vld [vmem:[%s448 + $0x8] sm:$0xff]
                %453 = vst [vmem:[%s449 + $0x8] sm:$0xff] %v452
                %v454 = vld [vmem:[%s448 + $0x18] sm:$0xff]
                %455 = vst [vmem:[%s449 + $0x18] sm:$0xff] %v454
                %v456 = vld [vmem:[%s448 + $0x20] sm:$0xff]
                %457 = vst [vmem:[%s449 + $0x20] sm:$0xff] %v456
                %v458 = vld [vmem:[%s448 + $0x30] sm:$0xff]
                %459 = vst [vmem:[%s449 + $0x30] sm:$0xff] %v458
                %v460 = vld [vmem:[%s448 + $0x38] sm:$0xff]
                %461 = vst [vmem:[%s449 + $0x38] sm:$0xff] %v460
                %v462 = vld [vmem:[%s448 + $0x48] sm:$0xff]
                %463 = vst [vmem:[%s449 + $0x48] sm:$0xff] %v462
                %v464 = vld [vmem:[%s448 + $0x50] sm:$0xff]
                %465 = vst [vmem:[%s449 + $0x50] sm:$0xff] %v464
                %v466 = vld [vmem:[%s448 + $0x60] sm:$0xff]
                %467 = vst [vmem:[%s449 + $0x60] sm:$0xff] %v466
                %v468 = vld [vmem:[%s448 + $0x68] sm:$0xff]
                %469 = vst [vmem:[%s449 + $0x68] sm:$0xff] %v468
                %v470 = vld [vmem:[%s448 + $0x78] sm:$0xff]
                %471 = vst [vmem:[%s449 + $0x78] sm:$0xff] %v470
                %v472 = vld [vmem:[%s448 + $0x80] sm:$0xff]
                %473 = vst [vmem:[%s449 + $0x80] sm:$0xff] %v472
                %v474 = vld [vmem:[%s448 + $0x90] sm:$0xff]
                %475 = vst [vmem:[%s449 + $0x90] sm:$0xff] %v474
                %v476 = vld [vmem:[%s448 + $0x98] sm:$0xff]
                %477 = vst [vmem:[%s449 + $0x98] sm:$0xff] %v476
                %v478 = vld [vmem:[%s448 + $0xa8] sm:$0xff]
                %479 = vst [vmem:[%s449 + $0xa8] sm:$0xff] %v478
                %v480 = vld [vmem:[%s448 + $0xb0] sm:$0xff]
                %481 = vst [vmem:[%s449 + $0xb0] sm:$0xff] %v480
                %v482 = vld [vmem:[%s448 + $0xc0] sm:$0xff]
                %483 = vst [vmem:[%s449 + $0xc0] sm:$0xff] %v482
                %v484 = vld [vmem:[%s448 + $0xc8] sm:$0xff]
                %485 = vst [vmem:[%s449 + $0xc8] sm:$0xff] %v484
                %v486 = vld [vmem:[%s448 + $0xd8] sm:$0xff]
                %487 = vst [vmem:[%s449 + $0xd8] sm:$0xff] %v486
                %v488 = vld [vmem:[%s448 + $0xe0] sm:$0xff]
                %489 = vst [vmem:[%s449 + $0xe0] sm:$0xff] %v488
                %v490 = vld [vmem:[%s448 + $0xf0] sm:$0xff]
                %491 = vst [vmem:[%s449 + $0xf0] sm:$0xff] %v490
                %v492 = vld [vmem:[%s448 + $0xf8] sm:$0xff]
                %493 = vst [vmem:[%s449 + $0xf8] sm:$0xff] %v492
                %v494 = vld [vmem:[%s448 + $0x108] sm:$0xff]
                %495 = vst [vmem:[%s449 + $0x108] sm:$0xff] %v494
                %v496 = vld [vmem:[%s448 + $0x110] sm:$0xff]
                %497 = vst [vmem:[%s449 + $0x110] sm:$0xff] %v496
                %v498 = vld [vmem:[%s448 + $0x120] sm:$0xff]
                %499 = vst [vmem:[%s449 + $0x120] sm:$0xff] %v498
                %v500 = vld [vmem:[%s448 + $0x128] sm:$0xff]
                %501 = vst [vmem:[%s449 + $0x128] sm:$0xff] %v500
                %v502 = vld [vmem:[%s448 + $0x138] sm:$0xff]
                %503 = vst [vmem:[%s449 + $0x138] sm:$0xff] %v502
                %v504 = vld [vmem:[%s448 + $0x140] sm:$0xff]
                %505 = vst [vmem:[%s449 + $0x140] sm:$0xff] %v504
              $region97: #{tpu_custom_call.1} parent=91 // loop_footer
                %s447 = sadd.s32 1, %s443
              $region98: #{tpu_custom_call.1} parent=91 // loop_footer_branch
                %442 = sbr.rel target = $region94
              $region99: #{tpu_custom_call.1} parent=91 // loop_exit
                _
              %s506 = sshllo.u32 0, %s437
              loop: start=0, step=1, limit=1
              $region100: #{tpu_custom_call.1} parent=91 // loop_pre_header
                _
              $region101: #{tpu_custom_call.1} parent=91 // loop_header
                %s508 = sphi 0, %s512
                %p509 = scmp.ge.s32.totalorder %s508, 1
                %s513 = sphi %s439, %s439
                %s514 = sphi %s441, %s441
              $region102: #{tpu_custom_call.1} parent=91 // loop_header_branch
                %511 = sbr.rel (%p509) target = $region106
              $region103: #{tpu_custom_call.1} parent=91 // loop_body
                %v515 = vld [vmem:[%s513] sm:%s506]
                %516 = vst [vmem:[%s514] sm:%s506] %v515
                %v517 = vld [vmem:[%s513 + $0x18] sm:%s506]
                %518 = vst [vmem:[%s514 + $0x18] sm:%s506] %v517
                %v519 = vld [vmem:[%s513 + $0x30] sm:%s506]
                %520 = vst [vmem:[%s514 + $0x30] sm:%s506] %v519
                %v521 = vld [vmem:[%s513 + $0x48] sm:%s506]
                %522 = vst [vmem:[%s514 + $0x48] sm:%s506] %v521
                %v523 = vld [vmem:[%s513 + $0x60] sm:%s506]
                %524 = vst [vmem:[%s514 + $0x60] sm:%s506] %v523
                %v525 = vld [vmem:[%s513 + $0x78] sm:%s506]
                %526 = vst [vmem:[%s514 + $0x78] sm:%s506] %v525
                %v527 = vld [vmem:[%s513 + $0x90] sm:%s506]
                %528 = vst [vmem:[%s514 + $0x90] sm:%s506] %v527
                %v529 = vld [vmem:[%s513 + $0xa8] sm:%s506]
                %530 = vst [vmem:[%s514 + $0xa8] sm:%s506] %v529
                %v531 = vld [vmem:[%s513 + $0xc0] sm:%s506]
                %532 = vst [vmem:[%s514 + $0xc0] sm:%s506] %v531
                %v533 = vld [vmem:[%s513 + $0xd8] sm:%s506]
                %534 = vst [vmem:[%s514 + $0xd8] sm:%s506] %v533
                %v535 = vld [vmem:[%s513 + $0xf0] sm:%s506]
                %536 = vst [vmem:[%s514 + $0xf0] sm:%s506] %v535
                %v537 = vld [vmem:[%s513 + $0x108] sm:%s506]
                %538 = vst [vmem:[%s514 + $0x108] sm:%s506] %v537
                %v539 = vld [vmem:[%s513 + $0x120] sm:%s506]
                %540 = vst [vmem:[%s514 + $0x120] sm:%s506] %v539
                %v541 = vld [vmem:[%s513 + $0x138] sm:%s506]
                %542 = vst [vmem:[%s514 + $0x138] sm:%s506] %v541
              $region104: #{tpu_custom_call.1} parent=91 // loop_footer
                %s512 = sadd.s32 1, %s508
              $region105: #{tpu_custom_call.1} parent=91 // loop_footer_branch
                %507 = sbr.rel target = $region101
              $region106: #{tpu_custom_call.1} parent=91 // loop_exit
                _
            $region92: #{tpu_custom_call.1} parent=76 // pred_fallthru
              _
          $region77: #{tpu_custom_call.1} parent=72 // pred_fallthru
            _
          // Predicated region
          $region78: #{tpu_custom_call.1} parent=72 // pred_check
            %p392 = pneg %p388
          $region79: #{tpu_custom_call.1} parent=72 // pred_check_branch
            %394 = sbr.rel (%p392) target = $region81
          $region80: #{tpu_custom_call.1} parent=72 // pred_region
            %s395 = sshllo.u32 0, 22
            loop: start=0, step=1, limit=1
            $region82: #{tpu_custom_call.1} parent=80 // loop_pre_header
              _
            $region83: #{tpu_custom_call.1} parent=80 // loop_header
              %s397 = sphi 0, %s401
              %p398 = scmp.ge.s32.totalorder %s397, 1
              %s402 = sphi %s383, %s383
              %s403 = sphi %s385, %s385
            $region84: #{tpu_custom_call.1} parent=80 // loop_header_branch
              %400 = sbr.rel (%p398) target = $region88
            $region85: #{tpu_custom_call.1} parent=80 // loop_body
              %v404 = vld [vmem:[%s402] sm:%s395]
              %405 = vst [vmem:[%s403] sm:%s395] %v404
              %v406 = vld [vmem:[%s402 + $0x18] sm:%s395]
              %407 = vst [vmem:[%s403 + $0x18] sm:%s395] %v406
              %v408 = vld [vmem:[%s402 + $0x30] sm:%s395]
              %409 = vst [vmem:[%s403 + $0x30] sm:%s395] %v408
              %v410 = vld [vmem:[%s402 + $0x48] sm:%s395]
              %411 = vst [vmem:[%s403 + $0x48] sm:%s395] %v410
              %v412 = vld [vmem:[%s402 + $0x60] sm:%s395]
              %413 = vst [vmem:[%s403 + $0x60] sm:%s395] %v412
              %v414 = vld [vmem:[%s402 + $0x78] sm:%s395]
              %415 = vst [vmem:[%s403 + $0x78] sm:%s395] %v414
              %v416 = vld [vmem:[%s402 + $0x90] sm:%s395]
              %417 = vst [vmem:[%s403 + $0x90] sm:%s395] %v416
              %v418 = vld [vmem:[%s402 + $0xa8] sm:%s395]
              %419 = vst [vmem:[%s403 + $0xa8] sm:%s395] %v418
              %v420 = vld [vmem:[%s402 + $0xc0] sm:%s395]
              %421 = vst [vmem:[%s403 + $0xc0] sm:%s395] %v420
              %v422 = vld [vmem:[%s402 + $0xd8] sm:%s395]
              %423 = vst [vmem:[%s403 + $0xd8] sm:%s395] %v422
              %v424 = vld [vmem:[%s402 + $0xf0] sm:%s395]
              %425 = vst [vmem:[%s403 + $0xf0] sm:%s395] %v424
              %v426 = vld [vmem:[%s402 + $0x108] sm:%s395]
              %427 = vst [vmem:[%s403 + $0x108] sm:%s395] %v426
              %v428 = vld [vmem:[%s402 + $0x120] sm:%s395]
              %429 = vst [vmem:[%s403 + $0x120] sm:%s395] %v428
              %v430 = vld [vmem:[%s402 + $0x138] sm:%s395]
              %431 = vst [vmem:[%s403 + $0x138] sm:%s395] %v430
            $region86: #{tpu_custom_call.1} parent=80 // loop_footer
              %s401 = sadd.s32 1, %s397
            $region87: #{tpu_custom_call.1} parent=80 // loop_footer_branch
              %396 = sbr.rel target = $region83
            $region88: #{tpu_custom_call.1} parent=80 // loop_exit
              _
          $region81: #{tpu_custom_call.1} parent=72 // pred_fallthru
            _
          // Predicated region
          $region107: #{tpu_custom_call.1} parent=72 // pred_check
            _
          $region108: #{tpu_custom_call.1} parent=72 // pred_check_branch
            %545 = sbr.rel (0) target = $region110
          $region109: #{tpu_custom_call.1} parent=72 // pred_region
            %546 = vsyncadd %s386, 4928
          $region110: #{tpu_custom_call.1} parent=72 // pred_fallthru
            _
        $region73: #{tpu_custom_call.1} parent=27 // pred_fallthru
          _
        %v547 = vld [vmem:[%s176] sm:$0x1]
        %v548 = vld [vmem:[%s365] sm:$0xff]
        %v549 = vld [vmem:[%s365 + $0x8] sm:$0xff]
        %v550 = vld [vmem:[%s365 + $0x18] sm:$0xff]
        %v551 = vld [vmem:[%s365 + $0x20] sm:$0xff]
        %v552 = vld [vmem:[%s365 + $0x30] sm:$0xff]
        %v553 = vld [vmem:[%s365 + $0x38] sm:$0xff]
        %v554 = vld [vmem:[%s365 + $0x48] sm:$0xff]
        %v555 = vld [vmem:[%s365 + $0x50] sm:$0xff]
        %v556 = vld [vmem:[%s365 + $0x60] sm:$0xff]
        %v557 = vld [vmem:[%s365 + $0x68] sm:$0xff]
        %v558 = vld [vmem:[%s365 + $0x78] sm:$0xff]
        %v559 = vld [vmem:[%s365 + $0x80] sm:$0xff]
        %v560 = vld [vmem:[%s365 + $0x90] sm:$0xff]
        %v561 = vld [vmem:[%s365 + $0x98] sm:$0xff]
        %v562 = vld [vmem:[%s365 + $0xa8] sm:$0xff]
        %v563 = vld [vmem:[%s365 + $0xb0] sm:$0xff]
        %v564 = vld [vmem:[%s365 + $0xc0] sm:$0xff]
        %v565 = vld [vmem:[%s365 + $0xc8] sm:$0xff]
        %v566 = vld [vmem:[%s365 + $0xd8] sm:$0xff]
        %v567 = vld [vmem:[%s365 + $0xe0] sm:$0xff]
        %v568 = vld [vmem:[%s365 + $0xf0] sm:$0xff]
        %v569 = vld [vmem:[%s365 + $0xf8] sm:$0xff]
        %v570 = vld [vmem:[%s365 + $0x108] sm:$0xff]
        %v571 = vld [vmem:[%s365 + $0x110] sm:$0xff]
        %v572 = vld [vmem:[%s365 + $0x120] sm:$0xff]
        %v573 = vld [vmem:[%s365 + $0x128] sm:$0xff]
        %v574 = vld [vmem:[%s365 + $0x138] sm:$0xff]
        %v575 = vld [vmem:[%s365 + $0x140] sm:$0xff]
        %v576 = vld [vmem:[%s173] sm:$0x1]
        %v577 = vlaneseq
        %v578 = vshrl.u32 %v577, 7
        %v579 = vsub.s32 0, %v578
        %v580 = vrot.slane %v576, %v579
        %v581 = vmul.f32 %v548, %v580
        %v582 = vmul.f32 %v549, %v580
        %v583 = vmul.f32 %v550, %v580
        %v584 = vmul.f32 %v551, %v580
        %v585 = vmul.f32 %v552, %v580
        %v586 = vmul.f32 %v553, %v580
        %v587 = vmul.f32 %v554, %v580
        %v588 = vmul.f32 %v555, %v580
        %v589 = vmul.f32 %v556, %v580
        %v590 = vmul.f32 %v557, %v580
        %v591 = vmul.f32 %v558, %v580
        %v592 = vmul.f32 %v559, %v580
        %v593 = vmul.f32 %v560, %v580
        %v594 = vmul.f32 %v561, %v580
        %v595 = vmul.f32 %v562, %v580
        %v596 = vmul.f32 %v563, %v580
        %v597 = vadd.f32 %v581, 0.0
        %v598 = vadd.f32 %v582, 0.0
        %v599 = vadd.f32 %v583, 0.0
        %v600 = vadd.f32 %v584, 0.0
        %v601 = vadd.f32 %v585, 0.0
        %v602 = vadd.f32 %v586, 0.0
        %v603 = vadd.f32 %v587, 0.0
        %v604 = vadd.f32 %v588, 0.0
        %v605 = vadd.f32 %v589, 0.0
        %v606 = vadd.f32 %v590, 0.0
        %v607 = vadd.f32 %v591, 0.0
        %v608 = vadd.f32 %v592, 0.0
        %v609 = vadd.f32 %v593, 0.0
        %v610 = vadd.f32 %v594, 0.0
        %v611 = vadd.f32 %v595, 0.0
        %v612 = vadd.f32 %v596, 0.0
        %v613 = vld [vmem:[%s173 + $0x1] sm:$0x1]
        %v614 = vlaneseq
        %v615 = vshrl.u32 %v614, 7
        %v616 = vsub.s32 0, %v615
        %v617 = vrot.slane %v613, %v616
        %v618 = vmul.f32 %v550, %v617
        %v619 = vmul.f32 %v551, %v617
        %v620 = vmul.f32 %v552, %v617
        %v621 = vmul.f32 %v553, %v617
        %v622 = vmul.f32 %v554, %v617
        %v623 = vmul.f32 %v555, %v617
        %v624 = vmul.f32 %v556, %v617
        %v625 = vmul.f32 %v557, %v617
        %v626 = vmul.f32 %v558, %v617
        %v627 = vmul.f32 %v559, %v617
        %v628 = vmul.f32 %v560, %v617
        %v629 = vmul.f32 %v561, %v617
        %v630 = vmul.f32 %v562, %v617
        %v631 = vmul.f32 %v563, %v617
        %v632 = vmul.f32 %v564, %v617
        %v633 = vmul.f32 %v565, %v617
        %v634 = vadd.f32 %v597, %v618
        %v635 = vadd.f32 %v598, %v619
        %v636 = vadd.f32 %v599, %v620
        %v637 = vadd.f32 %v600, %v621
        %v638 = vadd.f32 %v601, %v622
        %v639 = vadd.f32 %v602, %v623
        %v640 = vadd.f32 %v603, %v624
        %v641 = vadd.f32 %v604, %v625
        %v642 = vadd.f32 %v605, %v626
        %v643 = vadd.f32 %v606, %v627
        %v644 = vadd.f32 %v607, %v628
        %v645 = vadd.f32 %v608, %v629
        %v646 = vadd.f32 %v609, %v630
        %v647 = vadd.f32 %v610, %v631
        %v648 = vadd.f32 %v611, %v632
        %v649 = vadd.f32 %v612, %v633
        %v650 = vld [vmem:[%s173 + $0x2] sm:$0x1]
        %v651 = vlaneseq
        %v652 = vshrl.u32 %v651, 7
        %v653 = vsub.s32 0, %v652
        %v654 = vrot.slane %v650, %v653
        %v655 = vmul.f32 %v552, %v654
        %v656 = vmul.f32 %v553, %v654
        %v657 = vmul.f32 %v554, %v654
        %v658 = vmul.f32 %v555, %v654
        %v659 = vmul.f32 %v556, %v654
        %v660 = vmul.f32 %v557, %v654
        %v661 = vmul.f32 %v558, %v654
        %v662 = vmul.f32 %v559, %v654
        %v663 = vmul.f32 %v560, %v654
        %v664 = vmul.f32 %v561, %v654
        %v665 = vmul.f32 %v562, %v654
        %v666 = vmul.f32 %v563, %v654
        %v667 = vmul.f32 %v564, %v654
        %v668 = vmul.f32 %v565, %v654
        %v669 = vmul.f32 %v566, %v654
        %v670 = vmul.f32 %v567, %v654
        %v671 = vadd.f32 %v634, %v655
        %v672 = vadd.f32 %v635, %v656
        %v673 = vadd.f32 %v636, %v657
        %v674 = vadd.f32 %v637, %v658
        %v675 = vadd.f32 %v638, %v659
        %v676 = vadd.f32 %v639, %v660
        %v677 = vadd.f32 %v640, %v661
        %v678 = vadd.f32 %v641, %v662
        %v679 = vadd.f32 %v642, %v663
        %v680 = vadd.f32 %v643, %v664
        %v681 = vadd.f32 %v644, %v665
        %v682 = vadd.f32 %v645, %v666
        %v683 = vadd.f32 %v646, %v667
        %v684 = vadd.f32 %v647, %v668
        %v685 = vadd.f32 %v648, %v669
        %v686 = vadd.f32 %v649, %v670
        %v687 = vld [vmem:[%s173 + $0x3] sm:$0x1]
        %v688 = vlaneseq
        %v689 = vshrl.u32 %v688, 7
        %v690 = vsub.s32 0, %v689
        %v691 = vrot.slane %v687, %v690
        %v692 = vmul.f32 %v554, %v691
        %v693 = vmul.f32 %v555, %v691
        %v694 = vmul.f32 %v556, %v691
        %v695 = vmul.f32 %v557, %v691
        %v696 = vmul.f32 %v558, %v691
        %v697 = vmul.f32 %v559, %v691
        %v698 = vmul.f32 %v560, %v691
        %v699 = vmul.f32 %v561, %v691
        %v700 = vmul.f32 %v562, %v691
        %v701 = vmul.f32 %v563, %v691
        %v702 = vmul.f32 %v564, %v691
        %v703 = vmul.f32 %v565, %v691
        %v704 = vmul.f32 %v566, %v691
        %v705 = vmul.f32 %v567, %v691
        %v706 = vmul.f32 %v568, %v691
        %v707 = vmul.f32 %v569, %v691
        %v708 = vadd.f32 %v671, %v692
        %v709 = vadd.f32 %v672, %v693
        %v710 = vadd.f32 %v673, %v694
        %v711 = vadd.f32 %v674, %v695
        %v712 = vadd.f32 %v675, %v696
        %v713 = vadd.f32 %v676, %v697
        %v714 = vadd.f32 %v677, %v698
        %v715 = vadd.f32 %v678, %v699
        %v716 = vadd.f32 %v679, %v700
        %v717 = vadd.f32 %v680, %v701
        %v718 = vadd.f32 %v681, %v702
        %v719 = vadd.f32 %v682, %v703
        %v720 = vadd.f32 %v683, %v704
        %v721 = vadd.f32 %v684, %v705
        %v722 = vadd.f32 %v685, %v706
        %v723 = vadd.f32 %v686, %v707
        %v724 = vld [vmem:[%s173 + $0x4] sm:$0x1]
        %v725 = vlaneseq
        %v726 = vshrl.u32 %v725, 7
        %v727 = vsub.s32 0, %v726
        %v728 = vrot.slane %v724, %v727
        %v729 = vmul.f32 %v556, %v728
        %v730 = vmul.f32 %v557, %v728
        %v731 = vmul.f32 %v558, %v728
        %v732 = vmul.f32 %v559, %v728
        %v733 = vmul.f32 %v560, %v728
        %v734 = vmul.f32 %v561, %v728
        %v735 = vmul.f32 %v562, %v728
        %v736 = vmul.f32 %v563, %v728
        %v737 = vmul.f32 %v564, %v728
        %v738 = vmul.f32 %v565, %v728
        %v739 = vmul.f32 %v566, %v728
        %v740 = vmul.f32 %v567, %v728
        %v741 = vmul.f32 %v568, %v728
        %v742 = vmul.f32 %v569, %v728
        %v743 = vmul.f32 %v570, %v728
        %v744 = vmul.f32 %v571, %v728
        %v745 = vadd.f32 %v708, %v729
        %v746 = vadd.f32 %v709, %v730
        %v747 = vadd.f32 %v710, %v731
        %v748 = vadd.f32 %v711, %v732
        %v749 = vadd.f32 %v712, %v733
        %v750 = vadd.f32 %v713, %v734
        %v751 = vadd.f32 %v714, %v735
        %v752 = vadd.f32 %v715, %v736
        %v753 = vadd.f32 %v716, %v737
        %v754 = vadd.f32 %v717, %v738
        %v755 = vadd.f32 %v718, %v739
        %v756 = vadd.f32 %v719, %v740
        %v757 = vadd.f32 %v720, %v741
        %v758 = vadd.f32 %v721, %v742
        %v759 = vadd.f32 %v722, %v743
        %v760 = vadd.f32 %v723, %v744
        %v761 = vld [vmem:[%s173 + $0x5] sm:$0x1]
        %v762 = vlaneseq
        %v763 = vshrl.u32 %v762, 7
        %v764 = vsub.s32 0, %v763
        %v765 = vrot.slane %v761, %v764
        %v766 = vmul.f32 %v558, %v765
        %v767 = vmul.f32 %v559, %v765
        %v768 = vmul.f32 %v560, %v765
        %v769 = vmul.f32 %v561, %v765
        %v770 = vmul.f32 %v562, %v765
        %v771 = vmul.f32 %v563, %v765
        %v772 = vmul.f32 %v564, %v765
        %v773 = vmul.f32 %v565, %v765
        %v774 = vmul.f32 %v566, %v765
        %v775 = vmul.f32 %v567, %v765
        %v776 = vmul.f32 %v568, %v765
        %v777 = vmul.f32 %v569, %v765
        %v778 = vmul.f32 %v570, %v765
        %v779 = vmul.f32 %v571, %v765
        %v780 = vmul.f32 %v572, %v765
        %v781 = vmul.f32 %v573, %v765
        %v782 = vadd.f32 %v745, %v766
        %v783 = vadd.f32 %v746, %v767
        %v784 = vadd.f32 %v747, %v768
        %v785 = vadd.f32 %v748, %v769
        %v786 = vadd.f32 %v749, %v770
        %v787 = vadd.f32 %v750, %v771
        %v788 = vadd.f32 %v751, %v772
        %v789 = vadd.f32 %v752, %v773
        %v790 = vadd.f32 %v753, %v774
        %v791 = vadd.f32 %v754, %v775
        %v792 = vadd.f32 %v755, %v776
        %v793 = vadd.f32 %v756, %v777
        %v794 = vadd.f32 %v757, %v778
        %v795 = vadd.f32 %v758, %v779
        %v796 = vadd.f32 %v759, %v780
        %v797 = vadd.f32 %v760, %v781
        %v798 = vld [vmem:[%s173 + $0x6] sm:$0x1]
        %v799 = vlaneseq
        %v800 = vshrl.u32 %v799, 7
        %v801 = vsub.s32 0, %v800
        %v802 = vrot.slane %v798, %v801
        %v803 = vmul.f32 %v560, %v802
        %v804 = vmul.f32 %v561, %v802
        %v805 = vmul.f32 %v562, %v802
        %v806 = vmul.f32 %v563, %v802
        %v807 = vmul.f32 %v564, %v802
        %v808 = vmul.f32 %v565, %v802
        %v809 = vmul.f32 %v566, %v802
        %v810 = vmul.f32 %v567, %v802
        %v811 = vmul.f32 %v568, %v802
        %v812 = vmul.f32 %v569, %v802
        %v813 = vmul.f32 %v570, %v802
        %v814 = vmul.f32 %v571, %v802
        %v815 = vmul.f32 %v572, %v802
        %v816 = vmul.f32 %v573, %v802
        %v817 = vmul.f32 %v574, %v802
        %v818 = vmul.f32 %v575, %v802
        %v819 = vadd.f32 %v782, %v803
        %v820 = vadd.f32 %v783, %v804
        %v821 = vadd.f32 %v784, %v805
        %v822 = vadd.f32 %v785, %v806
        %v823 = vadd.f32 %v786, %v807
        %v824 = vadd.f32 %v787, %v808
        %v825 = vadd.f32 %v788, %v809
        %v826 = vadd.f32 %v789, %v810
        %v827 = vadd.f32 %v790, %v811
        %v828 = vadd.f32 %v791, %v812
        %v829 = vadd.f32 %v792, %v813
        %v830 = vadd.f32 %v793, %v814
        %v831 = vadd.f32 %v794, %v815
        %v832 = vadd.f32 %v795, %v816
        %v833 = vadd.f32 %v796, %v817
        %v834 = vadd.f32 %v797, %v818
        %v835 = vld [vmem:[%s365 + $0x1] sm:$0xff]
        %v836 = vld [vmem:[%s365 + $0x9] sm:$0xff]
        %v837 = vld [vmem:[%s365 + $0x19] sm:$0xff]
        %v838 = vld [vmem:[%s365 + $0x21] sm:$0xff]
        %v839 = vld [vmem:[%s365 + $0x31] sm:$0xff]
        %v840 = vld [vmem:[%s365 + $0x39] sm:$0xff]
        %v841 = vld [vmem:[%s365 + $0x49] sm:$0xff]
        %v842 = vld [vmem:[%s365 + $0x51] sm:$0xff]
        %v843 = vld [vmem:[%s365 + $0x61] sm:$0xff]
        %v844 = vld [vmem:[%s365 + $0x69] sm:$0xff]
        %v845 = vld [vmem:[%s365 + $0x79] sm:$0xff]
        %v846 = vld [vmem:[%s365 + $0x81] sm:$0xff]
        %v847 = vld [vmem:[%s365 + $0x91] sm:$0xff]
        %v848 = vld [vmem:[%s365 + $0x99] sm:$0xff]
        %v849 = vld [vmem:[%s365 + $0xa9] sm:$0xff]
        %v850 = vld [vmem:[%s365 + $0xb1] sm:$0xff]
        %v851 = vld [vmem:[%s365 + $0xc1] sm:$0xff]
        %v852 = vld [vmem:[%s365 + $0xc9] sm:$0xff]
        %v853 = vld [vmem:[%s365 + $0xd9] sm:$0xff]
        %v854 = vld [vmem:[%s365 + $0xe1] sm:$0xff]
        %v855 = vld [vmem:[%s365 + $0xf1] sm:$0xff]
        %v856 = vld [vmem:[%s365 + $0xf9] sm:$0xff]
        %v857 = vld [vmem:[%s365 + $0x109] sm:$0xff]
        %v858 = vld [vmem:[%s365 + $0x111] sm:$0xff]
        %v859 = vld [vmem:[%s365 + $0x121] sm:$0xff]
        %v860 = vld [vmem:[%s365 + $0x129] sm:$0xff]
        %v861 = vld [vmem:[%s365 + $0x139] sm:$0xff]
        %v862 = vld [vmem:[%s365 + $0x141] sm:$0xff]
        %s863 = scalar_lea.vmem %s173, 8
        %v864 = vld [vmem:[%s863] sm:$0x1]
        %v865 = vlaneseq
        %v866 = vshrl.u32 %v865, 7
        %v867 = vsub.s32 0, %v866
        %v868 = vrot.slane %v864, %v867
        %v869 = vmul.f32 %v835, %v868
        %v870 = vmul.f32 %v836, %v868
        %v871 = vmul.f32 %v837, %v868
        %v872 = vmul.f32 %v838, %v868
        %v873 = vmul.f32 %v839, %v868
        %v874 = vmul.f32 %v840, %v868
        %v875 = vmul.f32 %v841, %v868
        %v876 = vmul.f32 %v842, %v868
        %v877 = vmul.f32 %v843, %v868
        %v878 = vmul.f32 %v844, %v868
        %v879 = vmul.f32 %v845, %v868
        %v880 = vmul.f32 %v846, %v868
        %v881 = vmul.f32 %v847, %v868
        %v882 = vmul.f32 %v848, %v868
        %v883 = vmul.f32 %v849, %v868
        %v884 = vmul.f32 %v850, %v868
        %v885 = vadd.f32 %v819, %v869
        %v886 = vadd.f32 %v820, %v870
        %v887 = vadd.f32 %v821, %v871
        %v888 = vadd.f32 %v822, %v872
        %v889 = vadd.f32 %v823, %v873
        %v890 = vadd.f32 %v824, %v874
        %v891 = vadd.f32 %v825, %v875
        %v892 = vadd.f32 %v826, %v876
        %v893 = vadd.f32 %v827, %v877
        %v894 = vadd.f32 %v828, %v878
        %v895 = vadd.f32 %v829, %v879
        %v896 = vadd.f32 %v830, %v880
        %v897 = vadd.f32 %v831, %v881
        %v898 = vadd.f32 %v832, %v882
        %v899 = vadd.f32 %v833, %v883
        %v900 = vadd.f32 %v834, %v884
        %v901 = vld [vmem:[%s863 + $0x1] sm:$0x1]
        %v902 = vlaneseq
        %v903 = vshrl.u32 %v902, 7
        %v904 = vsub.s32 0, %v903
        %v905 = vrot.slane %v901, %v904
        %v906 = vmul.f32 %v837, %v905
        %v907 = vmul.f32 %v838, %v905
        %v908 = vmul.f32 %v839, %v905
        %v909 = vmul.f32 %v840, %v905
        %v910 = vmul.f32 %v841, %v905
        %v911 = vmul.f32 %v842, %v905
        %v912 = vmul.f32 %v843, %v905
        %v913 = vmul.f32 %v844, %v905
        %v914 = vmul.f32 %v845, %v905
        %v915 = vmul.f32 %v846, %v905
        %v916 = vmul.f32 %v847, %v905
        %v917 = vmul.f32 %v848, %v905
        %v918 = vmul.f32 %v849, %v905
        %v919 = vmul.f32 %v850, %v905
        %v920 = vmul.f32 %v851, %v905
        %v921 = vmul.f32 %v852, %v905
        %v922 = vadd.f32 %v885, %v906
        %v923 = vadd.f32 %v886, %v907
        %v924 = vadd.f32 %v887, %v908
        %v925 = vadd.f32 %v888, %v909
        %v926 = vadd.f32 %v889, %v910
        %v927 = vadd.f32 %v890, %v911
        %v928 = vadd.f32 %v891, %v912
        %v929 = vadd.f32 %v892, %v913
        %v930 = vadd.f32 %v893, %v914
        %v931 = vadd.f32 %v894, %v915
        %v932 = vadd.f32 %v895, %v916
        %v933 = vadd.f32 %v896, %v917
        %v934 = vadd.f32 %v897, %v918
        %v935 = vadd.f32 %v898, %v919
        %v936 = vadd.f32 %v899, %v920
        %v937 = vadd.f32 %v900, %v921
        %v938 = vld [vmem:[%s863 + $0x2] sm:$0x1]
        %v939 = vlaneseq
        %v940 = vshrl.u32 %v939, 7
        %v941 = vsub.s32 0, %v940
        %v942 = vrot.slane %v938, %v941
        %v943 = vmul.f32 %v839, %v942
        %v944 = vmul.f32 %v840, %v942
        %v945 = vmul.f32 %v841, %v942
        %v946 = vmul.f32 %v842, %v942
        %v947 = vmul.f32 %v843, %v942
        %v948 = vmul.f32 %v844, %v942
        %v949 = vmul.f32 %v845, %v942
        %v950 = vmul.f32 %v846, %v942
        %v951 = vmul.f32 %v847, %v942
        %v952 = vmul.f32 %v848, %v942
        %v953 = vmul.f32 %v849, %v942
        %v954 = vmul.f32 %v850, %v942
        %v955 = vmul.f32 %v851, %v942
        %v956 = vmul.f32 %v852, %v942
        %v957 = vmul.f32 %v853, %v942
        %v958 = vmul.f32 %v854, %v942
        %v959 = vadd.f32 %v922, %v943
        %v960 = vadd.f32 %v923, %v944
        %v961 = vadd.f32 %v924, %v945
        %v962 = vadd.f32 %v925, %v946
        %v963 = vadd.f32 %v926, %v947
        %v964 = vadd.f32 %v927, %v948
        %v965 = vadd.f32 %v928, %v949
        %v966 = vadd.f32 %v929, %v950
        %v967 = vadd.f32 %v930, %v951
        %v968 = vadd.f32 %v931, %v952
        %v969 = vadd.f32 %v932, %v953
        %v970 = vadd.f32 %v933, %v954
        %v971 = vadd.f32 %v934, %v955
        %v972 = vadd.f32 %v935, %v956
        %v973 = vadd.f32 %v936, %v957
        %v974 = vadd.f32 %v937, %v958
        %v975 = vld [vmem:[%s863 + $0x3] sm:$0x1]
        %v976 = vlaneseq
        %v977 = vshrl.u32 %v976, 7
        %v978 = vsub.s32 0, %v977
        %v979 = vrot.slane %v975, %v978
        %v980 = vmul.f32 %v841, %v979
        %v981 = vmul.f32 %v842, %v979
        %v982 = vmul.f32 %v843, %v979
        %v983 = vmul.f32 %v844, %v979
        %v984 = vmul.f32 %v845, %v979
        %v985 = vmul.f32 %v846, %v979
        %v986 = vmul.f32 %v847, %v979
        %v987 = vmul.f32 %v848, %v979
        %v988 = vmul.f32 %v849, %v979
        %v989 = vmul.f32 %v850, %v979
        %v990 = vmul.f32 %v851, %v979
        %v991 = vmul.f32 %v852, %v979
        %v992 = vmul.f32 %v853, %v979
        %v993 = vmul.f32 %v854, %v979
        %v994 = vmul.f32 %v855, %v979
        %v995 = vmul.f32 %v856, %v979
        %v996 = vadd.f32 %v959, %v980
        %v997 = vadd.f32 %v960, %v981
        %v998 = vadd.f32 %v961, %v982
        %v999 = vadd.f32 %v962, %v983
        %v1000 = vadd.f32 %v963, %v984
        %v1001 = vadd.f32 %v964, %v985
        %v1002 = vadd.f32 %v965, %v986
        %v1003 = vadd.f32 %v966, %v987
        %v1004 = vadd.f32 %v967, %v988
        %v1005 = vadd.f32 %v968, %v989
        %v1006 = vadd.f32 %v969, %v990
        %v1007 = vadd.f32 %v970, %v991
        %v1008 = vadd.f32 %v971, %v992
        %v1009 = vadd.f32 %v972, %v993
        %v1010 = vadd.f32 %v973, %v994
        %v1011 = vadd.f32 %v974, %v995
        %v1012 = vld [vmem:[%s863 + $0x4] sm:$0x1]
        %v1013 = vlaneseq
        %v1014 = vshrl.u32 %v1013, 7
        %v1015 = vsub.s32 0, %v1014
        %v1016 = vrot.slane %v1012, %v1015
        %v1017 = vmul.f32 %v843, %v1016
        %v1018 = vmul.f32 %v844, %v1016
        %v1019 = vmul.f32 %v845, %v1016
        %v1020 = vmul.f32 %v846, %v1016
        %v1021 = vmul.f32 %v847, %v1016
        %v1022 = vmul.f32 %v848, %v1016
        %v1023 = vmul.f32 %v849, %v1016
        %v1024 = vmul.f32 %v850, %v1016
        %v1025 = vmul.f32 %v851, %v1016
        %v1026 = vmul.f32 %v852, %v1016
        %v1027 = vmul.f32 %v853, %v1016
        %v1028 = vmul.f32 %v854, %v1016
        %v1029 = vmul.f32 %v855, %v1016
        %v1030 = vmul.f32 %v856, %v1016
        %v1031 = vmul.f32 %v857, %v1016
        %v1032 = vmul.f32 %v858, %v1016
        %v1033 = vadd.f32 %v996, %v1017
        %v1034 = vadd.f32 %v997, %v1018
        %v1035 = vadd.f32 %v998, %v1019
        %v1036 = vadd.f32 %v999, %v1020
        %v1037 = vadd.f32 %v1000, %v1021
        %v1038 = vadd.f32 %v1001, %v1022
        %v1039 = vadd.f32 %v1002, %v1023
        %v1040 = vadd.f32 %v1003, %v1024
        %v1041 = vadd.f32 %v1004, %v1025
        %v1042 = vadd.f32 %v1005, %v1026
        %v1043 = vadd.f32 %v1006, %v1027
        %v1044 = vadd.f32 %v1007, %v1028
        %v1045 = vadd.f32 %v1008, %v1029
        %v1046 = vadd.f32 %v1009, %v1030
        %v1047 = vadd.f32 %v1010, %v1031
        %v1048 = vadd.f32 %v1011, %v1032
        %v1049 = vld [vmem:[%s863 + $0x5] sm:$0x1]
        %v1050 = vlaneseq
        %v1051 = vshrl.u32 %v1050, 7
        %v1052 = vsub.s32 0, %v1051
        %v1053 = vrot.slane %v1049, %v1052
        %v1054 = vmul.f32 %v845, %v1053
        %v1055 = vmul.f32 %v846, %v1053
        %v1056 = vmul.f32 %v847, %v1053
        %v1057 = vmul.f32 %v848, %v1053
        %v1058 = vmul.f32 %v849, %v1053
        %v1059 = vmul.f32 %v850, %v1053
        %v1060 = vmul.f32 %v851, %v1053
        %v1061 = vmul.f32 %v852, %v1053
        %v1062 = vmul.f32 %v853, %v1053
        %v1063 = vmul.f32 %v854, %v1053
        %v1064 = vmul.f32 %v855, %v1053
        %v1065 = vmul.f32 %v856, %v1053
        %v1066 = vmul.f32 %v857, %v1053
        %v1067 = vmul.f32 %v858, %v1053
        %v1068 = vmul.f32 %v859, %v1053
        %v1069 = vmul.f32 %v860, %v1053
        %v1070 = vadd.f32 %v1033, %v1054
        %v1071 = vadd.f32 %v1034, %v1055
        %v1072 = vadd.f32 %v1035, %v1056
        %v1073 = vadd.f32 %v1036, %v1057
        %v1074 = vadd.f32 %v1037, %v1058
        %v1075 = vadd.f32 %v1038, %v1059
        %v1076 = vadd.f32 %v1039, %v1060
        %v1077 = vadd.f32 %v1040, %v1061
        %v1078 = vadd.f32 %v1041, %v1062
        %v1079 = vadd.f32 %v1042, %v1063
        %v1080 = vadd.f32 %v1043, %v1064
        %v1081 = vadd.f32 %v1044, %v1065
        %v1082 = vadd.f32 %v1045, %v1066
        %v1083 = vadd.f32 %v1046, %v1067
        %v1084 = vadd.f32 %v1047, %v1068
        %v1085 = vadd.f32 %v1048, %v1069
        %v1086 = vld [vmem:[%s863 + $0x6] sm:$0x1]
        %v1087 = vlaneseq
        %v1088 = vshrl.u32 %v1087, 7
        %v1089 = vsub.s32 0, %v1088
        %v1090 = vrot.slane %v1086, %v1089
        %v1091 = vmul.f32 %v847, %v1090
        %v1092 = vmul.f32 %v848, %v1090
        %v1093 = vmul.f32 %v849, %v1090
        %v1094 = vmul.f32 %v850, %v1090
        %v1095 = vmul.f32 %v851, %v1090
        %v1096 = vmul.f32 %v852, %v1090
        %v1097 = vmul.f32 %v853, %v1090
        %v1098 = vmul.f32 %v854, %v1090
        %v1099 = vmul.f32 %v855, %v1090
        %v1100 = vmul.f32 %v856, %v1090
        %v1101 = vmul.f32 %v857, %v1090
        %v1102 = vmul.f32 %v858, %v1090
        %v1103 = vmul.f32 %v859, %v1090
        %v1104 = vmul.f32 %v860, %v1090
        %v1105 = vmul.f32 %v861, %v1090
        %v1106 = vmul.f32 %v862, %v1090
        %v1107 = vadd.f32 %v1070, %v1091
        %v1108 = vadd.f32 %v1071, %v1092
        %v1109 = vadd.f32 %v1072, %v1093
        %v1110 = vadd.f32 %v1073, %v1094
        %v1111 = vadd.f32 %v1074, %v1095
        %v1112 = vadd.f32 %v1075, %v1096
        %v1113 = vadd.f32 %v1076, %v1097
        %v1114 = vadd.f32 %v1077, %v1098
        %v1115 = vadd.f32 %v1078, %v1099
        %v1116 = vadd.f32 %v1079, %v1100
        %v1117 = vadd.f32 %v1080, %v1101
        %v1118 = vadd.f32 %v1081, %v1102
        %v1119 = vadd.f32 %v1082, %v1103
        %v1120 = vadd.f32 %v1083, %v1104
        %v1121 = vadd.f32 %v1084, %v1105
        %v1122 = vadd.f32 %v1085, %v1106
        %v1123 = vld [vmem:[%s365 + $0x2] sm:$0xff]
        %v1124 = vld [vmem:[%s365 + $0xa] sm:$0xff]
        %v1125 = vld [vmem:[%s365 + $0x1a] sm:$0xff]
        %v1126 = vld [vmem:[%s365 + $0x22] sm:$0xff]
        %v1127 = vld [vmem:[%s365 + $0x32] sm:$0xff]
        %v1128 = vld [vmem:[%s365 + $0x3a] sm:$0xff]
        %v1129 = vld [vmem:[%s365 + $0x4a] sm:$0xff]
        %v1130 = vld [vmem:[%s365 + $0x52] sm:$0xff]
        %v1131 = vld [vmem:[%s365 + $0x62] sm:$0xff]
        %v1132 = vld [vmem:[%s365 + $0x6a] sm:$0xff]
        %v1133 = vld [vmem:[%s365 + $0x7a] sm:$0xff]
        %v1134 = vld [vmem:[%s365 + $0x82] sm:$0xff]
        %v1135 = vld [vmem:[%s365 + $0x92] sm:$0xff]
        %v1136 = vld [vmem:[%s365 + $0x9a] sm:$0xff]
        %v1137 = vld [vmem:[%s365 + $0xaa] sm:$0xff]
        %v1138 = vld [vmem:[%s365 + $0xb2] sm:$0xff]
        %v1139 = vld [vmem:[%s365 + $0xc2] sm:$0xff]
        %v1140 = vld [vmem:[%s365 + $0xca] sm:$0xff]
        %v1141 = vld [vmem:[%s365 + $0xda] sm:$0xff]
        %v1142 = vld [vmem:[%s365 + $0xe2] sm:$0xff]
        %v1143 = vld [vmem:[%s365 + $0xf2] sm:$0xff]
        %v1144 = vld [vmem:[%s365 + $0xfa] sm:$0xff]
        %v1145 = vld [vmem:[%s365 + $0x10a] sm:$0xff]
        %v1146 = vld [vmem:[%s365 + $0x112] sm:$0xff]
        %v1147 = vld [vmem:[%s365 + $0x122] sm:$0xff]
        %v1148 = vld [vmem:[%s365 + $0x12a] sm:$0xff]
        %v1149 = vld [vmem:[%s365 + $0x13a] sm:$0xff]
        %v1150 = vld [vmem:[%s365 + $0x142] sm:$0xff]
        %s1151 = scalar_lea.vmem %s173, 16
        %v1152 = vld [vmem:[%s1151] sm:$0x1]
        %v1153 = vlaneseq
        %v1154 = vshrl.u32 %v1153, 7
        %v1155 = vsub.s32 0, %v1154
        %v1156 = vrot.slane %v1152, %v1155
        %v1157 = vmul.f32 %v1123, %v1156
        %v1158 = vmul.f32 %v1124, %v1156
        %v1159 = vmul.f32 %v1125, %v1156
        %v1160 = vmul.f32 %v1126, %v1156
        %v1161 = vmul.f32 %v1127, %v1156
        %v1162 = vmul.f32 %v1128, %v1156
        %v1163 = vmul.f32 %v1129, %v1156
        %v1164 = vmul.f32 %v1130, %v1156
        %v1165 = vmul.f32 %v1131, %v1156
        %v1166 = vmul.f32 %v1132, %v1156
        %v1167 = vmul.f32 %v1133, %v1156
        %v1168 = vmul.f32 %v1134, %v1156
        %v1169 = vmul.f32 %v1135, %v1156
        %v1170 = vmul.f32 %v1136, %v1156
        %v1171 = vmul.f32 %v1137, %v1156
        %v1172 = vmul.f32 %v1138, %v1156
        %v1173 = vadd.f32 %v1107, %v1157
        %v1174 = vadd.f32 %v1108, %v1158
        %v1175 = vadd.f32 %v1109, %v1159
        %v1176 = vadd.f32 %v1110, %v1160
        %v1177 = vadd.f32 %v1111, %v1161
        %v1178 = vadd.f32 %v1112, %v1162
        %v1179 = vadd.f32 %v1113, %v1163
        %v1180 = vadd.f32 %v1114, %v1164
        %v1181 = vadd.f32 %v1115, %v1165
        %v1182 = vadd.f32 %v1116, %v1166
        %v1183 = vadd.f32 %v1117, %v1167
        %v1184 = vadd.f32 %v1118, %v1168
        %v1185 = vadd.f32 %v1119, %v1169
        %v1186 = vadd.f32 %v1120, %v1170
        %v1187 = vadd.f32 %v1121, %v1171
        %v1188 = vadd.f32 %v1122, %v1172
        %v1189 = vld [vmem:[%s1151 + $0x1] sm:$0x1]
        %v1190 = vlaneseq
        %v1191 = vshrl.u32 %v1190, 7
        %v1192 = vsub.s32 0, %v1191
        %v1193 = vrot.slane %v1189, %v1192
        %v1194 = vmul.f32 %v1125, %v1193
        %v1195 = vmul.f32 %v1126, %v1193
        %v1196 = vmul.f32 %v1127, %v1193
        %v1197 = vmul.f32 %v1128, %v1193
        %v1198 = vmul.f32 %v1129, %v1193
        %v1199 = vmul.f32 %v1130, %v1193
        %v1200 = vmul.f32 %v1131, %v1193
        %v1201 = vmul.f32 %v1132, %v1193
        %v1202 = vmul.f32 %v1133, %v1193
        %v1203 = vmul.f32 %v1134, %v1193
        %v1204 = vmul.f32 %v1135, %v1193
        %v1205 = vmul.f32 %v1136, %v1193
        %v1206 = vmul.f32 %v1137, %v1193
        %v1207 = vmul.f32 %v1138, %v1193
        %v1208 = vmul.f32 %v1139, %v1193
        %v1209 = vmul.f32 %v1140, %v1193
        %v1210 = vadd.f32 %v1173, %v1194
        %v1211 = vadd.f32 %v1174, %v1195
        %v1212 = vadd.f32 %v1175, %v1196
        %v1213 = vadd.f32 %v1176, %v1197
        %v1214 = vadd.f32 %v1177, %v1198
        %v1215 = vadd.f32 %v1178, %v1199
        %v1216 = vadd.f32 %v1179, %v1200
        %v1217 = vadd.f32 %v1180, %v1201
        %v1218 = vadd.f32 %v1181, %v1202
        %v1219 = vadd.f32 %v1182, %v1203
        %v1220 = vadd.f32 %v1183, %v1204
        %v1221 = vadd.f32 %v1184, %v1205
        %v1222 = vadd.f32 %v1185, %v1206
        %v1223 = vadd.f32 %v1186, %v1207
        %v1224 = vadd.f32 %v1187, %v1208
        %v1225 = vadd.f32 %v1188, %v1209
        %v1226 = vld [vmem:[%s1151 + $0x2] sm:$0x1]
        %v1227 = vlaneseq
        %v1228 = vshrl.u32 %v1227, 7
        %v1229 = vsub.s32 0, %v1228
        %v1230 = vrot.slane %v1226, %v1229
        %v1231 = vmul.f32 %v1127, %v1230
        %v1232 = vmul.f32 %v1128, %v1230
        %v1233 = vmul.f32 %v1129, %v1230
        %v1234 = vmul.f32 %v1130, %v1230
        %v1235 = vmul.f32 %v1131, %v1230
        %v1236 = vmul.f32 %v1132, %v1230
        %v1237 = vmul.f32 %v1133, %v1230
        %v1238 = vmul.f32 %v1134, %v1230
        %v1239 = vmul.f32 %v1135, %v1230
        %v1240 = vmul.f32 %v1136, %v1230
        %v1241 = vmul.f32 %v1137, %v1230
        %v1242 = vmul.f32 %v1138, %v1230
        %v1243 = vmul.f32 %v1139, %v1230
        %v1244 = vmul.f32 %v1140, %v1230
        %v1245 = vmul.f32 %v1141, %v1230
        %v1246 = vmul.f32 %v1142, %v1230
        %v1247 = vadd.f32 %v1210, %v1231
        %v1248 = vadd.f32 %v1211, %v1232
        %v1249 = vadd.f32 %v1212, %v1233
        %v1250 = vadd.f32 %v1213, %v1234
        %v1251 = vadd.f32 %v1214, %v1235
        %v1252 = vadd.f32 %v1215, %v1236
        %v1253 = vadd.f32 %v1216, %v1237
        %v1254 = vadd.f32 %v1217, %v1238
        %v1255 = vadd.f32 %v1218, %v1239
        %v1256 = vadd.f32 %v1219, %v1240
        %v1257 = vadd.f32 %v1220, %v1241
        %v1258 = vadd.f32 %v1221, %v1242
        %v1259 = vadd.f32 %v1222, %v1243
        %v1260 = vadd.f32 %v1223, %v1244
        %v1261 = vadd.f32 %v1224, %v1245
        %v1262 = vadd.f32 %v1225, %v1246
        %v1263 = vld [vmem:[%s1151 + $0x3] sm:$0x1]
        %v1264 = vlaneseq
        %v1265 = vshrl.u32 %v1264, 7
        %v1266 = vsub.s32 0, %v1265
        %v1267 = vrot.slane %v1263, %v1266
        %v1268 = vmul.f32 %v1129, %v1267
        %v1269 = vmul.f32 %v1130, %v1267
        %v1270 = vmul.f32 %v1131, %v1267
        %v1271 = vmul.f32 %v1132, %v1267
        %v1272 = vmul.f32 %v1133, %v1267
        %v1273 = vmul.f32 %v1134, %v1267
        %v1274 = vmul.f32 %v1135, %v1267
        %v1275 = vmul.f32 %v1136, %v1267
        %v1276 = vmul.f32 %v1137, %v1267
        %v1277 = vmul.f32 %v1138, %v1267
        %v1278 = vmul.f32 %v1139, %v1267
        %v1279 = vmul.f32 %v1140, %v1267
        %v1280 = vmul.f32 %v1141, %v1267
        %v1281 = vmul.f32 %v1142, %v1267
        %v1282 = vmul.f32 %v1143, %v1267
        %v1283 = vmul.f32 %v1144, %v1267
        %v1284 = vadd.f32 %v1247, %v1268
        %v1285 = vadd.f32 %v1248, %v1269
        %v1286 = vadd.f32 %v1249, %v1270
        %v1287 = vadd.f32 %v1250, %v1271
        %v1288 = vadd.f32 %v1251, %v1272
        %v1289 = vadd.f32 %v1252, %v1273
        %v1290 = vadd.f32 %v1253, %v1274
        %v1291 = vadd.f32 %v1254, %v1275
        %v1292 = vadd.f32 %v1255, %v1276
        %v1293 = vadd.f32 %v1256, %v1277
        %v1294 = vadd.f32 %v1257, %v1278
        %v1295 = vadd.f32 %v1258, %v1279
        %v1296 = vadd.f32 %v1259, %v1280
        %v1297 = vadd.f32 %v1260, %v1281
        %v1298 = vadd.f32 %v1261, %v1282
        %v1299 = vadd.f32 %v1262, %v1283
        %v1300 = vld [vmem:[%s1151 + $0x4] sm:$0x1]
        %v1301 = vlaneseq
        %v1302 = vshrl.u32 %v1301, 7
        %v1303 = vsub.s32 0, %v1302
        %v1304 = vrot.slane %v1300, %v1303
        %v1305 = vmul.f32 %v1131, %v1304
        %v1306 = vmul.f32 %v1132, %v1304
        %v1307 = vmul.f32 %v1133, %v1304
        %v1308 = vmul.f32 %v1134, %v1304
        %v1309 = vmul.f32 %v1135, %v1304
        %v1310 = vmul.f32 %v1136, %v1304
        %v1311 = vmul.f32 %v1137, %v1304
        %v1312 = vmul.f32 %v1138, %v1304
        %v1313 = vmul.f32 %v1139, %v1304
        %v1314 = vmul.f32 %v1140, %v1304
        %v1315 = vmul.f32 %v1141, %v1304
        %v1316 = vmul.f32 %v1142, %v1304
        %v1317 = vmul.f32 %v1143, %v1304
        %v1318 = vmul.f32 %v1144, %v1304
        %v1319 = vmul.f32 %v1145, %v1304
        %v1320 = vmul.f32 %v1146, %v1304
        %v1321 = vadd.f32 %v1284, %v1305
        %v1322 = vadd.f32 %v1285, %v1306
        %v1323 = vadd.f32 %v1286, %v1307
        %v1324 = vadd.f32 %v1287, %v1308
        %v1325 = vadd.f32 %v1288, %v1309
        %v1326 = vadd.f32 %v1289, %v1310
        %v1327 = vadd.f32 %v1290, %v1311
        %v1328 = vadd.f32 %v1291, %v1312
        %v1329 = vadd.f32 %v1292, %v1313
        %v1330 = vadd.f32 %v1293, %v1314
        %v1331 = vadd.f32 %v1294, %v1315
        %v1332 = vadd.f32 %v1295, %v1316
        %v1333 = vadd.f32 %v1296, %v1317
        %v1334 = vadd.f32 %v1297, %v1318
        %v1335 = vadd.f32 %v1298, %v1319
        %v1336 = vadd.f32 %v1299, %v1320
        %v1337 = vld [vmem:[%s1151 + $0x5] sm:$0x1]
        %v1338 = vlaneseq
        %v1339 = vshrl.u32 %v1338, 7
        %v1340 = vsub.s32 0, %v1339
        %v1341 = vrot.slane %v1337, %v1340
        %v1342 = vmul.f32 %v1133, %v1341
        %v1343 = vmul.f32 %v1134, %v1341
        %v1344 = vmul.f32 %v1135, %v1341
        %v1345 = vmul.f32 %v1136, %v1341
        %v1346 = vmul.f32 %v1137, %v1341
        %v1347 = vmul.f32 %v1138, %v1341
        %v1348 = vmul.f32 %v1139, %v1341
        %v1349 = vmul.f32 %v1140, %v1341
        %v1350 = vmul.f32 %v1141, %v1341
        %v1351 = vmul.f32 %v1142, %v1341
        %v1352 = vmul.f32 %v1143, %v1341
        %v1353 = vmul.f32 %v1144, %v1341
        %v1354 = vmul.f32 %v1145, %v1341
        %v1355 = vmul.f32 %v1146, %v1341
        %v1356 = vmul.f32 %v1147, %v1341
        %v1357 = vmul.f32 %v1148, %v1341
        %v1358 = vadd.f32 %v1321, %v1342
        %v1359 = vadd.f32 %v1322, %v1343
        %v1360 = vadd.f32 %v1323, %v1344
        %v1361 = vadd.f32 %v1324, %v1345
        %v1362 = vadd.f32 %v1325, %v1346
        %v1363 = vadd.f32 %v1326, %v1347
        %v1364 = vadd.f32 %v1327, %v1348
        %v1365 = vadd.f32 %v1328, %v1349
        %v1366 = vadd.f32 %v1329, %v1350
        %v1367 = vadd.f32 %v1330, %v1351
        %v1368 = vadd.f32 %v1331, %v1352
        %v1369 = vadd.f32 %v1332, %v1353
        %v1370 = vadd.f32 %v1333, %v1354
        %v1371 = vadd.f32 %v1334, %v1355
        %v1372 = vadd.f32 %v1335, %v1356
        %v1373 = vadd.f32 %v1336, %v1357
        %v1374 = vld [vmem:[%s1151 + $0x6] sm:$0x1]
        %v1375 = vlaneseq
        %v1376 = vshrl.u32 %v1375, 7
        %v1377 = vsub.s32 0, %v1376
        %v1378 = vrot.slane %v1374, %v1377
        %v1379 = vmul.f32 %v1135, %v1378
        %v1380 = vmul.f32 %v1136, %v1378
        %v1381 = vmul.f32 %v1137, %v1378
        %v1382 = vmul.f32 %v1138, %v1378
        %v1383 = vmul.f32 %v1139, %v1378
        %v1384 = vmul.f32 %v1140, %v1378
        %v1385 = vmul.f32 %v1141, %v1378
        %v1386 = vmul.f32 %v1142, %v1378
        %v1387 = vmul.f32 %v1143, %v1378
        %v1388 = vmul.f32 %v1144, %v1378
        %v1389 = vmul.f32 %v1145, %v1378
        %v1390 = vmul.f32 %v1146, %v1378
        %v1391 = vmul.f32 %v1147, %v1378
        %v1392 = vmul.f32 %v1148, %v1378
        %v1393 = vmul.f32 %v1149, %v1378
        %v1394 = vmul.f32 %v1150, %v1378
        %v1395 = vadd.f32 %v1358, %v1379
        %v1396 = vadd.f32 %v1359, %v1380
        %v1397 = vadd.f32 %v1360, %v1381
        %v1398 = vadd.f32 %v1361, %v1382
        %v1399 = vadd.f32 %v1362, %v1383
        %v1400 = vadd.f32 %v1363, %v1384
        %v1401 = vadd.f32 %v1364, %v1385
        %v1402 = vadd.f32 %v1365, %v1386
        %v1403 = vadd.f32 %v1366, %v1387
        %v1404 = vadd.f32 %v1367, %v1388
        %v1405 = vadd.f32 %v1368, %v1389
        %v1406 = vadd.f32 %v1369, %v1390
        %v1407 = vadd.f32 %v1370, %v1391
        %v1408 = vadd.f32 %v1371, %v1392
        %v1409 = vadd.f32 %v1372, %v1393
        %v1410 = vadd.f32 %v1373, %v1394
        %v1411 = vld [vmem:[%s365 + $0x3] sm:$0xff]
        %v1412 = vld [vmem:[%s365 + $0xb] sm:$0xff]
        %v1413 = vld [vmem:[%s365 + $0x1b] sm:$0xff]
        %v1414 = vld [vmem:[%s365 + $0x23] sm:$0xff]
        %v1415 = vld [vmem:[%s365 + $0x33] sm:$0xff]
        %v1416 = vld [vmem:[%s365 + $0x3b] sm:$0xff]
        %v1417 = vld [vmem:[%s365 + $0x4b] sm:$0xff]
        %v1418 = vld [vmem:[%s365 + $0x53] sm:$0xff]
        %v1419 = vld [vmem:[%s365 + $0x63] sm:$0xff]
        %v1420 = vld [vmem:[%s365 + $0x6b] sm:$0xff]
        %v1421 = vld [vmem:[%s365 + $0x7b] sm:$0xff]
        %v1422 = vld [vmem:[%s365 + $0x83] sm:$0xff]
        %v1423 = vld [vmem:[%s365 + $0x93] sm:$0xff]
        %v1424 = vld [vmem:[%s365 + $0x9b] sm:$0xff]
        %v1425 = vld [vmem:[%s365 + $0xab] sm:$0xff]
        %v1426 = vld [vmem:[%s365 + $0xb3] sm:$0xff]
        %v1427 = vld [vmem:[%s365 + $0xc3] sm:$0xff]
        %v1428 = vld [vmem:[%s365 + $0xcb] sm:$0xff]
        %v1429 = vld [vmem:[%s365 + $0xdb] sm:$0xff]
        %v1430 = vld [vmem:[%s365 + $0xe3] sm:$0xff]
        %v1431 = vld [vmem:[%s365 + $0xf3] sm:$0xff]
        %v1432 = vld [vmem:[%s365 + $0xfb] sm:$0xff]
        %v1433 = vld [vmem:[%s365 + $0x10b] sm:$0xff]
        %v1434 = vld [vmem:[%s365 + $0x113] sm:$0xff]
        %v1435 = vld [vmem:[%s365 + $0x123] sm:$0xff]
        %v1436 = vld [vmem:[%s365 + $0x12b] sm:$0xff]
        %v1437 = vld [vmem:[%s365 + $0x13b] sm:$0xff]
        %v1438 = vld [vmem:[%s365 + $0x143] sm:$0xff]
        %s1439 = scalar_lea.vmem %s173, 24
        %v1440 = vld [vmem:[%s1439] sm:$0x1]
        %v1441 = vlaneseq
        %v1442 = vshrl.u32 %v1441, 7
        %v1443 = vsub.s32 0, %v1442
        %v1444 = vrot.slane %v1440, %v1443
        %v1445 = vmul.f32 %v1411, %v1444
        %v1446 = vmul.f32 %v1412, %v1444
        %v1447 = vmul.f32 %v1413, %v1444
        %v1448 = vmul.f32 %v1414, %v1444
        %v1449 = vmul.f32 %v1415, %v1444
        %v1450 = vmul.f32 %v1416, %v1444
        %v1451 = vmul.f32 %v1417, %v1444
        %v1452 = vmul.f32 %v1418, %v1444
        %v1453 = vmul.f32 %v1419, %v1444
        %v1454 = vmul.f32 %v1420, %v1444
        %v1455 = vmul.f32 %v1421, %v1444
        %v1456 = vmul.f32 %v1422, %v1444
        %v1457 = vmul.f32 %v1423, %v1444
        %v1458 = vmul.f32 %v1424, %v1444
        %v1459 = vmul.f32 %v1425, %v1444
        %v1460 = vmul.f32 %v1426, %v1444
        %v1461 = vadd.f32 %v1395, %v1445
        %v1462 = vadd.f32 %v1396, %v1446
        %v1463 = vadd.f32 %v1397, %v1447
        %v1464 = vadd.f32 %v1398, %v1448
        %v1465 = vadd.f32 %v1399, %v1449
        %v1466 = vadd.f32 %v1400, %v1450
        %v1467 = vadd.f32 %v1401, %v1451
        %v1468 = vadd.f32 %v1402, %v1452
        %v1469 = vadd.f32 %v1403, %v1453
        %v1470 = vadd.f32 %v1404, %v1454
        %v1471 = vadd.f32 %v1405, %v1455
        %v1472 = vadd.f32 %v1406, %v1456
        %v1473 = vadd.f32 %v1407, %v1457
        %v1474 = vadd.f32 %v1408, %v1458
        %v1475 = vadd.f32 %v1409, %v1459
        %v1476 = vadd.f32 %v1410, %v1460
        %v1477 = vld [vmem:[%s1439 + $0x1] sm:$0x1]
        %v1478 = vlaneseq
        %v1479 = vshrl.u32 %v1478, 7
        %v1480 = vsub.s32 0, %v1479
        %v1481 = vrot.slane %v1477, %v1480
        %v1482 = vmul.f32 %v1413, %v1481
        %v1483 = vmul.f32 %v1414, %v1481
        %v1484 = vmul.f32 %v1415, %v1481
        %v1485 = vmul.f32 %v1416, %v1481
        %v1486 = vmul.f32 %v1417, %v1481
        %v1487 = vmul.f32 %v1418, %v1481
        %v1488 = vmul.f32 %v1419, %v1481
        %v1489 = vmul.f32 %v1420, %v1481
        %v1490 = vmul.f32 %v1421, %v1481
        %v1491 = vmul.f32 %v1422, %v1481
        %v1492 = vmul.f32 %v1423, %v1481
        %v1493 = vmul.f32 %v1424, %v1481
        %v1494 = vmul.f32 %v1425, %v1481
        %v1495 = vmul.f32 %v1426, %v1481
        %v1496 = vmul.f32 %v1427, %v1481
        %v1497 = vmul.f32 %v1428, %v1481
        %v1498 = vadd.f32 %v1461, %v1482
        %v1499 = vadd.f32 %v1462, %v1483
        %v1500 = vadd.f32 %v1463, %v1484
        %v1501 = vadd.f32 %v1464, %v1485
        %v1502 = vadd.f32 %v1465, %v1486
        %v1503 = vadd.f32 %v1466, %v1487
        %v1504 = vadd.f32 %v1467, %v1488
        %v1505 = vadd.f32 %v1468, %v1489
        %v1506 = vadd.f32 %v1469, %v1490
        %v1507 = vadd.f32 %v1470, %v1491
        %v1508 = vadd.f32 %v1471, %v1492
        %v1509 = vadd.f32 %v1472, %v1493
        %v1510 = vadd.f32 %v1473, %v1494
        %v1511 = vadd.f32 %v1474, %v1495
        %v1512 = vadd.f32 %v1475, %v1496
        %v1513 = vadd.f32 %v1476, %v1497
        %v1514 = vld [vmem:[%s1439 + $0x2] sm:$0x1]
        %v1515 = vlaneseq
        %v1516 = vshrl.u32 %v1515, 7
        %v1517 = vsub.s32 0, %v1516
        %v1518 = vrot.slane %v1514, %v1517
        %v1519 = vmul.f32 %v1415, %v1518
        %v1520 = vmul.f32 %v1416, %v1518
        %v1521 = vmul.f32 %v1417, %v1518
        %v1522 = vmul.f32 %v1418, %v1518
        %v1523 = vmul.f32 %v1419, %v1518
        %v1524 = vmul.f32 %v1420, %v1518
        %v1525 = vmul.f32 %v1421, %v1518
        %v1526 = vmul.f32 %v1422, %v1518
        %v1527 = vmul.f32 %v1423, %v1518
        %v1528 = vmul.f32 %v1424, %v1518
        %v1529 = vmul.f32 %v1425, %v1518
        %v1530 = vmul.f32 %v1426, %v1518
        %v1531 = vmul.f32 %v1427, %v1518
        %v1532 = vmul.f32 %v1428, %v1518
        %v1533 = vmul.f32 %v1429, %v1518
        %v1534 = vmul.f32 %v1430, %v1518
        %v1535 = vadd.f32 %v1498, %v1519
        %v1536 = vadd.f32 %v1499, %v1520
        %v1537 = vadd.f32 %v1500, %v1521
        %v1538 = vadd.f32 %v1501, %v1522
        %v1539 = vadd.f32 %v1502, %v1523
        %v1540 = vadd.f32 %v1503, %v1524
        %v1541 = vadd.f32 %v1504, %v1525
        %v1542 = vadd.f32 %v1505, %v1526
        %v1543 = vadd.f32 %v1506, %v1527
        %v1544 = vadd.f32 %v1507, %v1528
        %v1545 = vadd.f32 %v1508, %v1529
        %v1546 = vadd.f32 %v1509, %v1530
        %v1547 = vadd.f32 %v1510, %v1531
        %v1548 = vadd.f32 %v1511, %v1532
        %v1549 = vadd.f32 %v1512, %v1533
        %v1550 = vadd.f32 %v1513, %v1534
        %v1551 = vld [vmem:[%s1439 + $0x3] sm:$0x1]
        %v1552 = vlaneseq
        %v1553 = vshrl.u32 %v1552, 7
        %v1554 = vsub.s32 0, %v1553
        %v1555 = vrot.slane %v1551, %v1554
        %v1556 = vmul.f32 %v1417, %v1555
        %v1557 = vmul.f32 %v1418, %v1555
        %v1558 = vmul.f32 %v1419, %v1555
        %v1559 = vmul.f32 %v1420, %v1555
        %v1560 = vmul.f32 %v1421, %v1555
        %v1561 = vmul.f32 %v1422, %v1555
        %v1562 = vmul.f32 %v1423, %v1555
        %v1563 = vmul.f32 %v1424, %v1555
        %v1564 = vmul.f32 %v1425, %v1555
        %v1565 = vmul.f32 %v1426, %v1555
        %v1566 = vmul.f32 %v1427, %v1555
        %v1567 = vmul.f32 %v1428, %v1555
        %v1568 = vmul.f32 %v1429, %v1555
        %v1569 = vmul.f32 %v1430, %v1555
        %v1570 = vmul.f32 %v1431, %v1555
        %v1571 = vmul.f32 %v1432, %v1555
        %v1572 = vadd.f32 %v1535, %v1556
        %v1573 = vadd.f32 %v1536, %v1557
        %v1574 = vadd.f32 %v1537, %v1558
        %v1575 = vadd.f32 %v1538, %v1559
        %v1576 = vadd.f32 %v1539, %v1560
        %v1577 = vadd.f32 %v1540, %v1561
        %v1578 = vadd.f32 %v1541, %v1562
        %v1579 = vadd.f32 %v1542, %v1563
        %v1580 = vadd.f32 %v1543, %v1564
        %v1581 = vadd.f32 %v1544, %v1565
        %v1582 = vadd.f32 %v1545, %v1566
        %v1583 = vadd.f32 %v1546, %v1567
        %v1584 = vadd.f32 %v1547, %v1568
        %v1585 = vadd.f32 %v1548, %v1569
        %v1586 = vadd.f32 %v1549, %v1570
        %v1587 = vadd.f32 %v1550, %v1571
        %v1588 = vld [vmem:[%s1439 + $0x4] sm:$0x1]
        %v1589 = vlaneseq
        %v1590 = vshrl.u32 %v1589, 7
        %v1591 = vsub.s32 0, %v1590
        %v1592 = vrot.slane %v1588, %v1591
        %v1593 = vmul.f32 %v1419, %v1592
        %v1594 = vmul.f32 %v1420, %v1592
        %v1595 = vmul.f32 %v1421, %v1592
        %v1596 = vmul.f32 %v1422, %v1592
        %v1597 = vmul.f32 %v1423, %v1592
        %v1598 = vmul.f32 %v1424, %v1592
        %v1599 = vmul.f32 %v1425, %v1592
        %v1600 = vmul.f32 %v1426, %v1592
        %v1601 = vmul.f32 %v1427, %v1592
        %v1602 = vmul.f32 %v1428, %v1592
        %v1603 = vmul.f32 %v1429, %v1592
        %v1604 = vmul.f32 %v1430, %v1592
        %v1605 = vmul.f32 %v1431, %v1592
        %v1606 = vmul.f32 %v1432, %v1592
        %v1607 = vmul.f32 %v1433, %v1592
        %v1608 = vmul.f32 %v1434, %v1592
        %v1609 = vadd.f32 %v1572, %v1593
        %v1610 = vadd.f32 %v1573, %v1594
        %v1611 = vadd.f32 %v1574, %v1595
        %v1612 = vadd.f32 %v1575, %v1596
        %v1613 = vadd.f32 %v1576, %v1597
        %v1614 = vadd.f32 %v1577, %v1598
        %v1615 = vadd.f32 %v1578, %v1599
        %v1616 = vadd.f32 %v1579, %v1600
        %v1617 = vadd.f32 %v1580, %v1601
        %v1618 = vadd.f32 %v1581, %v1602
        %v1619 = vadd.f32 %v1582, %v1603
        %v1620 = vadd.f32 %v1583, %v1604
        %v1621 = vadd.f32 %v1584, %v1605
        %v1622 = vadd.f32 %v1585, %v1606
        %v1623 = vadd.f32 %v1586, %v1607
        %v1624 = vadd.f32 %v1587, %v1608
        %v1625 = vld [vmem:[%s1439 + $0x5] sm:$0x1]
        %v1626 = vlaneseq
        %v1627 = vshrl.u32 %v1626, 7
        %v1628 = vsub.s32 0, %v1627
        %v1629 = vrot.slane %v1625, %v1628
        %v1630 = vmul.f32 %v1421, %v1629
        %v1631 = vmul.f32 %v1422, %v1629
        %v1632 = vmul.f32 %v1423, %v1629
        %v1633 = vmul.f32 %v1424, %v1629
        %v1634 = vmul.f32 %v1425, %v1629
        %v1635 = vmul.f32 %v1426, %v1629
        %v1636 = vmul.f32 %v1427, %v1629
        %v1637 = vmul.f32 %v1428, %v1629
        %v1638 = vmul.f32 %v1429, %v1629
        %v1639 = vmul.f32 %v1430, %v1629
        %v1640 = vmul.f32 %v1431, %v1629
        %v1641 = vmul.f32 %v1432, %v1629
        %v1642 = vmul.f32 %v1433, %v1629
        %v1643 = vmul.f32 %v1434, %v1629
        %v1644 = vmul.f32 %v1435, %v1629
        %v1645 = vmul.f32 %v1436, %v1629
        %v1646 = vadd.f32 %v1609, %v1630
        %v1647 = vadd.f32 %v1610, %v1631
        %v1648 = vadd.f32 %v1611, %v1632
        %v1649 = vadd.f32 %v1612, %v1633
        %v1650 = vadd.f32 %v1613, %v1634
        %v1651 = vadd.f32 %v1614, %v1635
        %v1652 = vadd.f32 %v1615, %v1636
        %v1653 = vadd.f32 %v1616, %v1637
        %v1654 = vadd.f32 %v1617, %v1638
        %v1655 = vadd.f32 %v1618, %v1639
        %v1656 = vadd.f32 %v1619, %v1640
        %v1657 = vadd.f32 %v1620, %v1641
        %v1658 = vadd.f32 %v1621, %v1642
        %v1659 = vadd.f32 %v1622, %v1643
        %v1660 = vadd.f32 %v1623, %v1644
        %v1661 = vadd.f32 %v1624, %v1645
        %v1662 = vld [vmem:[%s1439 + $0x6] sm:$0x1]
        %v1663 = vlaneseq
        %v1664 = vshrl.u32 %v1663, 7
        %v1665 = vsub.s32 0, %v1664
        %v1666 = vrot.slane %v1662, %v1665
        %v1667 = vmul.f32 %v1423, %v1666
        %v1668 = vmul.f32 %v1424, %v1666
        %v1669 = vmul.f32 %v1425, %v1666
        %v1670 = vmul.f32 %v1426, %v1666
        %v1671 = vmul.f32 %v1427, %v1666
        %v1672 = vmul.f32 %v1428, %v1666
        %v1673 = vmul.f32 %v1429, %v1666
        %v1674 = vmul.f32 %v1430, %v1666
        %v1675 = vmul.f32 %v1431, %v1666
        %v1676 = vmul.f32 %v1432, %v1666
        %v1677 = vmul.f32 %v1433, %v1666
        %v1678 = vmul.f32 %v1434, %v1666
        %v1679 = vmul.f32 %v1435, %v1666
        %v1680 = vmul.f32 %v1436, %v1666
        %v1681 = vmul.f32 %v1437, %v1666
        %v1682 = vmul.f32 %v1438, %v1666
        %v1683 = vadd.f32 %v1646, %v1667
        %v1684 = vadd.f32 %v1647, %v1668
        %v1685 = vadd.f32 %v1648, %v1669
        %v1686 = vadd.f32 %v1649, %v1670
        %v1687 = vadd.f32 %v1650, %v1671
        %v1688 = vadd.f32 %v1651, %v1672
        %v1689 = vadd.f32 %v1652, %v1673
        %v1690 = vadd.f32 %v1653, %v1674
        %v1691 = vadd.f32 %v1654, %v1675
        %v1692 = vadd.f32 %v1655, %v1676
        %v1693 = vadd.f32 %v1656, %v1677
        %v1694 = vadd.f32 %v1657, %v1678
        %v1695 = vadd.f32 %v1658, %v1679
        %v1696 = vadd.f32 %v1659, %v1680
        %v1697 = vadd.f32 %v1660, %v1681
        %v1698 = vadd.f32 %v1661, %v1682
        %v1699 = vld [vmem:[%s365 + $0x4] sm:$0xff]
        %v1700 = vld [vmem:[%s365 + $0xc] sm:$0xff]
        %v1701 = vld [vmem:[%s365 + $0x1c] sm:$0xff]
        %v1702 = vld [vmem:[%s365 + $0x24] sm:$0xff]
        %v1703 = vld [vmem:[%s365 + $0x34] sm:$0xff]
        %v1704 = vld [vmem:[%s365 + $0x3c] sm:$0xff]
        %v1705 = vld [vmem:[%s365 + $0x4c] sm:$0xff]
        %v1706 = vld [vmem:[%s365 + $0x54] sm:$0xff]
        %v1707 = vld [vmem:[%s365 + $0x64] sm:$0xff]
        %v1708 = vld [vmem:[%s365 + $0x6c] sm:$0xff]
        %v1709 = vld [vmem:[%s365 + $0x7c] sm:$0xff]
        %v1710 = vld [vmem:[%s365 + $0x84] sm:$0xff]
        %v1711 = vld [vmem:[%s365 + $0x94] sm:$0xff]
        %v1712 = vld [vmem:[%s365 + $0x9c] sm:$0xff]
        %v1713 = vld [vmem:[%s365 + $0xac] sm:$0xff]
        %v1714 = vld [vmem:[%s365 + $0xb4] sm:$0xff]
        %v1715 = vld [vmem:[%s365 + $0xc4] sm:$0xff]
        %v1716 = vld [vmem:[%s365 + $0xcc] sm:$0xff]
        %v1717 = vld [vmem:[%s365 + $0xdc] sm:$0xff]
        %v1718 = vld [vmem:[%s365 + $0xe4] sm:$0xff]
        %v1719 = vld [vmem:[%s365 + $0xf4] sm:$0xff]
        %v1720 = vld [vmem:[%s365 + $0xfc] sm:$0xff]
        %v1721 = vld [vmem:[%s365 + $0x10c] sm:$0xff]
        %v1722 = vld [vmem:[%s365 + $0x114] sm:$0xff]
        %v1723 = vld [vmem:[%s365 + $0x124] sm:$0xff]
        %v1724 = vld [vmem:[%s365 + $0x12c] sm:$0xff]
        %v1725 = vld [vmem:[%s365 + $0x13c] sm:$0xff]
        %v1726 = vld [vmem:[%s365 + $0x144] sm:$0xff]
        %s1727 = scalar_lea.vmem %s173, 32
        %v1728 = vld [vmem:[%s1727] sm:$0x1]
        %v1729 = vlaneseq
        %v1730 = vshrl.u32 %v1729, 7
        %v1731 = vsub.s32 0, %v1730
        %v1732 = vrot.slane %v1728, %v1731
        %v1733 = vmul.f32 %v1699, %v1732
        %v1734 = vmul.f32 %v1700, %v1732
        %v1735 = vmul.f32 %v1701, %v1732
        %v1736 = vmul.f32 %v1702, %v1732
        %v1737 = vmul.f32 %v1703, %v1732
        %v1738 = vmul.f32 %v1704, %v1732
        %v1739 = vmul.f32 %v1705, %v1732
        %v1740 = vmul.f32 %v1706, %v1732
        %v1741 = vmul.f32 %v1707, %v1732
        %v1742 = vmul.f32 %v1708, %v1732
        %v1743 = vmul.f32 %v1709, %v1732
        %v1744 = vmul.f32 %v1710, %v1732
        %v1745 = vmul.f32 %v1711, %v1732
        %v1746 = vmul.f32 %v1712, %v1732
        %v1747 = vmul.f32 %v1713, %v1732
        %v1748 = vmul.f32 %v1714, %v1732
        %v1749 = vadd.f32 %v1683, %v1733
        %v1750 = vadd.f32 %v1684, %v1734
        %v1751 = vadd.f32 %v1685, %v1735
        %v1752 = vadd.f32 %v1686, %v1736
        %v1753 = vadd.f32 %v1687, %v1737
        %v1754 = vadd.f32 %v1688, %v1738
        %v1755 = vadd.f32 %v1689, %v1739
        %v1756 = vadd.f32 %v1690, %v1740
        %v1757 = vadd.f32 %v1691, %v1741
        %v1758 = vadd.f32 %v1692, %v1742
        %v1759 = vadd.f32 %v1693, %v1743
        %v1760 = vadd.f32 %v1694, %v1744
        %v1761 = vadd.f32 %v1695, %v1745
        %v1762 = vadd.f32 %v1696, %v1746
        %v1763 = vadd.f32 %v1697, %v1747
        %v1764 = vadd.f32 %v1698, %v1748
        %v1765 = vld [vmem:[%s1727 + $0x1] sm:$0x1]
        %v1766 = vlaneseq
        %v1767 = vshrl.u32 %v1766, 7
        %v1768 = vsub.s32 0, %v1767
        %v1769 = vrot.slane %v1765, %v1768
        %v1770 = vmul.f32 %v1701, %v1769
        %v1771 = vmul.f32 %v1702, %v1769
        %v1772 = vmul.f32 %v1703, %v1769
        %v1773 = vmul.f32 %v1704, %v1769
        %v1774 = vmul.f32 %v1705, %v1769
        %v1775 = vmul.f32 %v1706, %v1769
        %v1776 = vmul.f32 %v1707, %v1769
        %v1777 = vmul.f32 %v1708, %v1769
        %v1778 = vmul.f32 %v1709, %v1769
        %v1779 = vmul.f32 %v1710, %v1769
        %v1780 = vmul.f32 %v1711, %v1769
        %v1781 = vmul.f32 %v1712, %v1769
        %v1782 = vmul.f32 %v1713, %v1769
        %v1783 = vmul.f32 %v1714, %v1769
        %v1784 = vmul.f32 %v1715, %v1769
        %v1785 = vmul.f32 %v1716, %v1769
        %v1786 = vadd.f32 %v1749, %v1770
        %v1787 = vadd.f32 %v1750, %v1771
        %v1788 = vadd.f32 %v1751, %v1772
        %v1789 = vadd.f32 %v1752, %v1773
        %v1790 = vadd.f32 %v1753, %v1774
        %v1791 = vadd.f32 %v1754, %v1775
        %v1792 = vadd.f32 %v1755, %v1776
        %v1793 = vadd.f32 %v1756, %v1777
        %v1794 = vadd.f32 %v1757, %v1778
        %v1795 = vadd.f32 %v1758, %v1779
        %v1796 = vadd.f32 %v1759, %v1780
        %v1797 = vadd.f32 %v1760, %v1781
        %v1798 = vadd.f32 %v1761, %v1782
        %v1799 = vadd.f32 %v1762, %v1783
        %v1800 = vadd.f32 %v1763, %v1784
        %v1801 = vadd.f32 %v1764, %v1785
        %v1802 = vld [vmem:[%s1727 + $0x2] sm:$0x1]
        %v1803 = vlaneseq
        %v1804 = vshrl.u32 %v1803, 7
        %v1805 = vsub.s32 0, %v1804
        %v1806 = vrot.slane %v1802, %v1805
        %v1807 = vmul.f32 %v1703, %v1806
        %v1808 = vmul.f32 %v1704, %v1806
        %v1809 = vmul.f32 %v1705, %v1806
        %v1810 = vmul.f32 %v1706, %v1806
        %v1811 = vmul.f32 %v1707, %v1806
        %v1812 = vmul.f32 %v1708, %v1806
        %v1813 = vmul.f32 %v1709, %v1806
        %v1814 = vmul.f32 %v1710, %v1806
        %v1815 = vmul.f32 %v1711, %v1806
        %v1816 = vmul.f32 %v1712, %v1806
        %v1817 = vmul.f32 %v1713, %v1806
        %v1818 = vmul.f32 %v1714, %v1806
        %v1819 = vmul.f32 %v1715, %v1806
        %v1820 = vmul.f32 %v1716, %v1806
        %v1821 = vmul.f32 %v1717, %v1806
        %v1822 = vmul.f32 %v1718, %v1806
        %v1823 = vadd.f32 %v1786, %v1807
        %v1824 = vadd.f32 %v1787, %v1808
        %v1825 = vadd.f32 %v1788, %v1809
        %v1826 = vadd.f32 %v1789, %v1810
        %v1827 = vadd.f32 %v1790, %v1811
        %v1828 = vadd.f32 %v1791, %v1812
        %v1829 = vadd.f32 %v1792, %v1813
        %v1830 = vadd.f32 %v1793, %v1814
        %v1831 = vadd.f32 %v1794, %v1815
        %v1832 = vadd.f32 %v1795, %v1816
        %v1833 = vadd.f32 %v1796, %v1817
        %v1834 = vadd.f32 %v1797, %v1818
        %v1835 = vadd.f32 %v1798, %v1819
        %v1836 = vadd.f32 %v1799, %v1820
        %v1837 = vadd.f32 %v1800, %v1821
        %v1838 = vadd.f32 %v1801, %v1822
        %v1839 = vld [vmem:[%s1727 + $0x3] sm:$0x1]
        %v1840 = vlaneseq
        %v1841 = vshrl.u32 %v1840, 7
        %v1842 = vsub.s32 0, %v1841
        %v1843 = vrot.slane %v1839, %v1842
        %v1844 = vmul.f32 %v1705, %v1843
        %v1845 = vmul.f32 %v1706, %v1843
        %v1846 = vmul.f32 %v1707, %v1843
        %v1847 = vmul.f32 %v1708, %v1843
        %v1848 = vmul.f32 %v1709, %v1843
        %v1849 = vmul.f32 %v1710, %v1843
        %v1850 = vmul.f32 %v1711, %v1843
        %v1851 = vmul.f32 %v1712, %v1843
        %v1852 = vmul.f32 %v1713, %v1843
        %v1853 = vmul.f32 %v1714, %v1843
        %v1854 = vmul.f32 %v1715, %v1843
        %v1855 = vmul.f32 %v1716, %v1843
        %v1856 = vmul.f32 %v1717, %v1843
        %v1857 = vmul.f32 %v1718, %v1843
        %v1858 = vmul.f32 %v1719, %v1843
        %v1859 = vmul.f32 %v1720, %v1843
        %v1860 = vadd.f32 %v1823, %v1844
        %v1861 = vadd.f32 %v1824, %v1845
        %v1862 = vadd.f32 %v1825, %v1846
        %v1863 = vadd.f32 %v1826, %v1847
        %v1864 = vadd.f32 %v1827, %v1848
        %v1865 = vadd.f32 %v1828, %v1849
        %v1866 = vadd.f32 %v1829, %v1850
        %v1867 = vadd.f32 %v1830, %v1851
        %v1868 = vadd.f32 %v1831, %v1852
        %v1869 = vadd.f32 %v1832, %v1853
        %v1870 = vadd.f32 %v1833, %v1854
        %v1871 = vadd.f32 %v1834, %v1855
        %v1872 = vadd.f32 %v1835, %v1856
        %v1873 = vadd.f32 %v1836, %v1857
        %v1874 = vadd.f32 %v1837, %v1858
        %v1875 = vadd.f32 %v1838, %v1859
        %v1876 = vld [vmem:[%s1727 + $0x4] sm:$0x1]
        %v1877 = vlaneseq
        %v1878 = vshrl.u32 %v1877, 7
        %v1879 = vsub.s32 0, %v1878
        %v1880 = vrot.slane %v1876, %v1879
        %v1881 = vmul.f32 %v1707, %v1880
        %v1882 = vmul.f32 %v1708, %v1880
        %v1883 = vmul.f32 %v1709, %v1880
        %v1884 = vmul.f32 %v1710, %v1880
        %v1885 = vmul.f32 %v1711, %v1880
        %v1886 = vmul.f32 %v1712, %v1880
        %v1887 = vmul.f32 %v1713, %v1880
        %v1888 = vmul.f32 %v1714, %v1880
        %v1889 = vmul.f32 %v1715, %v1880
        %v1890 = vmul.f32 %v1716, %v1880
        %v1891 = vmul.f32 %v1717, %v1880
        %v1892 = vmul.f32 %v1718, %v1880
        %v1893 = vmul.f32 %v1719, %v1880
        %v1894 = vmul.f32 %v1720, %v1880
        %v1895 = vmul.f32 %v1721, %v1880
        %v1896 = vmul.f32 %v1722, %v1880
        %v1897 = vadd.f32 %v1860, %v1881
        %v1898 = vadd.f32 %v1861, %v1882
        %v1899 = vadd.f32 %v1862, %v1883
        %v1900 = vadd.f32 %v1863, %v1884
        %v1901 = vadd.f32 %v1864, %v1885
        %v1902 = vadd.f32 %v1865, %v1886
        %v1903 = vadd.f32 %v1866, %v1887
        %v1904 = vadd.f32 %v1867, %v1888
        %v1905 = vadd.f32 %v1868, %v1889
        %v1906 = vadd.f32 %v1869, %v1890
        %v1907 = vadd.f32 %v1870, %v1891
        %v1908 = vadd.f32 %v1871, %v1892
        %v1909 = vadd.f32 %v1872, %v1893
        %v1910 = vadd.f32 %v1873, %v1894
        %v1911 = vadd.f32 %v1874, %v1895
        %v1912 = vadd.f32 %v1875, %v1896
        %v1913 = vld [vmem:[%s1727 + $0x5] sm:$0x1]
        %v1914 = vlaneseq
        %v1915 = vshrl.u32 %v1914, 7
        %v1916 = vsub.s32 0, %v1915
        %v1917 = vrot.slane %v1913, %v1916
        %v1918 = vmul.f32 %v1709, %v1917
        %v1919 = vmul.f32 %v1710, %v1917
        %v1920 = vmul.f32 %v1711, %v1917
        %v1921 = vmul.f32 %v1712, %v1917
        %v1922 = vmul.f32 %v1713, %v1917
        %v1923 = vmul.f32 %v1714, %v1917
        %v1924 = vmul.f32 %v1715, %v1917
        %v1925 = vmul.f32 %v1716, %v1917
        %v1926 = vmul.f32 %v1717, %v1917
        %v1927 = vmul.f32 %v1718, %v1917
        %v1928 = vmul.f32 %v1719, %v1917
        %v1929 = vmul.f32 %v1720, %v1917
        %v1930 = vmul.f32 %v1721, %v1917
        %v1931 = vmul.f32 %v1722, %v1917
        %v1932 = vmul.f32 %v1723, %v1917
        %v1933 = vmul.f32 %v1724, %v1917
        %v1934 = vadd.f32 %v1897, %v1918
        %v1935 = vadd.f32 %v1898, %v1919
        %v1936 = vadd.f32 %v1899, %v1920
        %v1937 = vadd.f32 %v1900, %v1921
        %v1938 = vadd.f32 %v1901, %v1922
        %v1939 = vadd.f32 %v1902, %v1923
        %v1940 = vadd.f32 %v1903, %v1924
        %v1941 = vadd.f32 %v1904, %v1925
        %v1942 = vadd.f32 %v1905, %v1926
        %v1943 = vadd.f32 %v1906, %v1927
        %v1944 = vadd.f32 %v1907, %v1928
        %v1945 = vadd.f32 %v1908, %v1929
        %v1946 = vadd.f32 %v1909, %v1930
        %v1947 = vadd.f32 %v1910, %v1931
        %v1948 = vadd.f32 %v1911, %v1932
        %v1949 = vadd.f32 %v1912, %v1933
        %v1950 = vld [vmem:[%s1727 + $0x6] sm:$0x1]
        %v1951 = vlaneseq
        %v1952 = vshrl.u32 %v1951, 7
        %v1953 = vsub.s32 0, %v1952
        %v1954 = vrot.slane %v1950, %v1953
        %v1955 = vmul.f32 %v1711, %v1954
        %v1956 = vmul.f32 %v1712, %v1954
        %v1957 = vmul.f32 %v1713, %v1954
        %v1958 = vmul.f32 %v1714, %v1954
        %v1959 = vmul.f32 %v1715, %v1954
        %v1960 = vmul.f32 %v1716, %v1954
        %v1961 = vmul.f32 %v1717, %v1954
        %v1962 = vmul.f32 %v1718, %v1954
        %v1963 = vmul.f32 %v1719, %v1954
        %v1964 = vmul.f32 %v1720, %v1954
        %v1965 = vmul.f32 %v1721, %v1954
        %v1966 = vmul.f32 %v1722, %v1954
        %v1967 = vmul.f32 %v1723, %v1954
        %v1968 = vmul.f32 %v1724, %v1954
        %v1969 = vmul.f32 %v1725, %v1954
        %v1970 = vmul.f32 %v1726, %v1954
        %v1971 = vadd.f32 %v1934, %v1955
        %v1972 = vadd.f32 %v1935, %v1956
        %v1973 = vadd.f32 %v1936, %v1957
        %v1974 = vadd.f32 %v1937, %v1958
        %v1975 = vadd.f32 %v1938, %v1959
        %v1976 = vadd.f32 %v1939, %v1960
        %v1977 = vadd.f32 %v1940, %v1961
        %v1978 = vadd.f32 %v1941, %v1962
        %v1979 = vadd.f32 %v1942, %v1963
        %v1980 = vadd.f32 %v1943, %v1964
        %v1981 = vadd.f32 %v1944, %v1965
        %v1982 = vadd.f32 %v1945, %v1966
        %v1983 = vadd.f32 %v1946, %v1967
        %v1984 = vadd.f32 %v1947, %v1968
        %v1985 = vadd.f32 %v1948, %v1969
        %v1986 = vadd.f32 %v1949, %v1970
        %v1987 = vld [vmem:[%s365 + $0x5] sm:$0xff]
        %v1988 = vld [vmem:[%s365 + $0xd] sm:$0xff]
        %v1989 = vld [vmem:[%s365 + $0x1d] sm:$0xff]
        %v1990 = vld [vmem:[%s365 + $0x25] sm:$0xff]
        %v1991 = vld [vmem:[%s365 + $0x35] sm:$0xff]
        %v1992 = vld [vmem:[%s365 + $0x3d] sm:$0xff]
        %v1993 = vld [vmem:[%s365 + $0x4d] sm:$0xff]
        %v1994 = vld [vmem:[%s365 + $0x55] sm:$0xff]
        %v1995 = vld [vmem:[%s365 + $0x65] sm:$0xff]
        %v1996 = vld [vmem:[%s365 + $0x6d] sm:$0xff]
        %v1997 = vld [vmem:[%s365 + $0x7d] sm:$0xff]
        %v1998 = vld [vmem:[%s365 + $0x85] sm:$0xff]
        %v1999 = vld [vmem:[%s365 + $0x95] sm:$0xff]
        %v2000 = vld [vmem:[%s365 + $0x9d] sm:$0xff]
        %v2001 = vld [vmem:[%s365 + $0xad] sm:$0xff]
        %v2002 = vld [vmem:[%s365 + $0xb5] sm:$0xff]
        %v2003 = vld [vmem:[%s365 + $0xc5] sm:$0xff]
        %v2004 = vld [vmem:[%s365 + $0xcd] sm:$0xff]
        %v2005 = vld [vmem:[%s365 + $0xdd] sm:$0xff]
        %v2006 = vld [vmem:[%s365 + $0xe5] sm:$0xff]
        %v2007 = vld [vmem:[%s365 + $0xf5] sm:$0xff]
        %v2008 = vld [vmem:[%s365 + $0xfd] sm:$0xff]
        %v2009 = vld [vmem:[%s365 + $0x10d] sm:$0xff]
        %v2010 = vld [vmem:[%s365 + $0x115] sm:$0xff]
        %v2011 = vld [vmem:[%s365 + $0x125] sm:$0xff]
        %v2012 = vld [vmem:[%s365 + $0x12d] sm:$0xff]
        %v2013 = vld [vmem:[%s365 + $0x13d] sm:$0xff]
        %v2014 = vld [vmem:[%s365 + $0x145] sm:$0xff]
        %s2015 = scalar_lea.vmem %s173, 40
        %v2016 = vld [vmem:[%s2015] sm:$0x1]
        %v2017 = vlaneseq
        %v2018 = vshrl.u32 %v2017, 7
        %v2019 = vsub.s32 0, %v2018
        %v2020 = vrot.slane %v2016, %v2019
        %v2021 = vmul.f32 %v1987, %v2020
        %v2022 = vmul.f32 %v1988, %v2020
        %v2023 = vmul.f32 %v1989, %v2020
        %v2024 = vmul.f32 %v1990, %v2020
        %v2025 = vmul.f32 %v1991, %v2020
        %v2026 = vmul.f32 %v1992, %v2020
        %v2027 = vmul.f32 %v1993, %v2020
        %v2028 = vmul.f32 %v1994, %v2020
        %v2029 = vmul.f32 %v1995, %v2020
        %v2030 = vmul.f32 %v1996, %v2020
        %v2031 = vmul.f32 %v1997, %v2020
        %v2032 = vmul.f32 %v1998, %v2020
        %v2033 = vmul.f32 %v1999, %v2020
        %v2034 = vmul.f32 %v2000, %v2020
        %v2035 = vmul.f32 %v2001, %v2020
        %v2036 = vmul.f32 %v2002, %v2020
        %v2037 = vadd.f32 %v1971, %v2021
        %v2038 = vadd.f32 %v1972, %v2022
        %v2039 = vadd.f32 %v1973, %v2023
        %v2040 = vadd.f32 %v1974, %v2024
        %v2041 = vadd.f32 %v1975, %v2025
        %v2042 = vadd.f32 %v1976, %v2026
        %v2043 = vadd.f32 %v1977, %v2027
        %v2044 = vadd.f32 %v1978, %v2028
        %v2045 = vadd.f32 %v1979, %v2029
        %v2046 = vadd.f32 %v1980, %v2030
        %v2047 = vadd.f32 %v1981, %v2031
        %v2048 = vadd.f32 %v1982, %v2032
        %v2049 = vadd.f32 %v1983, %v2033
        %v2050 = vadd.f32 %v1984, %v2034
        %v2051 = vadd.f32 %v1985, %v2035
        %v2052 = vadd.f32 %v1986, %v2036
        %v2053 = vld [vmem:[%s2015 + $0x1] sm:$0x1]
        %v2054 = vlaneseq
        %v2055 = vshrl.u32 %v2054, 7
        %v2056 = vsub.s32 0, %v2055
        %v2057 = vrot.slane %v2053, %v2056
        %v2058 = vmul.f32 %v1989, %v2057
        %v2059 = vmul.f32 %v1990, %v2057
        %v2060 = vmul.f32 %v1991, %v2057
        %v2061 = vmul.f32 %v1992, %v2057
        %v2062 = vmul.f32 %v1993, %v2057
        %v2063 = vmul.f32 %v1994, %v2057
        %v2064 = vmul.f32 %v1995, %v2057
        %v2065 = vmul.f32 %v1996, %v2057
        %v2066 = vmul.f32 %v1997, %v2057
        %v2067 = vmul.f32 %v1998, %v2057
        %v2068 = vmul.f32 %v1999, %v2057
        %v2069 = vmul.f32 %v2000, %v2057
        %v2070 = vmul.f32 %v2001, %v2057
        %v2071 = vmul.f32 %v2002, %v2057
        %v2072 = vmul.f32 %v2003, %v2057
        %v2073 = vmul.f32 %v2004, %v2057
        %v2074 = vadd.f32 %v2037, %v2058
        %v2075 = vadd.f32 %v2038, %v2059
        %v2076 = vadd.f32 %v2039, %v2060
        %v2077 = vadd.f32 %v2040, %v2061
        %v2078 = vadd.f32 %v2041, %v2062
        %v2079 = vadd.f32 %v2042, %v2063
        %v2080 = vadd.f32 %v2043, %v2064
        %v2081 = vadd.f32 %v2044, %v2065
        %v2082 = vadd.f32 %v2045, %v2066
        %v2083 = vadd.f32 %v2046, %v2067
        %v2084 = vadd.f32 %v2047, %v2068
        %v2085 = vadd.f32 %v2048, %v2069
        %v2086 = vadd.f32 %v2049, %v2070
        %v2087 = vadd.f32 %v2050, %v2071
        %v2088 = vadd.f32 %v2051, %v2072
        %v2089 = vadd.f32 %v2052, %v2073
        %v2090 = vld [vmem:[%s2015 + $0x2] sm:$0x1]
        %v2091 = vlaneseq
        %v2092 = vshrl.u32 %v2091, 7
        %v2093 = vsub.s32 0, %v2092
        %v2094 = vrot.slane %v2090, %v2093
        %v2095 = vmul.f32 %v1991, %v2094
        %v2096 = vmul.f32 %v1992, %v2094
        %v2097 = vmul.f32 %v1993, %v2094
        %v2098 = vmul.f32 %v1994, %v2094
        %v2099 = vmul.f32 %v1995, %v2094
        %v2100 = vmul.f32 %v1996, %v2094
        %v2101 = vmul.f32 %v1997, %v2094
        %v2102 = vmul.f32 %v1998, %v2094
        %v2103 = vmul.f32 %v1999, %v2094
        %v2104 = vmul.f32 %v2000, %v2094
        %v2105 = vmul.f32 %v2001, %v2094
        %v2106 = vmul.f32 %v2002, %v2094
        %v2107 = vmul.f32 %v2003, %v2094
        %v2108 = vmul.f32 %v2004, %v2094
        %v2109 = vmul.f32 %v2005, %v2094
        %v2110 = vmul.f32 %v2006, %v2094
        %v2111 = vadd.f32 %v2074, %v2095
        %v2112 = vadd.f32 %v2075, %v2096
        %v2113 = vadd.f32 %v2076, %v2097
        %v2114 = vadd.f32 %v2077, %v2098
        %v2115 = vadd.f32 %v2078, %v2099
        %v2116 = vadd.f32 %v2079, %v2100
        %v2117 = vadd.f32 %v2080, %v2101
        %v2118 = vadd.f32 %v2081, %v2102
        %v2119 = vadd.f32 %v2082, %v2103
        %v2120 = vadd.f32 %v2083, %v2104
        %v2121 = vadd.f32 %v2084, %v2105
        %v2122 = vadd.f32 %v2085, %v2106
        %v2123 = vadd.f32 %v2086, %v2107
        %v2124 = vadd.f32 %v2087, %v2108
        %v2125 = vadd.f32 %v2088, %v2109
        %v2126 = vadd.f32 %v2089, %v2110
        %v2127 = vld [vmem:[%s2015 + $0x3] sm:$0x1]
        %v2128 = vlaneseq
        %v2129 = vshrl.u32 %v2128, 7
        %v2130 = vsub.s32 0, %v2129
        %v2131 = vrot.slane %v2127, %v2130
        %v2132 = vmul.f32 %v1993, %v2131
        %v2133 = vmul.f32 %v1994, %v2131
        %v2134 = vmul.f32 %v1995, %v2131
        %v2135 = vmul.f32 %v1996, %v2131
        %v2136 = vmul.f32 %v1997, %v2131
        %v2137 = vmul.f32 %v1998, %v2131
        %v2138 = vmul.f32 %v1999, %v2131
        %v2139 = vmul.f32 %v2000, %v2131
        %v2140 = vmul.f32 %v2001, %v2131
        %v2141 = vmul.f32 %v2002, %v2131
        %v2142 = vmul.f32 %v2003, %v2131
        %v2143 = vmul.f32 %v2004, %v2131
        %v2144 = vmul.f32 %v2005, %v2131
        %v2145 = vmul.f32 %v2006, %v2131
        %v2146 = vmul.f32 %v2007, %v2131
        %v2147 = vmul.f32 %v2008, %v2131
        %v2148 = vadd.f32 %v2111, %v2132
        %v2149 = vadd.f32 %v2112, %v2133
        %v2150 = vadd.f32 %v2113, %v2134
        %v2151 = vadd.f32 %v2114, %v2135
        %v2152 = vadd.f32 %v2115, %v2136
        %v2153 = vadd.f32 %v2116, %v2137
        %v2154 = vadd.f32 %v2117, %v2138
        %v2155 = vadd.f32 %v2118, %v2139
        %v2156 = vadd.f32 %v2119, %v2140
        %v2157 = vadd.f32 %v2120, %v2141
        %v2158 = vadd.f32 %v2121, %v2142
        %v2159 = vadd.f32 %v2122, %v2143
        %v2160 = vadd.f32 %v2123, %v2144
        %v2161 = vadd.f32 %v2124, %v2145
        %v2162 = vadd.f32 %v2125, %v2146
        %v2163 = vadd.f32 %v2126, %v2147
        %v2164 = vld [vmem:[%s2015 + $0x4] sm:$0x1]
        %v2165 = vlaneseq
        %v2166 = vshrl.u32 %v2165, 7
        %v2167 = vsub.s32 0, %v2166
        %v2168 = vrot.slane %v2164, %v2167
        %v2169 = vmul.f32 %v1995, %v2168
        %v2170 = vmul.f32 %v1996, %v2168
        %v2171 = vmul.f32 %v1997, %v2168
        %v2172 = vmul.f32 %v1998, %v2168
        %v2173 = vmul.f32 %v1999, %v2168
        %v2174 = vmul.f32 %v2000, %v2168
        %v2175 = vmul.f32 %v2001, %v2168
        %v2176 = vmul.f32 %v2002, %v2168
        %v2177 = vmul.f32 %v2003, %v2168
        %v2178 = vmul.f32 %v2004, %v2168
        %v2179 = vmul.f32 %v2005, %v2168
        %v2180 = vmul.f32 %v2006, %v2168
        %v2181 = vmul.f32 %v2007, %v2168
        %v2182 = vmul.f32 %v2008, %v2168
        %v2183 = vmul.f32 %v2009, %v2168
        %v2184 = vmul.f32 %v2010, %v2168
        %v2185 = vadd.f32 %v2148, %v2169
        %v2186 = vadd.f32 %v2149, %v2170
        %v2187 = vadd.f32 %v2150, %v2171
        %v2188 = vadd.f32 %v2151, %v2172
        %v2189 = vadd.f32 %v2152, %v2173
        %v2190 = vadd.f32 %v2153, %v2174
        %v2191 = vadd.f32 %v2154, %v2175
        %v2192 = vadd.f32 %v2155, %v2176
        %v2193 = vadd.f32 %v2156, %v2177
        %v2194 = vadd.f32 %v2157, %v2178
        %v2195 = vadd.f32 %v2158, %v2179
        %v2196 = vadd.f32 %v2159, %v2180
        %v2197 = vadd.f32 %v2160, %v2181
        %v2198 = vadd.f32 %v2161, %v2182
        %v2199 = vadd.f32 %v2162, %v2183
        %v2200 = vadd.f32 %v2163, %v2184
        %v2201 = vld [vmem:[%s2015 + $0x5] sm:$0x1]
        %v2202 = vlaneseq
        %v2203 = vshrl.u32 %v2202, 7
        %v2204 = vsub.s32 0, %v2203
        %v2205 = vrot.slane %v2201, %v2204
        %v2206 = vmul.f32 %v1997, %v2205
        %v2207 = vmul.f32 %v1998, %v2205
        %v2208 = vmul.f32 %v1999, %v2205
        %v2209 = vmul.f32 %v2000, %v2205
        %v2210 = vmul.f32 %v2001, %v2205
        %v2211 = vmul.f32 %v2002, %v2205
        %v2212 = vmul.f32 %v2003, %v2205
        %v2213 = vmul.f32 %v2004, %v2205
        %v2214 = vmul.f32 %v2005, %v2205
        %v2215 = vmul.f32 %v2006, %v2205
        %v2216 = vmul.f32 %v2007, %v2205
        %v2217 = vmul.f32 %v2008, %v2205
        %v2218 = vmul.f32 %v2009, %v2205
        %v2219 = vmul.f32 %v2010, %v2205
        %v2220 = vmul.f32 %v2011, %v2205
        %v2221 = vmul.f32 %v2012, %v2205
        %v2222 = vadd.f32 %v2185, %v2206
        %v2223 = vadd.f32 %v2186, %v2207
        %v2224 = vadd.f32 %v2187, %v2208
        %v2225 = vadd.f32 %v2188, %v2209
        %v2226 = vadd.f32 %v2189, %v2210
        %v2227 = vadd.f32 %v2190, %v2211
        %v2228 = vadd.f32 %v2191, %v2212
        %v2229 = vadd.f32 %v2192, %v2213
        %v2230 = vadd.f32 %v2193, %v2214
        %v2231 = vadd.f32 %v2194, %v2215
        %v2232 = vadd.f32 %v2195, %v2216
        %v2233 = vadd.f32 %v2196, %v2217
        %v2234 = vadd.f32 %v2197, %v2218
        %v2235 = vadd.f32 %v2198, %v2219
        %v2236 = vadd.f32 %v2199, %v2220
        %v2237 = vadd.f32 %v2200, %v2221
        %v2238 = vld [vmem:[%s2015 + $0x6] sm:$0x1]
        %v2239 = vlaneseq
        %v2240 = vshrl.u32 %v2239, 7
        %v2241 = vsub.s32 0, %v2240
        %v2242 = vrot.slane %v2238, %v2241
        %v2243 = vmul.f32 %v1999, %v2242
        %v2244 = vmul.f32 %v2000, %v2242
        %v2245 = vmul.f32 %v2001, %v2242
        %v2246 = vmul.f32 %v2002, %v2242
        %v2247 = vmul.f32 %v2003, %v2242
        %v2248 = vmul.f32 %v2004, %v2242
        %v2249 = vmul.f32 %v2005, %v2242
        %v2250 = vmul.f32 %v2006, %v2242
        %v2251 = vmul.f32 %v2007, %v2242
        %v2252 = vmul.f32 %v2008, %v2242
        %v2253 = vmul.f32 %v2009, %v2242
        %v2254 = vmul.f32 %v2010, %v2242
        %v2255 = vmul.f32 %v2011, %v2242
        %v2256 = vmul.f32 %v2012, %v2242
        %v2257 = vmul.f32 %v2013, %v2242
        %v2258 = vmul.f32 %v2014, %v2242
        %v2259 = vadd.f32 %v2222, %v2243
        %v2260 = vadd.f32 %v2223, %v2244
        %v2261 = vadd.f32 %v2224, %v2245
        %v2262 = vadd.f32 %v2225, %v2246
        %v2263 = vadd.f32 %v2226, %v2247
        %v2264 = vadd.f32 %v2227, %v2248
        %v2265 = vadd.f32 %v2228, %v2249
        %v2266 = vadd.f32 %v2229, %v2250
        %v2267 = vadd.f32 %v2230, %v2251
        %v2268 = vadd.f32 %v2231, %v2252
        %v2269 = vadd.f32 %v2232, %v2253
        %v2270 = vadd.f32 %v2233, %v2254
        %v2271 = vadd.f32 %v2234, %v2255
        %v2272 = vadd.f32 %v2235, %v2256
        %v2273 = vadd.f32 %v2236, %v2257
        %v2274 = vadd.f32 %v2237, %v2258
        %v2275 = vld [vmem:[%s365 + $0x6] sm:$0xff]
        %v2276 = vld [vmem:[%s365 + $0xe] sm:$0xff]
        %v2277 = vld [vmem:[%s365 + $0x1e] sm:$0xff]
        %v2278 = vld [vmem:[%s365 + $0x26] sm:$0xff]
        %v2279 = vld [vmem:[%s365 + $0x36] sm:$0xff]
        %v2280 = vld [vmem:[%s365 + $0x3e] sm:$0xff]
        %v2281 = vld [vmem:[%s365 + $0x4e] sm:$0xff]
        %v2282 = vld [vmem:[%s365 + $0x56] sm:$0xff]
        %v2283 = vld [vmem:[%s365 + $0x66] sm:$0xff]
        %v2284 = vld [vmem:[%s365 + $0x6e] sm:$0xff]
        %v2285 = vld [vmem:[%s365 + $0x7e] sm:$0xff]
        %v2286 = vld [vmem:[%s365 + $0x86] sm:$0xff]
        %v2287 = vld [vmem:[%s365 + $0x96] sm:$0xff]
        %v2288 = vld [vmem:[%s365 + $0x9e] sm:$0xff]
        %v2289 = vld [vmem:[%s365 + $0xae] sm:$0xff]
        %v2290 = vld [vmem:[%s365 + $0xb6] sm:$0xff]
        %v2291 = vld [vmem:[%s365 + $0xc6] sm:$0xff]
        %v2292 = vld [vmem:[%s365 + $0xce] sm:$0xff]
        %v2293 = vld [vmem:[%s365 + $0xde] sm:$0xff]
        %v2294 = vld [vmem:[%s365 + $0xe6] sm:$0xff]
        %v2295 = vld [vmem:[%s365 + $0xf6] sm:$0xff]
        %v2296 = vld [vmem:[%s365 + $0xfe] sm:$0xff]
        %v2297 = vld [vmem:[%s365 + $0x10e] sm:$0xff]
        %v2298 = vld [vmem:[%s365 + $0x116] sm:$0xff]
        %v2299 = vld [vmem:[%s365 + $0x126] sm:$0xff]
        %v2300 = vld [vmem:[%s365 + $0x12e] sm:$0xff]
        %v2301 = vld [vmem:[%s365 + $0x13e] sm:$0xff]
        %v2302 = vld [vmem:[%s365 + $0x146] sm:$0xff]
        %s2303 = scalar_lea.vmem %s173, 48
        %v2304 = vld [vmem:[%s2303] sm:$0x1]
        %v2305 = vlaneseq
        %v2306 = vshrl.u32 %v2305, 7
        %v2307 = vsub.s32 0, %v2306
        %v2308 = vrot.slane %v2304, %v2307
        %v2309 = vmul.f32 %v2275, %v2308
        %v2310 = vmul.f32 %v2276, %v2308
        %v2311 = vmul.f32 %v2277, %v2308
        %v2312 = vmul.f32 %v2278, %v2308
        %v2313 = vmul.f32 %v2279, %v2308
        %v2314 = vmul.f32 %v2280, %v2308
        %v2315 = vmul.f32 %v2281, %v2308
        %v2316 = vmul.f32 %v2282, %v2308
        %v2317 = vmul.f32 %v2283, %v2308
        %v2318 = vmul.f32 %v2284, %v2308
        %v2319 = vmul.f32 %v2285, %v2308
        %v2320 = vmul.f32 %v2286, %v2308
        %v2321 = vmul.f32 %v2287, %v2308
        %v2322 = vmul.f32 %v2288, %v2308
        %v2323 = vmul.f32 %v2289, %v2308
        %v2324 = vmul.f32 %v2290, %v2308
        %v2325 = vadd.f32 %v2259, %v2309
        %v2326 = vadd.f32 %v2260, %v2310
        %v2327 = vadd.f32 %v2261, %v2311
        %v2328 = vadd.f32 %v2262, %v2312
        %v2329 = vadd.f32 %v2263, %v2313
        %v2330 = vadd.f32 %v2264, %v2314
        %v2331 = vadd.f32 %v2265, %v2315
        %v2332 = vadd.f32 %v2266, %v2316
        %v2333 = vadd.f32 %v2267, %v2317
        %v2334 = vadd.f32 %v2268, %v2318
        %v2335 = vadd.f32 %v2269, %v2319
        %v2336 = vadd.f32 %v2270, %v2320
        %v2337 = vadd.f32 %v2271, %v2321
        %v2338 = vadd.f32 %v2272, %v2322
        %v2339 = vadd.f32 %v2273, %v2323
        %v2340 = vadd.f32 %v2274, %v2324
        %v2341 = vld [vmem:[%s2303 + $0x1] sm:$0x1]
        %v2342 = vlaneseq
        %v2343 = vshrl.u32 %v2342, 7
        %v2344 = vsub.s32 0, %v2343
        %v2345 = vrot.slane %v2341, %v2344
        %v2346 = vmul.f32 %v2277, %v2345
        %v2347 = vmul.f32 %v2278, %v2345
        %v2348 = vmul.f32 %v2279, %v2345
        %v2349 = vmul.f32 %v2280, %v2345
        %v2350 = vmul.f32 %v2281, %v2345
        %v2351 = vmul.f32 %v2282, %v2345
        %v2352 = vmul.f32 %v2283, %v2345
        %v2353 = vmul.f32 %v2284, %v2345
        %v2354 = vmul.f32 %v2285, %v2345
        %v2355 = vmul.f32 %v2286, %v2345
        %v2356 = vmul.f32 %v2287, %v2345
        %v2357 = vmul.f32 %v2288, %v2345
        %v2358 = vmul.f32 %v2289, %v2345
        %v2359 = vmul.f32 %v2290, %v2345
        %v2360 = vmul.f32 %v2291, %v2345
        %v2361 = vmul.f32 %v2292, %v2345
        %v2362 = vadd.f32 %v2325, %v2346
        %v2363 = vadd.f32 %v2326, %v2347
        %v2364 = vadd.f32 %v2327, %v2348
        %v2365 = vadd.f32 %v2328, %v2349
        %v2366 = vadd.f32 %v2329, %v2350
        %v2367 = vadd.f32 %v2330, %v2351
        %v2368 = vadd.f32 %v2331, %v2352
        %v2369 = vadd.f32 %v2332, %v2353
        %v2370 = vadd.f32 %v2333, %v2354
        %v2371 = vadd.f32 %v2334, %v2355
        %v2372 = vadd.f32 %v2335, %v2356
        %v2373 = vadd.f32 %v2336, %v2357
        %v2374 = vadd.f32 %v2337, %v2358
        %v2375 = vadd.f32 %v2338, %v2359
        %v2376 = vadd.f32 %v2339, %v2360
        %v2377 = vadd.f32 %v2340, %v2361
        %v2378 = vld [vmem:[%s2303 + $0x2] sm:$0x1]
        %v2379 = vlaneseq
        %v2380 = vshrl.u32 %v2379, 7
        %v2381 = vsub.s32 0, %v2380
        %v2382 = vrot.slane %v2378, %v2381
        %v2383 = vmul.f32 %v2279, %v2382
        %v2384 = vmul.f32 %v2280, %v2382
        %v2385 = vmul.f32 %v2281, %v2382
        %v2386 = vmul.f32 %v2282, %v2382
        %v2387 = vmul.f32 %v2283, %v2382
        %v2388 = vmul.f32 %v2284, %v2382
        %v2389 = vmul.f32 %v2285, %v2382
        %v2390 = vmul.f32 %v2286, %v2382
        %v2391 = vmul.f32 %v2287, %v2382
        %v2392 = vmul.f32 %v2288, %v2382
        %v2393 = vmul.f32 %v2289, %v2382
        %v2394 = vmul.f32 %v2290, %v2382
        %v2395 = vmul.f32 %v2291, %v2382
        %v2396 = vmul.f32 %v2292, %v2382
        %v2397 = vmul.f32 %v2293, %v2382
        %v2398 = vmul.f32 %v2294, %v2382
        %v2399 = vadd.f32 %v2362, %v2383
        %v2400 = vadd.f32 %v2363, %v2384
        %v2401 = vadd.f32 %v2364, %v2385
        %v2402 = vadd.f32 %v2365, %v2386
        %v2403 = vadd.f32 %v2366, %v2387
        %v2404 = vadd.f32 %v2367, %v2388
        %v2405 = vadd.f32 %v2368, %v2389
        %v2406 = vadd.f32 %v2369, %v2390
        %v2407 = vadd.f32 %v2370, %v2391
        %v2408 = vadd.f32 %v2371, %v2392
        %v2409 = vadd.f32 %v2372, %v2393
        %v2410 = vadd.f32 %v2373, %v2394
        %v2411 = vadd.f32 %v2374, %v2395
        %v2412 = vadd.f32 %v2375, %v2396
        %v2413 = vadd.f32 %v2376, %v2397
        %v2414 = vadd.f32 %v2377, %v2398
        %v2415 = vld [vmem:[%s2303 + $0x3] sm:$0x1]
        %v2416 = vlaneseq
        %v2417 = vshrl.u32 %v2416, 7
        %v2418 = vsub.s32 0, %v2417
        %v2419 = vrot.slane %v2415, %v2418
        %v2420 = vmul.f32 %v2281, %v2419
        %v2421 = vmul.f32 %v2282, %v2419
        %v2422 = vmul.f32 %v2283, %v2419
        %v2423 = vmul.f32 %v2284, %v2419
        %v2424 = vmul.f32 %v2285, %v2419
        %v2425 = vmul.f32 %v2286, %v2419
        %v2426 = vmul.f32 %v2287, %v2419
        %v2427 = vmul.f32 %v2288, %v2419
        %v2428 = vmul.f32 %v2289, %v2419
        %v2429 = vmul.f32 %v2290, %v2419
        %v2430 = vmul.f32 %v2291, %v2419
        %v2431 = vmul.f32 %v2292, %v2419
        %v2432 = vmul.f32 %v2293, %v2419
        %v2433 = vmul.f32 %v2294, %v2419
        %v2434 = vmul.f32 %v2295, %v2419
        %v2435 = vmul.f32 %v2296, %v2419
        %v2436 = vadd.f32 %v2399, %v2420
        %v2437 = vadd.f32 %v2400, %v2421
        %v2438 = vadd.f32 %v2401, %v2422
        %v2439 = vadd.f32 %v2402, %v2423
        %v2440 = vadd.f32 %v2403, %v2424
        %v2441 = vadd.f32 %v2404, %v2425
        %v2442 = vadd.f32 %v2405, %v2426
        %v2443 = vadd.f32 %v2406, %v2427
        %v2444 = vadd.f32 %v2407, %v2428
        %v2445 = vadd.f32 %v2408, %v2429
        %v2446 = vadd.f32 %v2409, %v2430
        %v2447 = vadd.f32 %v2410, %v2431
        %v2448 = vadd.f32 %v2411, %v2432
        %v2449 = vadd.f32 %v2412, %v2433
        %v2450 = vadd.f32 %v2413, %v2434
        %v2451 = vadd.f32 %v2414, %v2435
        %v2452 = vld [vmem:[%s2303 + $0x4] sm:$0x1]
        %v2453 = vlaneseq
        %v2454 = vshrl.u32 %v2453, 7
        %v2455 = vsub.s32 0, %v2454
        %v2456 = vrot.slane %v2452, %v2455
        %v2457 = vmul.f32 %v2283, %v2456
        %v2458 = vmul.f32 %v2284, %v2456
        %v2459 = vmul.f32 %v2285, %v2456
        %v2460 = vmul.f32 %v2286, %v2456
        %v2461 = vmul.f32 %v2287, %v2456
        %v2462 = vmul.f32 %v2288, %v2456
        %v2463 = vmul.f32 %v2289, %v2456
        %v2464 = vmul.f32 %v2290, %v2456
        %v2465 = vmul.f32 %v2291, %v2456
        %v2466 = vmul.f32 %v2292, %v2456
        %v2467 = vmul.f32 %v2293, %v2456
        %v2468 = vmul.f32 %v2294, %v2456
        %v2469 = vmul.f32 %v2295, %v2456
        %v2470 = vmul.f32 %v2296, %v2456
        %v2471 = vmul.f32 %v2297, %v2456
        %v2472 = vmul.f32 %v2298, %v2456
        %v2473 = vadd.f32 %v2436, %v2457
        %v2474 = vadd.f32 %v2437, %v2458
        %v2475 = vadd.f32 %v2438, %v2459
        %v2476 = vadd.f32 %v2439, %v2460
        %v2477 = vadd.f32 %v2440, %v2461
        %v2478 = vadd.f32 %v2441, %v2462
        %v2479 = vadd.f32 %v2442, %v2463
        %v2480 = vadd.f32 %v2443, %v2464
        %v2481 = vadd.f32 %v2444, %v2465
        %v2482 = vadd.f32 %v2445, %v2466
        %v2483 = vadd.f32 %v2446, %v2467
        %v2484 = vadd.f32 %v2447, %v2468
        %v2485 = vadd.f32 %v2448, %v2469
        %v2486 = vadd.f32 %v2449, %v2470
        %v2487 = vadd.f32 %v2450, %v2471
        %v2488 = vadd.f32 %v2451, %v2472
        %v2489 = vld [vmem:[%s2303 + $0x5] sm:$0x1]
        %v2490 = vlaneseq
        %v2491 = vshrl.u32 %v2490, 7
        %v2492 = vsub.s32 0, %v2491
        %v2493 = vrot.slane %v2489, %v2492
        %v2494 = vmul.f32 %v2285, %v2493
        %v2495 = vmul.f32 %v2286, %v2493
        %v2496 = vmul.f32 %v2287, %v2493
        %v2497 = vmul.f32 %v2288, %v2493
        %v2498 = vmul.f32 %v2289, %v2493
        %v2499 = vmul.f32 %v2290, %v2493
        %v2500 = vmul.f32 %v2291, %v2493
        %v2501 = vmul.f32 %v2292, %v2493
        %v2502 = vmul.f32 %v2293, %v2493
        %v2503 = vmul.f32 %v2294, %v2493
        %v2504 = vmul.f32 %v2295, %v2493
        %v2505 = vmul.f32 %v2296, %v2493
        %v2506 = vmul.f32 %v2297, %v2493
        %v2507 = vmul.f32 %v2298, %v2493
        %v2508 = vmul.f32 %v2299, %v2493
        %v2509 = vmul.f32 %v2300, %v2493
        %v2510 = vadd.f32 %v2473, %v2494
        %v2511 = vadd.f32 %v2474, %v2495
        %v2512 = vadd.f32 %v2475, %v2496
        %v2513 = vadd.f32 %v2476, %v2497
        %v2514 = vadd.f32 %v2477, %v2498
        %v2515 = vadd.f32 %v2478, %v2499
        %v2516 = vadd.f32 %v2479, %v2500
        %v2517 = vadd.f32 %v2480, %v2501
        %v2518 = vadd.f32 %v2481, %v2502
        %v2519 = vadd.f32 %v2482, %v2503
        %v2520 = vadd.f32 %v2483, %v2504
        %v2521 = vadd.f32 %v2484, %v2505
        %v2522 = vadd.f32 %v2485, %v2506
        %v2523 = vadd.f32 %v2486, %v2507
        %v2524 = vadd.f32 %v2487, %v2508
        %v2525 = vadd.f32 %v2488, %v2509
        %v2526 = vld [vmem:[%s2303 + $0x6] sm:$0x1]
        %v2527 = vlaneseq
        %v2528 = vshrl.u32 %v2527, 7
        %v2529 = vsub.s32 0, %v2528
        %v2530 = vrot.slane %v2526, %v2529
        %v2531 = vmul.f32 %v2287, %v2530
        %v2532 = vmul.f32 %v2288, %v2530
        %v2533 = vmul.f32 %v2289, %v2530
        %v2534 = vmul.f32 %v2290, %v2530
        %v2535 = vmul.f32 %v2291, %v2530
        %v2536 = vmul.f32 %v2292, %v2530
        %v2537 = vmul.f32 %v2293, %v2530
        %v2538 = vmul.f32 %v2294, %v2530
        %v2539 = vmul.f32 %v2295, %v2530
        %v2540 = vmul.f32 %v2296, %v2530
        %v2541 = vmul.f32 %v2297, %v2530
        %v2542 = vmul.f32 %v2298, %v2530
        %v2543 = vmul.f32 %v2299, %v2530
        %v2544 = vmul.f32 %v2300, %v2530
        %v2545 = vmul.f32 %v2301, %v2530
        %v2546 = vmul.f32 %v2302, %v2530
        %v2547 = vadd.f32 %v2510, %v2531
        %v2548 = vadd.f32 %v2511, %v2532
        %v2549 = vadd.f32 %v2512, %v2533
        %v2550 = vadd.f32 %v2513, %v2534
        %v2551 = vadd.f32 %v2514, %v2535
        %v2552 = vadd.f32 %v2515, %v2536
        %v2553 = vadd.f32 %v2516, %v2537
        %v2554 = vadd.f32 %v2517, %v2538
        %v2555 = vadd.f32 %v2518, %v2539
        %v2556 = vadd.f32 %v2519, %v2540
        %v2557 = vadd.f32 %v2520, %v2541
        %v2558 = vadd.f32 %v2521, %v2542
        %v2559 = vadd.f32 %v2522, %v2543
        %v2560 = vadd.f32 %v2523, %v2544
        %v2561 = vadd.f32 %v2524, %v2545
        %v2562 = vadd.f32 %v2525, %v2546
        %v2564 = vlaneseq
        %v2565 = vshrl.u32 %v2564, 7
        %v2566 = vsub.s32 0, %v2565
        %v2567 = vrot.slane %v547, %v2566
        %v2569 = vadd.f32 %v2547, %v2567
        %v2570 = vadd.f32 %v2548, %v2567
        %v2571 = vadd.f32 %v2549, %v2567
        %v2572 = vadd.f32 %v2550, %v2567
        %v2573 = vadd.f32 %v2551, %v2567
        %v2574 = vadd.f32 %v2552, %v2567
        %v2575 = vadd.f32 %v2553, %v2567
        %v2576 = vadd.f32 %v2554, %v2567
        %v2577 = vadd.f32 %v2555, %v2567
        %v2578 = vadd.f32 %v2556, %v2567
        %v2579 = vadd.f32 %v2557, %v2567
        %v2580 = vadd.f32 %v2558, %v2567
        %v2581 = vadd.f32 %v2559, %v2567
        %v2582 = vadd.f32 %v2560, %v2567
        %v2583 = vadd.f32 %v2561, %v2567
        %v2584 = vadd.f32 %v2562, %v2567
        %2585 = vst [vmem:[%s169] sm:$0xff] %v2569
        %2586 = vst [vmem:[%s169 + $0x8] sm:$0xff] %v2570
        %2587 = vst [vmem:[%s169 + $0x10] sm:$0xff] %v2571
        %2588 = vst [vmem:[%s169 + $0x18] sm:$0xff] %v2572
        %2589 = vst [vmem:[%s169 + $0x20] sm:$0xff] %v2573
        %2590 = vst [vmem:[%s169 + $0x28] sm:$0xff] %v2574
        %2591 = vst [vmem:[%s169 + $0x30] sm:$0xff] %v2575
        %2592 = vst [vmem:[%s169 + $0x38] sm:$0xff] %v2576
        %2593 = vst [vmem:[%s169 + $0x40] sm:$0xff] %v2577
        %2594 = vst [vmem:[%s169 + $0x48] sm:$0xff] %v2578
        %2595 = vst [vmem:[%s169 + $0x50] sm:$0xff] %v2579
        %2596 = vst [vmem:[%s169 + $0x58] sm:$0xff] %v2580
        %2597 = vst [vmem:[%s169 + $0x60] sm:$0xff] %v2581
        %2598 = vst [vmem:[%s169 + $0x68] sm:$0xff] %v2582
        %2599 = vst [vmem:[%s169 + $0x70] sm:$0xff] %v2583
        %2600 = vst [vmem:[%s169 + $0x78] sm:$0xff] %v2584
        %s2601 = sand.u32 %s100, 1
        %s2602 = scalar_lea.sflag [#allocation5], %s2601
        %s2603 = sand.u32 %s100, 1
        %s2604 = smul.addr %s2603, 128
        %s2605 = scalar_lea.vmem [#allocation4], %s2604
        // Predicated region
        $region111: #{tpu_custom_call.1} parent=27 // pred_check
          %p2606 = pneg %p110
        $region112: #{tpu_custom_call.1} parent=27 // pred_check_branch
          %2608 = sbr.rel (%p2606) target = $region114
        $region113: #{tpu_custom_call.1} parent=27 // pred_region
          %s2609 = smul.u32 8, %s24
          %s2611 = ssub.s32 2048, 2048
          %2612 = vsyncadd %s2602, %s2611
          %s2613 = smul.addr %s2609, 2
          %s2614 = sadd.s32 %s22, %s2613
          %s2615 = smul.addr %s23, 32
          %s2616 = sadd.s32 %s2614, %s2615
          %s2617 = smul.addr %s2616, 128
          %s2618 = scalar_lea.hbm %s3, %s2617
          %s2619 = sshll.u32 %s2605, 4
          %s2620 = int_to_ptr.vmem [resolvable:$true] %s2619
          %2625 = dma.vmem_to_hbm [thread:$0]  %s2620, 2048, %s2618, %s2602, 128, 128, 8
        $region114: #{tpu_custom_call.1} parent=27 // pred_fallthru
          _
      $region28: #{tpu_custom_call.1} parent=5 // pred_fallthru
        _
      %p2626 = scmp.le.s32.totalorder 2, %s12
      // Predicated region
      $region115: #{tpu_custom_call.1} parent=5 // pred_check
        %p2627 = pneg %p2626
      $region116: #{tpu_custom_call.1} parent=5 // pred_check_branch
        %2629 = sbr.rel (%p2627) target = $region118
      $region117: #{tpu_custom_call.1} parent=5 // pred_region
        %s2630 = ssub.s32 %s12, 2
        // Predicated region
        $region119: #{tpu_custom_call.1} parent=117 // pred_check
          %p2631 = pneg %p116
        $region120: #{tpu_custom_call.1} parent=117 // pred_check_branch
          %2633 = sbr.rel (%p2631) target = $region122
        $region121: #{tpu_custom_call.1} parent=117 // pred_region
          %s2634 = sand.u32 %s101, 1
          %s2635 = scalar_lea.sflag [#allocation5], %s2634
          %s2636 = sand.u32 %s101, 1
          %s2637 = smul.addr %s2636, 128
          %s2638 = scalar_lea.vmem [#allocation4], %s2637
          %2639 = dma.done %s2635, 2048
        $region122: #{tpu_custom_call.1} parent=117 // pred_fallthru
          _
      $region118: #{tpu_custom_call.1} parent=5 // pred_fallthru
        _
    $region6: #{tpu_custom_call.1} parent=1 // loop_footer
      %s16 = sadd.s32 1, %s12
    $region7: #{tpu_custom_call.1} parent=1 // loop_footer_branch
      %11 = sbr.rel target = $region3
    $region8: #{tpu_custom_call.1} parent=1 // loop_exit
      _
    %2640 = vsyncpa [#allocation5], 1
    %s2641 = scalar_lea.sflag [#allocation5], 1
    %2642 = vsyncpa %s2641, 1
  %2643 = vsyncmov [#allocation3]
  %s2644 = vpop.sfrf %2643
  %p2645 = scmp.eq.s32.totalorder %s2644, 0
  %p2646 = pneg %p2645
  %2648 = shalt.err (%p2646)
  %s2649 = scalar_lea.sflag [#allocation3], 1
  %2650 = vsyncmov %s2649
  %s2651 = vpop.sfrf %2650
  %p2652 = scmp.eq.s32.totalorder %s2651, 0
  %p2653 = pneg %p2652
  %2655 = shalt.err (%p2653)

</llo_original>
